<compile_context>
chip_gen: v7x
topology: tpu7x:2x2x1
jax: 0.10.0
libtpu: 0.0.40
codegen_flags: <defaults>
</compile_context>

<pallas_src>
import functools

import jax
import jax.numpy as jnp
from jax.experimental import pallas as pl
from jax.experimental.pallas import tpu as pltpu


POS_EMBED_SIZE = 3
COND_CODE_SIZE = 153
IN_DIM = COND_CODE_SIZE + POS_EMBED_SIZE     # 156
MLP_WIDTH = 128
MLP_DEPTH = 6                                # skips = [4]
OUT_DIM = 3


def _nonrigid_mlp_kernel(
    # row-tiled input: [condition_code | pos_embed], bf16
    x_ref,                      # (tile_m, 156)
    # weights (bf16 except the tiny VPU-path slice)
    w0_ref,                     # (156, 128) bf16   layer 0
    w1_ref, w2_ref, w3_ref,     # (128, 128) bf16   layers 1..3
    w4h_ref,                    # (128, 128) bf16   layer 4, hidden part
    w4p_ref,                    # (3, 128)   f32    layer 4, pos_embed part (VPU)
    w5_ref,                     # (128, 128) bf16   layer 5
    wo_ref,                     # (128, 3)   bf16   output layer
    b_ref,                      # (8, 128)   f32    rows 0..5 = b0..b5, row 6[:3] = bo
    # output
    off_ref,                    # (tile_m, 3) f32   offsets
):
    x = x_ref[...]                                  # bf16 (tile_m, 156)
    b = b_ref[...]                                  # f32  (8, 128)

    # Layer 0: cat([condition_code, pos_embed]) @ W0 + b0, ReLU — one K=156 matmul.
    h = jnp.dot(x, w0_ref[...], preferred_element_type=jnp.float32) + b[0:1, :]
    h = jnp.maximum(h, 0.0)

    # Layers 1..3: Linear(128->128) + ReLU (bf16 operands, f32 accumulation).
    for i, w_ref in ((1, w1_ref), (2, w2_ref), (3, w3_ref)):
        h = jnp.dot(h.astype(jnp.bfloat16), w_ref[...],
                    preferred_element_type=jnp.float32) + b[i:i + 1, :]
        h = jnp.maximum(h, 0.0)

    # Layer 4 (skip): cat([h, pos_embed]) @ W4 + b4, ReLU.
    # Hidden part on the MXU; the K=3 pos_embed part is done on the VPU as
    # three broadcast multiply-adds (keeps the vext slot free of a full-price
    # matmul push).
    pe = x[:, COND_CODE_SIZE:IN_DIM].astype(jnp.float32)          # (tile_m, 3)
    w4p = w4p_ref[...]                                            # (3, 128) f32
    h = jnp.dot(h.astype(jnp.bfloat16), w4h_ref[...],
                preferred_element_type=jnp.float32)
    h = (h
         + pe[:, 0:1] * w4p[0:1, :]
         + pe[:, 1:2] * w4p[1:2, :]
         + pe[:, 2:3] * w4p[2:3, :]
         + b[4:5, :])
    h = jnp.maximum(h, 0.0)

    # Layer 5: Linear(128->128) + ReLU.
    h = jnp.dot(h.astype(jnp.bfloat16), w5_ref[...],
                preferred_element_type=jnp.float32) + b[5:6, :]
    h = jnp.maximum(h, 0.0)

    # Output layer: Linear(128->3), no activation.
    trans = jnp.dot(h.astype(jnp.bfloat16), wo_ref[...],
                    preferred_element_type=jnp.float32) + b[6:7, :OUT_DIM]
    off_ref[...] = trans.astype(off_ref.dtype)


def init_params(key):
    """Deterministic parameter init in the module's (PyTorch) layout."""
    ks = jax.random.split(key, 16)

    def xavier(k, fan_in, fan_out):
        lim = (6.0 / (fan_in + fan_out)) ** 0.5
        return jax.random.uniform(k, (fan_in, fan_out), jnp.float32, -lim, lim)

    p = {}
    # Layer 0: Linear(153 + 3 -> 128)
    p["w0"] = xavier(ks[0], IN_DIM, MLP_WIDTH)
    p["b0"] = 0.01 * jax.random.normal(ks[1], (MLP_WIDTH,), jnp.float32)
    # Layers 1..3: Linear(128 -> 128)
    for i in range(1, 4):
        p[f"w{i}"] = xavier(ks[2 * i], MLP_WIDTH, MLP_WIDTH)
        p[f"b{i}"] = 0.01 * jax.random.normal(ks[2 * i + 1], (MLP_WIDTH,), jnp.float32)
    # Layer 4 (skip): Linear(128 + 3 -> 128)
    p["w4"] = xavier(ks[8], MLP_WIDTH + POS_EMBED_SIZE, MLP_WIDTH)
    p["b4"] = 0.01 * jax.random.normal(ks[9], (MLP_WIDTH,), jnp.float32)
    # Layer 5: Linear(128 -> 128)
    p["w5"] = xavier(ks[10], MLP_WIDTH, MLP_WIDTH)
    p["b5"] = 0.01 * jax.random.normal(ks[11], (MLP_WIDTH,), jnp.float32)
    # Output layer: Linear(128 -> 3), uniform(-1e-5, 1e-5) weights.
    p["wo"] = jax.random.uniform(ks[12], (MLP_WIDTH, OUT_DIM), jnp.float32, -1e-5, 1e-5)
    p["bo"] = 1e-4 * jax.random.normal(ks[13], (OUT_DIM,), jnp.float32)
    return p


@functools.partial(jax.jit, static_argnames=("tile_m",))
def nonrigid_motion_mlp(pos_embed, pos_xyz, condition_code, params, tile_m=512):
    N = pos_embed.shape[0]
    n_tiles = pl.cdiv(N, tile_m)
    n_pad = n_tiles * tile_m

    # Fused input [condition_code | pos_embed] in bf16; pad rows to a tile multiple.
    x = jnp.concatenate([condition_code, pos_embed], axis=-1).astype(jnp.bfloat16)
    if n_pad != N:
        x = jnp.pad(x, ((0, n_pad - N), (0, 0)))

    # Kernel-layout parameters (bf16 matmul weights, f32 VPU slice, packed biases).
    w0 = params["w0"].astype(jnp.bfloat16)                    # (156, 128)
    w1 = params["w1"].astype(jnp.bfloat16)
    w2 = params["w2"].astype(jnp.bfloat16)
    w3 = params["w3"].astype(jnp.bfloat16)
    w4h = params["w4"][:MLP_WIDTH].astype(jnp.bfloat16)       # (128, 128)
    w4p = params["w4"][MLP_WIDTH:].astype(jnp.float32)        # (3, 128)  VPU path
    w5 = params["w5"].astype(jnp.bfloat16)
    wo = params["wo"].astype(jnp.bfloat16)                    # (128, 3)

    b_rows = [params[f"b{i}"].reshape(1, MLP_WIDTH).astype(jnp.float32)
              for i in range(6)]
    bo_row = jnp.zeros((1, MLP_WIDTH), jnp.float32).at[0, :OUT_DIM].set(
        params["bo"].astype(jnp.float32))
    b_pack = jnp.concatenate(
        b_rows + [bo_row, jnp.zeros((1, MLP_WIDTH), jnp.float32)], axis=0)  # (8, 128)

    row_spec = lambda f: pl.BlockSpec((tile_m, f), lambda i: (i, 0))
    full_spec = lambda r, c: pl.BlockSpec((r, c), lambda i: (0, 0))

    flops = 2 * n_pad * (IN_DIM * MLP_WIDTH + 5 * MLP_WIDTH * MLP_WIDTH
                         + POS_EMBED_SIZE * MLP_WIDTH + MLP_WIDTH * OUT_DIM)
    bytes_accessed = (
        n_pad * IN_DIM * 2 + n_pad * OUT_DIM * 4                       # activations
        + (IN_DIM + 5 * MLP_WIDTH) * MLP_WIDTH * 2                     # bf16 weights
        + MLP_WIDTH * OUT_DIM * 2
        + POS_EMBED_SIZE * MLP_WIDTH * 4 + 8 * MLP_WIDTH * 4)          # f32 w4p + biases

    offsets = pl.pallas_call(
        _nonrigid_mlp_kernel,
        grid=(n_tiles,),
        in_specs=[
            row_spec(IN_DIM),                     # x
            full_spec(IN_DIM, MLP_WIDTH),         # w0
            full_spec(MLP_WIDTH, MLP_WIDTH),      # w1
            full_spec(MLP_WIDTH, MLP_WIDTH),      # w2
            full_spec(MLP_WIDTH, MLP_WIDTH),      # w3
            full_spec(MLP_WIDTH, MLP_WIDTH),      # w4h
            full_spec(POS_EMBED_SIZE, MLP_WIDTH), # w4p
            full_spec(MLP_WIDTH, MLP_WIDTH),      # w5
            full_spec(MLP_WIDTH, OUT_DIM),        # wo
            full_spec(8, MLP_WIDTH),              # packed biases
        ],
        out_specs=row_spec(OUT_DIM),
        out_shape=jax.ShapeDtypeStruct((n_pad, OUT_DIM), jnp.float32),
        compiler_params=pltpu.CompilerParams(
            dimension_semantics=("parallel",)),
        cost_estimate=pl.CostEstimate(
            flops=flops, transcendentals=0, bytes_accessed=bytes_accessed),
    )(x, w0, w1, w2, w3, w4h, w4p, w5, wo, b_pack)

    offsets = offsets[:N].astype(pos_xyz.dtype)
    return {"xyz": pos_xyz + offsets, "offsets": offsets}


def _reference_f32(pos_embed, pos_xyz, condition_code, p):
    """Pure-JAX f32 reference mirroring the PyTorch forward exactly."""
    h = jnp.concatenate([condition_code, pos_embed], axis=-1)
    h = jax.nn.relu(h @ p["w0"] + p["b0"])
    for i in range(1, 4):
        h = jax.nn.relu(h @ p[f"w{i}"] + p[f"b{i}"])
    h = jnp.concatenate([h, pos_embed], axis=-1)
    h = jax.nn.relu(h @ p["w4"] + p["b4"])
    h = jax.nn.relu(h @ p["w5"] + p["b5"])
    trans = h @ p["wo"] + p["bo"]
    return {"xyz": pos_xyz + trans, "offsets": trans}


def _reference_matched(pos_embed, pos_xyz, condition_code, p):
    """Pure-JAX reference with the same bf16-operand / f32-accumulate numerics
    as the kernel (split skip-layer matmul included)."""
    x = jnp.concatenate([condition_code, pos_embed], axis=-1).astype(jnp.bfloat16)
    pe = x[:, COND_CODE_SIZE:].astype(jnp.float32)
    h = jnp.dot(x, p["w0"].astype(jnp.bfloat16),
                preferred_element_type=jnp.float32) + p["b0"]
    h = jnp.maximum(h, 0.0)
    for i in range(1, 4):
        h = jnp.dot(h.astype(jnp.bfloat16), p[f"w{i}"].astype(jnp.bfloat16),
                    preferred_element_type=jnp.float32) + p[f"b{i}"]
        h = jnp.maximum(h, 0.0)
    w4h = p["w4"][:MLP_WIDTH].astype(jnp.bfloat16)
    w4p = p["w4"][MLP_WIDTH:].astype(jnp.float32)
    h = (jnp.dot(h.astype(jnp.bfloat16), w4h, preferred_element_type=jnp.float32)
         + pe @ w4p + p["b4"])
    h = jnp.maximum(h, 0.0)
    h = jnp.dot(h.astype(jnp.bfloat16), p["w5"].astype(jnp.bfloat16),
                preferred_element_type=jnp.float32) + p["b5"]
    h = jnp.maximum(h, 0.0)
    trans = jnp.dot(h.astype(jnp.bfloat16), p["wo"].astype(jnp.bfloat16),
                    preferred_element_type=jnp.float32) + p["bo"]
    return {"xyz": pos_xyz + trans, "offsets": trans}


if __name__ == "__main__":
    key = jax.random.PRNGKey(0)
    k_pe, k_xyz, k_cc, k_params = jax.random.split(key, 4)

    # Deliberately NOT a multiple of tile_m=512 -> exercises the padding path,
    # and gives 2 grid steps so both v7x TensorCores get work.
    N = 1000
    pos_embed = jax.random.normal(k_pe, (N, POS_EMBED_SIZE), jnp.float32)
    pos_xyz = jax.random.normal(k_xyz, (N, POS_EMBED_SIZE), jnp.float32)
    condition_code = jax.random.normal(k_cc, (N, COND_CODE_SIZE), jnp.float32)

    params = init_params(k_params)

    out = nonrigid_motion_mlp(pos_embed, pos_xyz, condition_code, params)
    jax.block_until_ready(out)

    # 1) Match against a reference with identical bf16/f32 numerics.
    ref_m = _reference_matched(pos_embed, pos_xyz, condition_code, params)
    assert jnp.allclose(out["offsets"], ref_m["offsets"], atol=5e-6, rtol=1e-2), \
        float(jnp.max(jnp.abs(out["offsets"] - ref_m["offsets"])))
    assert jnp.allclose(out["xyz"], ref_m["xyz"], atol=1e-5, rtol=1e-4)

    # 2) Sanity against the full-precision (PyTorch-semantics) reference:
    #    bf16 quantization error stays a small fraction of the offset scale.
    ref_f = _reference_f32(pos_embed, pos_xyz, condition_code, params)
    scale = jnp.max(jnp.abs(ref_f["offsets"])) + 1e-12
    rel = jnp.max(jnp.abs(out["offsets"] - ref_f["offsets"])) / scale
    assert rel < 0.05, float(rel)
    assert jnp.allclose(out["xyz"], ref_f["xyz"], atol=1e-3)

    print("KERNEL_OK")
</pallas_src>

<mosaic_0001>
module attributes {stable_mosaic.version = 11 : i64} {
  func.func @_nonrigid_mlp_kernel(%arg0: i32, %arg1: memref<512x156xbf16, #tpu.memory_space<vmem>>, %arg2: memref<156x128xbf16, #tpu.memory_space<vmem>>, %arg3: memref<128x128xbf16, #tpu.memory_space<vmem>>, %arg4: memref<128x128xbf16, #tpu.memory_space<vmem>>, %arg5: memref<128x128xbf16, #tpu.memory_space<vmem>>, %arg6: memref<128x128xbf16, #tpu.memory_space<vmem>>, %arg7: memref<3x128xf32, #tpu.memory_space<vmem>>, %arg8: memref<128x128xbf16, #tpu.memory_space<vmem>>, %arg9: memref<128x3xbf16, #tpu.memory_space<vmem>>, %arg10: memref<8x128xf32, #tpu.memory_space<vmem>>, %arg11: memref<512x3xf32, #tpu.memory_space<vmem>>) attributes {dimension_semantics = [#tpu.dimension_semantics<parallel>], iteration_bounds = array<i64: 2>, scalar_prefetch = 0 : i64, scratch_operands = 0 : i64, tpu.core_type = #tpu.core_type<tc>, window_params = [{transform_indices = @transform_0, window_bounds = array<i64: 512, 156>}, {pipeline_mode = #tpu.pipeline_mode<synchronous>, transform_indices = @transform_1, window_bounds = array<i64: 156, 128>}, {pipeline_mode = #tpu.pipeline_mode<synchronous>, transform_indices = @transform_2, window_bounds = array<i64: 128, 128>}, {pipeline_mode = #tpu.pipeline_mode<synchronous>, transform_indices = @transform_3, window_bounds = array<i64: 128, 128>}, {pipeline_mode = #tpu.pipeline_mode<synchronous>, transform_indices = @transform_4, window_bounds = array<i64: 128, 128>}, {pipeline_mode = #tpu.pipeline_mode<synchronous>, transform_indices = @transform_5, window_bounds = array<i64: 128, 128>}, {pipeline_mode = #tpu.pipeline_mode<synchronous>, transform_indices = @transform_6, window_bounds = array<i64: 3, 128>}, {pipeline_mode = #tpu.pipeline_mode<synchronous>, transform_indices = @transform_7, window_bounds = array<i64: 128, 128>}, {pipeline_mode = #tpu.pipeline_mode<synchronous>, transform_indices = @transform_8, window_bounds = array<i64: 128, 3>}, {pipeline_mode = #tpu.pipeline_mode<synchronous>, transform_indices = @transform_9, window_bounds = array<i64: 8, 128>}, {transform_indices = @transform_10, window_bounds = array<i64: 512, 3>}]} {
    %c0 = arith.constant 0 : index
    %c0_0 = arith.constant 0 : index
    %0 = vector.load %arg1[%c0, %c0_0] : memref<512x156xbf16, #tpu.memory_space<vmem>>, vector<512x156xbf16>
    %c0_1 = arith.constant 0 : index
    %c0_2 = arith.constant 0 : index
    %1 = vector.load %arg10[%c0_1, %c0_2] : memref<8x128xf32, #tpu.memory_space<vmem>>, vector<8x128xf32>
    %c0_3 = arith.constant 0 : index
    %c0_4 = arith.constant 0 : index
    %2 = vector.load %arg2[%c0_3, %c0_4] : memref<156x128xbf16, #tpu.memory_space<vmem>>, vector<156x128xbf16>
    %cst = arith.constant dense<0.000000e+00> : vector<512x128xf32>
    %3 = tpu.matmul %0, %2, %cst {dimension_numbers = #tpu.dot_dimension_numbers<[1], [0], [0], [1], [0, 0, 1, 1], [], []>} : vector<512x156xbf16>, vector<156x128xbf16>, vector<512x128xf32> -> vector<512x128xf32>
    %4 = vector.extract_strided_slice %1 {offsets = [0, 0], sizes = [1, 128], strides = [1, 1]} : vector<8x128xf32> to vector<1x128xf32>
    %5 = vector.broadcast %4 : vector<1x128xf32> to vector<512x128xf32>
    %6 = arith.addf %3, %5 : vector<512x128xf32>
    %cst_5 = arith.constant 0.000000e+00 : f32
    %7 = vector.broadcast %cst_5 : f32 to vector<512x128xf32>
    %8 = arith.maximumf %6, %7 : vector<512x128xf32>
    %9 = arith.truncf %8 : vector<512x128xf32> to vector<512x128xbf16>
    %c0_6 = arith.constant 0 : index
    %c0_7 = arith.constant 0 : index
    %10 = vector.load %arg3[%c0_6, %c0_7] : memref<128x128xbf16, #tpu.memory_space<vmem>>, vector<128x128xbf16>
    %cst_8 = arith.constant dense<0.000000e+00> : vector<512x128xf32>
    %11 = tpu.matmul %9, %10, %cst_8 {dimension_numbers = #tpu.dot_dimension_numbers<[1], [0], [0], [1], [0, 0, 1, 1], [], []>} : vector<512x128xbf16>, vector<128x128xbf16>, vector<512x128xf32> -> vector<512x128xf32>
    %12 = vector.extract_strided_slice %1 {offsets = [1, 0], sizes = [1, 128], strides = [1, 1]} : vector<8x128xf32> to vector<1x128xf32>
    %13 = vector.broadcast %12 : vector<1x128xf32> to vector<512x128xf32>
    %14 = arith.addf %11, %13 : vector<512x128xf32>
    %cst_9 = arith.constant 0.000000e+00 : f32
    %15 = vector.broadcast %cst_9 : f32 to vector<512x128xf32>
    %16 = arith.maximumf %14, %15 : vector<512x128xf32>
    %17 = arith.truncf %16 : vector<512x128xf32> to vector<512x128xbf16>
    %c0_10 = arith.constant 0 : index
    %c0_11 = arith.constant 0 : index
    %18 = vector.load %arg4[%c0_10, %c0_11] : memref<128x128xbf16, #tpu.memory_space<vmem>>, vector<128x128xbf16>
    %cst_12 = arith.constant dense<0.000000e+00> : vector<512x128xf32>
    %19 = tpu.matmul %17, %18, %cst_12 {dimension_numbers = #tpu.dot_dimension_numbers<[1], [0], [0], [1], [0, 0, 1, 1], [], []>} : vector<512x128xbf16>, vector<128x128xbf16>, vector<512x128xf32> -> vector<512x128xf32>
    %20 = vector.extract_strided_slice %1 {offsets = [2, 0], sizes = [1, 128], strides = [1, 1]} : vector<8x128xf32> to vector<1x128xf32>
    %21 = vector.broadcast %20 : vector<1x128xf32> to vector<512x128xf32>
    %22 = arith.addf %19, %21 : vector<512x128xf32>
    %cst_13 = arith.constant 0.000000e+00 : f32
    %23 = vector.broadcast %cst_13 : f32 to vector<512x128xf32>
    %24 = arith.maximumf %22, %23 : vector<512x128xf32>
    %25 = arith.truncf %24 : vector<512x128xf32> to vector<512x128xbf16>
    %c0_14 = arith.constant 0 : index
    %c0_15 = arith.constant 0 : index
    %26 = vector.load %arg5[%c0_14, %c0_15] : memref<128x128xbf16, #tpu.memory_space<vmem>>, vector<128x128xbf16>
    %cst_16 = arith.constant dense<0.000000e+00> : vector<512x128xf32>
    %27 = tpu.matmul %25, %26, %cst_16 {dimension_numbers = #tpu.dot_dimension_numbers<[1], [0], [0], [1], [0, 0, 1, 1], [], []>} : vector<512x128xbf16>, vector<128x128xbf16>, vector<512x128xf32> -> vector<512x128xf32>
    %28 = vector.extract_strided_slice %1 {offsets = [3, 0], sizes = [1, 128], strides = [1, 1]} : vector<8x128xf32> to vector<1x128xf32>
    %29 = vector.broadcast %28 : vector<1x128xf32> to vector<512x128xf32>
    %30 = arith.addf %27, %29 : vector<512x128xf32>
    %cst_17 = arith.constant 0.000000e+00 : f32
    %31 = vector.broadcast %cst_17 : f32 to vector<512x128xf32>
    %32 = arith.maximumf %30, %31 : vector<512x128xf32>
    %33 = vector.extract_strided_slice %0 {offsets = [0, 153], sizes = [512, 3], strides = [1, 1]} : vector<512x156xbf16> to vector<512x3xbf16>
    %34 = arith.extf %33 : vector<512x3xbf16> to vector<512x3xf32>
    %c0_18 = arith.constant 0 : index
    %c0_19 = arith.constant 0 : index
    %35 = vector.load %arg7[%c0_18, %c0_19] : memref<3x128xf32, #tpu.memory_space<vmem>>, vector<3x128xf32>
    %36 = arith.truncf %32 : vector<512x128xf32> to vector<512x128xbf16>
    %c0_20 = arith.constant 0 : index
    %c0_21 = arith.constant 0 : index
    %37 = vector.load %arg6[%c0_20, %c0_21] : memref<128x128xbf16, #tpu.memory_space<vmem>>, vector<128x128xbf16>
    %cst_22 = arith.constant dense<0.000000e+00> : vector<512x128xf32>
    %38 = tpu.matmul %36, %37, %cst_22 {dimension_numbers = #tpu.dot_dimension_numbers<[1], [0], [0], [1], [0, 0, 1, 1], [], []>} : vector<512x128xbf16>, vector<128x128xbf16>, vector<512x128xf32> -> vector<512x128xf32>
    %39 = vector.extract_strided_slice %34 {offsets = [0, 0], sizes = [512, 1], strides = [1, 1]} : vector<512x3xf32> to vector<512x1xf32>
    %40 = vector.extract_strided_slice %35 {offsets = [0, 0], sizes = [1, 128], strides = [1, 1]} : vector<3x128xf32> to vector<1x128xf32>
    %41 = vector.broadcast %39 : vector<512x1xf32> to vector<512x128xf32>
    %42 = vector.broadcast %40 : vector<1x128xf32> to vector<512x128xf32>
    %43 = arith.mulf %41, %42 : vector<512x128xf32>
    %44 = arith.addf %38, %43 : vector<512x128xf32>
    %45 = vector.extract_strided_slice %34 {offsets = [0, 1], sizes = [512, 1], strides = [1, 1]} : vector<512x3xf32> to vector<512x1xf32>
    %46 = vector.extract_strided_slice %35 {offsets = [1, 0], sizes = [1, 128], strides = [1, 1]} : vector<3x128xf32> to vector<1x128xf32>
    %47 = vector.broadcast %45 : vector<512x1xf32> to vector<512x128xf32>
    %48 = vector.broadcast %46 : vector<1x128xf32> to vector<512x128xf32>
    %49 = arith.mulf %47, %48 : vector<512x128xf32>
    %50 = arith.addf %44, %49 : vector<512x128xf32>
    %51 = vector.extract_strided_slice %34 {offsets = [0, 2], sizes = [512, 1], strides = [1, 1]} : vector<512x3xf32> to vector<512x1xf32>
    %52 = vector.extract_strided_slice %35 {offsets = [2, 0], sizes = [1, 128], strides = [1, 1]} : vector<3x128xf32> to vector<1x128xf32>
    %53 = vector.broadcast %51 : vector<512x1xf32> to vector<512x128xf32>
    %54 = vector.broadcast %52 : vector<1x128xf32> to vector<512x128xf32>
    %55 = arith.mulf %53, %54 : vector<512x128xf32>
    %56 = arith.addf %50, %55 : vector<512x128xf32>
    %57 = vector.extract_strided_slice %1 {offsets = [4, 0], sizes = [1, 128], strides = [1, 1]} : vector<8x128xf32> to vector<1x128xf32>
    %58 = vector.broadcast %57 : vector<1x128xf32> to vector<512x128xf32>
    %59 = arith.addf %56, %58 : vector<512x128xf32>
    %cst_23 = arith.constant 0.000000e+00 : f32
    %60 = vector.broadcast %cst_23 : f32 to vector<512x128xf32>
    %61 = arith.maximumf %59, %60 : vector<512x128xf32>
    %62 = arith.truncf %61 : vector<512x128xf32> to vector<512x128xbf16>
    %c0_24 = arith.constant 0 : index
    %c0_25 = arith.constant 0 : index
    %63 = vector.load %arg8[%c0_24, %c0_25] : memref<128x128xbf16, #tpu.memory_space<vmem>>, vector<128x128xbf16>
    %cst_26 = arith.constant dense<0.000000e+00> : vector<512x128xf32>
    %64 = tpu.matmul %62, %63, %cst_26 {dimension_numbers = #tpu.dot_dimension_numbers<[1], [0], [0], [1], [0, 0, 1, 1], [], []>} : vector<512x128xbf16>, vector<128x128xbf16>, vector<512x128xf32> -> vector<512x128xf32>
    %65 = vector.extract_strided_slice %1 {offsets = [5, 0], sizes = [1, 128], strides = [1, 1]} : vector<8x128xf32> to vector<1x128xf32>
    %66 = vector.broadcast %65 : vector<1x128xf32> to vector<512x128xf32>
    %67 = arith.addf %64, %66 : vector<512x128xf32>
    %cst_27 = arith.constant 0.000000e+00 : f32
    %68 = vector.broadcast %cst_27 : f32 to vector<512x128xf32>
    %69 = arith.maximumf %67, %68 : vector<512x128xf32>
    %70 = arith.truncf %69 : vector<512x128xf32> to vector<512x128xbf16>
    %c0_28 = arith.constant 0 : index
    %c0_29 = arith.constant 0 : index
    %71 = vector.load %arg9[%c0_28, %c0_29] : memref<128x3xbf16, #tpu.memory_space<vmem>>, vector<128x3xbf16>
    %cst_30 = arith.constant dense<0.000000e+00> : vector<512x3xf32>
    %72 = tpu.matmul %70, %71, %cst_30 {dimension_numbers = #tpu.dot_dimension_numbers<[1], [0], [0], [1], [0, 0, 1, 1], [], []>} : vector<512x128xbf16>, vector<128x3xbf16>, vector<512x3xf32> -> vector<512x3xf32>
    %73 = vector.extract_strided_slice %1 {offsets = [6, 0], sizes = [1, 3], strides = [1, 1]} : vector<8x128xf32> to vector<1x3xf32>
    %74 = vector.broadcast %73 : vector<1x3xf32> to vector<512x3xf32>
    %75 = arith.addf %72, %74 : vector<512x3xf32>
    %c0_31 = arith.constant 0 : index
    %c0_32 = arith.constant 0 : index
    %76 = vector.load %arg11[%c0_31, %c0_32] : memref<512x3xf32, #tpu.memory_space<vmem>>, vector<512x3xf32>
    tpu.vector_store %arg11[%c0_31, %c0_32], %75 {strides = array<i32>} : memref<512x3xf32, #tpu.memory_space<vmem>>, vector<512x3xf32>,
    return
  }
  func.func @transform_0(%arg0: i32) -> (i32, i32) {
    %c0_i32 = arith.constant 0 : i32
    %c0_i32_0 = arith.constant 0 : i32
    return %arg0, %c0_i32 : i32, i32
  }
  func.func @transform_1(%arg0: i32) -> (i32, i32) {
    %c0_i32 = arith.constant 0 : i32
    %c0_i32_0 = arith.constant 0 : i32
    %c0_i32_1 = arith.constant 0 : i32
    return %c0_i32, %c0_i32_0 : i32, i32
  }
  func.func @transform_2(%arg0: i32) -> (i32, i32) {
    %c0_i32 = arith.constant 0 : i32
    %c0_i32_0 = arith.constant 0 : i32
    %c0_i32_1 = arith.constant 0 : i32
    return %c0_i32, %c0_i32_0 : i32, i32
  }
  func.func @transform_3(%arg0: i32) -> (i32, i32) {
    %c0_i32 = arith.constant 0 : i32
    %c0_i32_0 = arith.constant 0 : i32
    %c0_i32_1 = arith.constant 0 : i32
    return %c0_i32, %c0_i32_0 : i32, i32
  }
  func.func @transform_4(%arg0: i32) -> (i32, i32) {
    %c0_i32 = arith.constant 0 : i32
    %c0_i32_0 = arith.constant 0 : i32
    %c0_i32_1 = arith.constant 0 : i32
    return %c0_i32, %c0_i32_0 : i32, i32
  }
  func.func @transform_5(%arg0: i32) -> (i32, i32) {
    %c0_i32 = arith.constant 0 : i32
    %c0_i32_0 = arith.constant 0 : i32
    %c0_i32_1 = arith.constant 0 : i32
    return %c0_i32, %c0_i32_0 : i32, i32
  }
  func.func @transform_6(%arg0: i32) -> (i32, i32) {
    %c0_i32 = arith.constant 0 : i32
    %c0_i32_0 = arith.constant 0 : i32
    %c0_i32_1 = arith.constant 0 : i32
    return %c0_i32, %c0_i32_0 : i32, i32
  }
  func.func @transform_7(%arg0: i32) -> (i32, i32) {
    %c0_i32 = arith.constant 0 : i32
    %c0_i32_0 = arith.constant 0 : i32
    %c0_i32_1 = arith.constant 0 : i32
    return %c0_i32, %c0_i32_0 : i32, i32
  }
  func.func @transform_8(%arg0: i32) -> (i32, i32) {
    %c0_i32 = arith.constant 0 : i32
    %c0_i32_0 = arith.constant 0 : i32
    %c0_i32_1 = arith.constant 0 : i32
    return %c0_i32, %c0_i32_0 : i32, i32
  }
  func.func @transform_9(%arg0: i32) -> (i32, i32) {
    %c0_i32 = arith.constant 0 : i32
    %c0_i32_0 = arith.constant 0 : i32
    %c0_i32_1 = arith.constant 0 : i32
    return %c0_i32, %c0_i32_0 : i32, i32
  }
  func.func @transform_10(%arg0: i32) -> (i32, i32) {
    %c0_i32 = arith.constant 0 : i32
    %c0_i32_0 = arith.constant 0 : i32
    return %arg0, %c0_i32 : i32, i32
  }
}

</mosaic_0001>

<llo_original>
// kernel: nonrigid_motion_mlp.1
$region0: #{nonrigid_motion_mlp.1}
  #allocation0 [shape = 'u32[]', space=smem, size = 0x4, offset = 0x4, fixed_abs, tag = 'smem constant byte address 0x4 - core index']
  #allocation1 [shape = 'u32[144,128]{1,0:T(1,128)}', space=vmem, size = 0x12000, scoped, tag = 'internal scratch']
  %s0 = inlined_call_operand.vmem [shape: bf16[1024,156], index: 0, kind: input, shape index: {}]
  %s1 = inlined_call_operand.vmem [shape: bf16[156,128], index: 1, kind: input, shape index: {}]
  %s2 = inlined_call_operand.vmem [shape: bf16[128,128], index: 2, kind: input, shape index: {}]
  %s3 = inlined_call_operand.vmem [shape: bf16[128,128], index: 3, kind: input, shape index: {}]
  %s4 = inlined_call_operand.vmem [shape: bf16[128,128], index: 4, kind: input, shape index: {}]
  %s5 = inlined_call_operand.vmem [shape: bf16[128,128], index: 5, kind: input, shape index: {}]
  %s6 = inlined_call_operand.vmem [shape: f32[3,128], index: 6, kind: input, shape index: {}]
  %s7 = inlined_call_operand.vmem [shape: bf16[128,128], index: 7, kind: input, shape index: {}]
  %s8 = inlined_call_operand.vmem [shape: bf16[128,3], index: 8, kind: input, shape index: {}]
  %s9 = inlined_call_operand.vmem [shape: f32[8,128], index: 9, kind: input, shape index: {}]
  %s10 = inlined_call_operand.vmem [shape: f32[1024,3], index: 10, kind: output, shape index: {}]
  %s11 = sld [smem:[#allocation0]]
  $region73: #{nonrigid_motion_mlp.1} parent=0
    _
  %s13 = ssub.s32 1, %s11
  %s14 = scalar_select 0, %s13, %s11
  loop: start=0, step=1, limit=4
  $region2: #{nonrigid_motion_mlp.1} parent=0 // loop_pre_header
    _
  $region3: #{nonrigid_motion_mlp.1} parent=0 // loop_header
    %s16 = sphi 0, %s20
    %p17 = scmp.ge.s32.totalorder %s16, 4
    %s26 = sphi 0, %s28
    %s29 = sphi 0, %s26
    %s30 = sphi 0, %s29
    %s46 = sphi 0, %s30
    %s50 = sphi 0, %s50
    %s52 = sphi 0, %s50
    %s53 = sphi 0, %s52
    %s67 = sphi 0, %s53
    %s71 = sphi 0, %s71
    %s73 = sphi 0, %s71
    %s74 = sphi 0, %s73
    %s88 = sphi 0, %s74
    %s92 = sphi 0, %s92
    %s94 = sphi 0, %s92
    %s95 = sphi 0, %s94
    %s109 = sphi 0, %s95
    %s113 = sphi 0, %s113
    %s115 = sphi 0, %s113
    %s116 = sphi 0, %s115
    %s130 = sphi 0, %s116
    %s134 = sphi 0, %s134
    %s136 = sphi 0, %s134
    %s137 = sphi 0, %s136
    %s151 = sphi 0, %s137
    %s155 = sphi 0, %s155
    %s157 = sphi 0, %s155
    %s158 = sphi 0, %s157
    %s172 = sphi 0, %s158
    %s176 = sphi 0, %s176
    %s178 = sphi 0, %s176
    %s179 = sphi 0, %s178
    %s193 = sphi 0, %s179
    %s197 = sphi 0, %s197
    %s199 = sphi 0, %s197
    %s200 = sphi 0, %s199
    %s214 = sphi 0, %s200
    %s218 = sphi 0, %s218
    %s220 = sphi 0, %s218
    %s221 = sphi 0, %s220
    %s235 = sphi 0, %s221
    %s241 = sphi 0, %s243
    %s244 = sphi 0, %s241
    %s245 = sphi 0, %s244
    %s261 = sphi 0, %s245
  $region4: #{nonrigid_motion_mlp.1} parent=0 // loop_header_branch
    %19 = sbr.rel (%p17) target = $region8
  $region5: #{nonrigid_motion_mlp.1} parent=0 // loop_body
    %s21 = ssub.s32 %s16, 1
    %s22 = ssub.s32 %s16, 2
    %s23 = sadd.s32 %s16, 1
    %s24 = ssub.s32 %s16, %s23
    %p25 = scmp.eq.s32.totalorder %s24, 0
    %s27 = sadd.s32 %s26, 1
    %s28 = scalar_select %p25, %s26, %s27
    %p31 = pneg %p25
    %p32 = scmp.eq.s32.totalorder %s16, 1
    %p33 = por %p31, %p32
    %p34 = scmp.ne.s32.totalorder %s26, %s29
    %p35 = scmp.eq.s32.totalorder %s16, 0
    %p36 = por %p34, %p35
    %p37 = scmp.ne.s32.totalorder %s26, %s29
    %p38 = scmp.eq.s32.totalorder %s21, 1
    %p39 = por %p37, %p38
    %p40 = scmp.ne.s32.totalorder %s29, %s30
    %p41 = scmp.eq.s32.totalorder %s21, 0
    %p42 = por %p40, %p41
    %p43 = scmp.ne.s32.totalorder %s29, %s30
    %p44 = scmp.eq.s32.totalorder %s22, 1
    %p45 = por %p43, %p44
    %p47 = scmp.ne.s32.totalorder %s30, %s46
    %p48 = scmp.eq.s32.totalorder %s22, 0
    %p49 = por %p47, %p48
    %s51 = sadd.s32 %s50, 1
    %p54 = scmp.eq.s32.totalorder %s16, 1
    %p55 = scmp.ne.s32.totalorder %s50, %s52
    %p56 = scmp.eq.s32.totalorder %s16, 0
    %p57 = por %p55, %p56
    %p58 = scmp.ne.s32.totalorder %s50, %s52
    %p59 = scmp.eq.s32.totalorder %s21, 1
    %p60 = por %p58, %p59
    %p61 = scmp.ne.s32.totalorder %s52, %s53
    %p62 = scmp.eq.s32.totalorder %s21, 0
    %p63 = por %p61, %p62
    %p64 = scmp.ne.s32.totalorder %s52, %s53
    %p65 = scmp.eq.s32.totalorder %s22, 1
    %p66 = por %p64, %p65
    %p68 = scmp.ne.s32.totalorder %s53, %s67
    %p69 = scmp.eq.s32.totalorder %s22, 0
    %p70 = por %p68, %p69
    %s72 = sadd.s32 %s71, 1
    %p75 = scmp.eq.s32.totalorder %s16, 1
    %p76 = scmp.ne.s32.totalorder %s71, %s73
    %p77 = scmp.eq.s32.totalorder %s16, 0
    %p78 = por %p76, %p77
    %p79 = scmp.ne.s32.totalorder %s71, %s73
    %p80 = scmp.eq.s32.totalorder %s21, 1
    %p81 = por %p79, %p80
    %p82 = scmp.ne.s32.totalorder %s73, %s74
    %p83 = scmp.eq.s32.totalorder %s21, 0
    %p84 = por %p82, %p83
    %p85 = scmp.ne.s32.totalorder %s73, %s74
    %p86 = scmp.eq.s32.totalorder %s22, 1
    %p87 = por %p85, %p86
    %p89 = scmp.ne.s32.totalorder %s74, %s88
    %p90 = scmp.eq.s32.totalorder %s22, 0
    %p91 = por %p89, %p90
    %s93 = sadd.s32 %s92, 1
    %p96 = scmp.eq.s32.totalorder %s16, 1
    %p97 = scmp.ne.s32.totalorder %s92, %s94
    %p98 = scmp.eq.s32.totalorder %s16, 0
    %p99 = por %p97, %p98
    %p100 = scmp.ne.s32.totalorder %s92, %s94
    %p101 = scmp.eq.s32.totalorder %s21, 1
    %p102 = por %p100, %p101
    %p103 = scmp.ne.s32.totalorder %s94, %s95
    %p104 = scmp.eq.s32.totalorder %s21, 0
    %p105 = por %p103, %p104
    %p106 = scmp.ne.s32.totalorder %s94, %s95
    %p107 = scmp.eq.s32.totalorder %s22, 1
    %p108 = por %p106, %p107
    %p110 = scmp.ne.s32.totalorder %s95, %s109
    %p111 = scmp.eq.s32.totalorder %s22, 0
    %p112 = por %p110, %p111
    %s114 = sadd.s32 %s113, 1
    %p117 = scmp.eq.s32.totalorder %s16, 1
    %p118 = scmp.ne.s32.totalorder %s113, %s115
    %p119 = scmp.eq.s32.totalorder %s16, 0
    %p120 = por %p118, %p119
    %p121 = scmp.ne.s32.totalorder %s113, %s115
    %p122 = scmp.eq.s32.totalorder %s21, 1
    %p123 = por %p121, %p122
    %p124 = scmp.ne.s32.totalorder %s115, %s116
    %p125 = scmp.eq.s32.totalorder %s21, 0
    %p126 = por %p124, %p125
    %p127 = scmp.ne.s32.totalorder %s115, %s116
    %p128 = scmp.eq.s32.totalorder %s22, 1
    %p129 = por %p127, %p128
    %p131 = scmp.ne.s32.totalorder %s116, %s130
    %p132 = scmp.eq.s32.totalorder %s22, 0
    %p133 = por %p131, %p132
    %s135 = sadd.s32 %s134, 1
    %p138 = scmp.eq.s32.totalorder %s16, 1
    %p139 = scmp.ne.s32.totalorder %s134, %s136
    %p140 = scmp.eq.s32.totalorder %s16, 0
    %p141 = por %p139, %p140
    %p142 = scmp.ne.s32.totalorder %s134, %s136
    %p143 = scmp.eq.s32.totalorder %s21, 1
    %p144 = por %p142, %p143
    %p145 = scmp.ne.s32.totalorder %s136, %s137
    %p146 = scmp.eq.s32.totalorder %s21, 0
    %p147 = por %p145, %p146
    %p148 = scmp.ne.s32.totalorder %s136, %s137
    %p149 = scmp.eq.s32.totalorder %s22, 1
    %p150 = por %p148, %p149
    %p152 = scmp.ne.s32.totalorder %s137, %s151
    %p153 = scmp.eq.s32.totalorder %s22, 0
    %p154 = por %p152, %p153
    %s156 = sadd.s32 %s155, 1
    %p159 = scmp.eq.s32.totalorder %s16, 1
    %p160 = scmp.ne.s32.totalorder %s155, %s157
    %p161 = scmp.eq.s32.totalorder %s16, 0
    %p162 = por %p160, %p161
    %p163 = scmp.ne.s32.totalorder %s155, %s157
    %p164 = scmp.eq.s32.totalorder %s21, 1
    %p165 = por %p163, %p164
    %p166 = scmp.ne.s32.totalorder %s157, %s158
    %p167 = scmp.eq.s32.totalorder %s21, 0
    %p168 = por %p166, %p167
    %p169 = scmp.ne.s32.totalorder %s157, %s158
    %p170 = scmp.eq.s32.totalorder %s22, 1
    %p171 = por %p169, %p170
    %p173 = scmp.ne.s32.totalorder %s158, %s172
    %p174 = scmp.eq.s32.totalorder %s22, 0
    %p175 = por %p173, %p174
    %s177 = sadd.s32 %s176, 1
    %p180 = scmp.eq.s32.totalorder %s16, 1
    %p181 = scmp.ne.s32.totalorder %s176, %s178
    %p182 = scmp.eq.s32.totalorder %s16, 0
    %p183 = por %p181, %p182
    %p184 = scmp.ne.s32.totalorder %s176, %s178
    %p185 = scmp.eq.s32.totalorder %s21, 1
    %p186 = por %p184, %p185
    %p187 = scmp.ne.s32.totalorder %s178, %s179
    %p188 = scmp.eq.s32.totalorder %s21, 0
    %p189 = por %p187, %p188
    %p190 = scmp.ne.s32.totalorder %s178, %s179
    %p191 = scmp.eq.s32.totalorder %s22, 1
    %p192 = por %p190, %p191
    %p194 = scmp.ne.s32.totalorder %s179, %s193
    %p195 = scmp.eq.s32.totalorder %s22, 0
    %p196 = por %p194, %p195
    %s198 = sadd.s32 %s197, 1
    %p201 = scmp.eq.s32.totalorder %s16, 1
    %p202 = scmp.ne.s32.totalorder %s197, %s199
    %p203 = scmp.eq.s32.totalorder %s16, 0
    %p204 = por %p202, %p203
    %p205 = scmp.ne.s32.totalorder %s197, %s199
    %p206 = scmp.eq.s32.totalorder %s21, 1
    %p207 = por %p205, %p206
    %p208 = scmp.ne.s32.totalorder %s199, %s200
    %p209 = scmp.eq.s32.totalorder %s21, 0
    %p210 = por %p208, %p209
    %p211 = scmp.ne.s32.totalorder %s199, %s200
    %p212 = scmp.eq.s32.totalorder %s22, 1
    %p213 = por %p211, %p212
    %p215 = scmp.ne.s32.totalorder %s200, %s214
    %p216 = scmp.eq.s32.totalorder %s22, 0
    %p217 = por %p215, %p216
    %s219 = sadd.s32 %s218, 1
    %p222 = scmp.eq.s32.totalorder %s16, 1
    %p223 = scmp.ne.s32.totalorder %s218, %s220
    %p224 = scmp.eq.s32.totalorder %s16, 0
    %p225 = por %p223, %p224
    %p226 = scmp.ne.s32.totalorder %s218, %s220
    %p227 = scmp.eq.s32.totalorder %s21, 1
    %p228 = por %p226, %p227
    %p229 = scmp.ne.s32.totalorder %s220, %s221
    %p230 = scmp.eq.s32.totalorder %s21, 0
    %p231 = por %p229, %p230
    %p232 = scmp.ne.s32.totalorder %s220, %s221
    %p233 = scmp.eq.s32.totalorder %s22, 1
    %p234 = por %p232, %p233
    %p236 = scmp.ne.s32.totalorder %s221, %s235
    %p237 = scmp.eq.s32.totalorder %s22, 0
    %p238 = por %p236, %p237
    %s239 = ssub.s32 %s16, %s23
    %p240 = scmp.eq.s32.totalorder %s239, 0
    %s242 = sadd.s32 %s241, 1
    %s243 = scalar_select %p240, %s241, %s242
    %p246 = pneg %p240
    %p247 = scmp.eq.s32.totalorder %s16, 1
    %p248 = por %p246, %p247
    %p249 = scmp.ne.s32.totalorder %s241, %s244
    %p250 = scmp.eq.s32.totalorder %s16, 0
    %p251 = por %p249, %p250
    %p252 = scmp.ne.s32.totalorder %s241, %s244
    %p253 = scmp.eq.s32.totalorder %s21, 1
    %p254 = por %p252, %p253
    %p255 = scmp.ne.s32.totalorder %s244, %s245
    %p256 = scmp.eq.s32.totalorder %s21, 0
    %p257 = por %p255, %p256
    %p258 = scmp.ne.s32.totalorder %s244, %s245
    %p259 = scmp.eq.s32.totalorder %s22, 1
    %p260 = por %p258, %p259
    %p262 = scmp.ne.s32.totalorder %s245, %s261
    %p263 = scmp.eq.s32.totalorder %s22, 0
    %p264 = por %p262, %p263
    %p265 = scmp.le.s32.totalorder 1, %s16
    %p266 = scmp.lt.s32.totalorder %s16, 3
    %p267 = pnand %p265, %p266
    %p268 = pneg %p267
    // Predicated region
    $region9: #{nonrigid_motion_mlp.1} parent=5 // pred_check
      _
    $region10: #{nonrigid_motion_mlp.1} parent=5 // pred_check_branch
      %270 = sbr.rel (%p267) target = $region12
    $region11: #{nonrigid_motion_mlp.1} parent=5 // pred_region
      %s271 = ssub.s32 %s16, 1
      // Predicated region
      $region13: #{nonrigid_motion_mlp.1} parent=11 // pred_check
        %p272 = pneg %p63
      $region14: #{nonrigid_motion_mlp.1} parent=11 // pred_check_branch
        %274 = sbr.rel (%p272) target = $region16
      $region15: #{nonrigid_motion_mlp.1} parent=11 // pred_region
        _
      $region16: #{nonrigid_motion_mlp.1} parent=11 // pred_fallthru
        _
      // Predicated region
      $region17: #{nonrigid_motion_mlp.1} parent=11 // pred_check
        %p275 = pneg %p84
      $region18: #{nonrigid_motion_mlp.1} parent=11 // pred_check_branch
        %277 = sbr.rel (%p275) target = $region20
      $region19: #{nonrigid_motion_mlp.1} parent=11 // pred_region
        _
      $region20: #{nonrigid_motion_mlp.1} parent=11 // pred_fallthru
        _
      // Predicated region
      $region21: #{nonrigid_motion_mlp.1} parent=11 // pred_check
        %p278 = pneg %p105
      $region22: #{nonrigid_motion_mlp.1} parent=11 // pred_check_branch
        %280 = sbr.rel (%p278) target = $region24
      $region23: #{nonrigid_motion_mlp.1} parent=11 // pred_region
        _
      $region24: #{nonrigid_motion_mlp.1} parent=11 // pred_fallthru
        _
      // Predicated region
      $region25: #{nonrigid_motion_mlp.1} parent=11 // pred_check
        %p281 = pneg %p126
      $region26: #{nonrigid_motion_mlp.1} parent=11 // pred_check_branch
        %283 = sbr.rel (%p281) target = $region28
      $region27: #{nonrigid_motion_mlp.1} parent=11 // pred_region
        _
      $region28: #{nonrigid_motion_mlp.1} parent=11 // pred_fallthru
        _
      // Predicated region
      $region29: #{nonrigid_motion_mlp.1} parent=11 // pred_check
        %p284 = pneg %p147
      $region30: #{nonrigid_motion_mlp.1} parent=11 // pred_check_branch
        %286 = sbr.rel (%p284) target = $region32
      $region31: #{nonrigid_motion_mlp.1} parent=11 // pred_region
        _
      $region32: #{nonrigid_motion_mlp.1} parent=11 // pred_fallthru
        _
      // Predicated region
      $region33: #{nonrigid_motion_mlp.1} parent=11 // pred_check
        %p287 = pneg %p168
      $region34: #{nonrigid_motion_mlp.1} parent=11 // pred_check_branch
        %289 = sbr.rel (%p287) target = $region36
      $region35: #{nonrigid_motion_mlp.1} parent=11 // pred_region
        _
      $region36: #{nonrigid_motion_mlp.1} parent=11 // pred_fallthru
        _
      // Predicated region
      $region37: #{nonrigid_motion_mlp.1} parent=11 // pred_check
        %p290 = pneg %p189
      $region38: #{nonrigid_motion_mlp.1} parent=11 // pred_check_branch
        %292 = sbr.rel (%p290) target = $region40
      $region39: #{nonrigid_motion_mlp.1} parent=11 // pred_region
        _
      $region40: #{nonrigid_motion_mlp.1} parent=11 // pred_fallthru
        _
      // Predicated region
      $region41: #{nonrigid_motion_mlp.1} parent=11 // pred_check
        %p293 = pneg %p210
      $region42: #{nonrigid_motion_mlp.1} parent=11 // pred_check_branch
        %295 = sbr.rel (%p293) target = $region44
      $region43: #{nonrigid_motion_mlp.1} parent=11 // pred_region
        _
      $region44: #{nonrigid_motion_mlp.1} parent=11 // pred_fallthru
        _
      // Predicated region
      $region45: #{nonrigid_motion_mlp.1} parent=11 // pred_check
        %p296 = pneg %p231
      $region46: #{nonrigid_motion_mlp.1} parent=11 // pred_check_branch
        %298 = sbr.rel (%p296) target = $region48
      $region47: #{nonrigid_motion_mlp.1} parent=11 // pred_region
        _
      $region48: #{nonrigid_motion_mlp.1} parent=11 // pred_fallthru
        _
    $region12: #{nonrigid_motion_mlp.1} parent=5 // pred_fallthru
      _
    %p299 = scmp.lt.s32.totalorder %s16, 2
    // Predicated region
    $region49: #{nonrigid_motion_mlp.1} parent=5 // pred_check
      %p300 = pneg %p299
    $region50: #{nonrigid_motion_mlp.1} parent=5 // pred_check_branch
      %302 = sbr.rel (%p300) target = $region52
    $region51: #{nonrigid_motion_mlp.1} parent=5 // pred_region
      // Predicated region
      $region53: #{nonrigid_motion_mlp.1} parent=51 // pred_check
        %p303 = pneg %p36
      $region54: #{nonrigid_motion_mlp.1} parent=51 // pred_check_branch
        %305 = sbr.rel (%p303) target = $region56
      $region55: #{nonrigid_motion_mlp.1} parent=51 // pred_region
        %s306 = smul.u32 64, %s16
        %p307 = scmp.lt.s32.totalorder %s306, 127
        %s308 = scalar_select %p307, %s306, 127
        %s309 = smul.addr %s308, 2
        %s310 = smul.addr %s309, 4
        %s311 = scalar_lea.vmem %s0, %s310
        %s312 = smul.u32 64, %s16
      $region56: #{nonrigid_motion_mlp.1} parent=51 // pred_fallthru
        _
    $region52: #{nonrigid_motion_mlp.1} parent=5 // pred_fallthru
      _
    %p313 = scmp.le.s32.totalorder 1, %s16
    %p314 = scmp.lt.s32.totalorder %s16, 3
    %p315 = pnand %p313, %p314
    %p316 = pneg %p315
    // Predicated region
    $region57: #{nonrigid_motion_mlp.1} parent=5 // pred_check
      _
    $region58: #{nonrigid_motion_mlp.1} parent=5 // pred_check_branch
      %318 = sbr.rel (%p315) target = $region60
    $region59: #{nonrigid_motion_mlp.1} parent=5 // pred_region
      %s319 = ssub.s32 %s16, 1
      %s320 = smul.u32 64, %s21
      %p321 = scmp.lt.s32.totalorder %s320, 127
      %s322 = scalar_select %p321, %s320, 127
      %s323 = smul.addr %s322, 2
      %s324 = smul.addr %s323, 4
      %s325 = scalar_lea.vmem %s0, %s324
      %p326 = pneg %p42
      %p327 = pneg %p39
      %p328 = pneg %p63
      %p329 = pneg %p60
      %p330 = pneg %p84
      %p331 = pneg %p81
      %p332 = pneg %p105
      %p333 = pneg %p102
      %p334 = pneg %p126
      %p335 = pneg %p123
      %p336 = pneg %p147
      %p337 = pneg %p144
      %p338 = pneg %p168
      %p339 = pneg %p165
      %p340 = pneg %p189
      %p341 = pneg %p186
      %p342 = pneg %p210
      %p343 = pneg %p207
      %p344 = pneg %p231
      %p345 = pneg %p228
      %p346 = pneg %p257
      %p347 = pneg %p254
      %s348 = smul.u32 64, %s21
      %p349 = scmp.lt.s32.totalorder %s348, 127
      %s350 = scalar_select %p349, %s348, 127
      %s351 = smul.addr %s350, 8
      %s352 = scalar_lea.vmem %s10, %s351
      %s353 = smul.u32 64, %s21
      %p354 = scmp.lt.s32.totalorder %s353, 127
      %s355 = scalar_select %p354, %s353, 127
      %s356 = smul.addr %s355, 2
      %s357 = smul.addr %s356, 4
      %s358 = scalar_lea.vmem %s0, %s357
      %s359 = smul.u32 64, %s21
      %s360 = smul.u32 64, %s21
      %p361 = scmp.lt.s32.totalorder %s360, 127
      %s362 = scalar_select %p361, %s360, 127
      %s363 = smul.addr %s362, 8
      %s364 = scalar_lea.vmem %s10, %s363
      %s365 = smul.u32 64, %s21
      %v367 = vld [vmem:[%s358] sm:$0xff]
      %v368 = vld [vmem:[%s358 + $0x8] sm:$0xff]
      %v369 = vld [vmem:[%s358 + $0x10] sm:$0xff]
      %v370 = vld [vmem:[%s358 + $0x18] sm:$0xff]
      %v371 = vld [vmem:[%s358 + $0x20] sm:$0xff]
      %v372 = vld [vmem:[%s358 + $0x28] sm:$0xff]
      %v373 = vld [vmem:[%s358 + $0x30] sm:$0xff]
      %v374 = vld [vmem:[%s358 + $0x38] sm:$0xff]
      %v375 = vld [vmem:[%s358 + $0x40] sm:$0xff]
      %v376 = vld [vmem:[%s358 + $0x48] sm:$0xff]
      %v377 = vld [vmem:[%s358 + $0x50] sm:$0xff]
      %v378 = vld [vmem:[%s358 + $0x58] sm:$0xff]
      %v379 = vld [vmem:[%s358 + $0x60] sm:$0xff]
      %v380 = vld [vmem:[%s358 + $0x68] sm:$0xff]
      %v381 = vld [vmem:[%s358 + $0x70] sm:$0xff]
      %v382 = vld [vmem:[%s358 + $0x78] sm:$0xff]
      %v383 = vld [vmem:[%s358 + $0x80] sm:$0xff]
      %v384 = vld [vmem:[%s358 + $0x88] sm:$0xff]
      %v385 = vld [vmem:[%s358 + $0x90] sm:$0xff]
      %v386 = vld [vmem:[%s358 + $0x98] sm:$0xff]
      %v387 = vld [vmem:[%s358 + $0xa0] sm:$0xff]
      %v388 = vld [vmem:[%s358 + $0xa8] sm:$0xff]
      %v389 = vld [vmem:[%s358 + $0xb0] sm:$0xff]
      %v390 = vld [vmem:[%s358 + $0xb8] sm:$0xff]
      %v391 = vld [vmem:[%s358 + $0xc0] sm:$0xff]
      %v392 = vld [vmem:[%s358 + $0xc8] sm:$0xff]
      %v393 = vld [vmem:[%s358 + $0xd0] sm:$0xff]
      %v394 = vld [vmem:[%s358 + $0xd8] sm:$0xff]
      %v395 = vld [vmem:[%s358 + $0xe0] sm:$0xff]
      %v396 = vld [vmem:[%s358 + $0xe8] sm:$0xff]
      %v397 = vld [vmem:[%s358 + $0xf0] sm:$0xff]
      %v398 = vld [vmem:[%s358 + $0xf8] sm:$0xff]
      %v399 = vld [vmem:[%s358 + $0x100] sm:$0xff]
      %v400 = vld [vmem:[%s358 + $0x108] sm:$0xff]
      %v401 = vld [vmem:[%s358 + $0x110] sm:$0xff]
      %v402 = vld [vmem:[%s358 + $0x118] sm:$0xff]
      %v403 = vld [vmem:[%s358 + $0x120] sm:$0xff]
      %v404 = vld [vmem:[%s358 + $0x128] sm:$0xff]
      %v405 = vld [vmem:[%s358 + $0x130] sm:$0xff]
      %v406 = vld [vmem:[%s358 + $0x138] sm:$0xff]
      %v407 = vld [vmem:[%s358 + $0x140] sm:$0xff]
      %v408 = vld [vmem:[%s358 + $0x148] sm:$0xff]
      %v409 = vld [vmem:[%s358 + $0x150] sm:$0xff]
      %v410 = vld [vmem:[%s358 + $0x158] sm:$0xff]
      %v411 = vld [vmem:[%s358 + $0x160] sm:$0xff]
      %v412 = vld [vmem:[%s358 + $0x168] sm:$0xff]
      %v413 = vld [vmem:[%s358 + $0x170] sm:$0xff]
      %v414 = vld [vmem:[%s358 + $0x178] sm:$0xff]
      %v415 = vld [vmem:[%s358 + $0x180] sm:$0xff]
      %v416 = vld [vmem:[%s358 + $0x188] sm:$0xff]
      %v417 = vld [vmem:[%s358 + $0x190] sm:$0xff]
      %v418 = vld [vmem:[%s358 + $0x198] sm:$0xff]
      %v419 = vld [vmem:[%s358 + $0x1a0] sm:$0xff]
      %v420 = vld [vmem:[%s358 + $0x1a8] sm:$0xff]
      %v421 = vld [vmem:[%s358 + $0x1b0] sm:$0xff]
      %v422 = vld [vmem:[%s358 + $0x1b8] sm:$0xff]
      %v423 = vld [vmem:[%s358 + $0x1c0] sm:$0xff]
      %v424 = vld [vmem:[%s358 + $0x1c8] sm:$0xff]
      %v425 = vld [vmem:[%s358 + $0x1d0] sm:$0xff]
      %v426 = vld [vmem:[%s358 + $0x1d8] sm:$0xff]
      %v427 = vld [vmem:[%s358 + $0x1e0] sm:$0xff]
      %v428 = vld [vmem:[%s358 + $0x1e8] sm:$0xff]
      %v429 = vld [vmem:[%s358 + $0x1f0] sm:$0xff]
      %v430 = vld [vmem:[%s358 + $0x1f8] sm:$0xff]
      %v431 = vld [vmem:[%s9] sm:$0xff]
      %v432 = vld [vmem:[%s1] sm:$0xf]
      %v433 = vld [vmem:[%s1 + $0x4] sm:$0xf]
      %v434 = vld [vmem:[%s1 + $0x8] sm:$0xf]
      %v435 = vld [vmem:[%s1 + $0xc] sm:$0xf]
      %v436 = vld [vmem:[%s1 + $0x10] sm:$0xf]
      %v437 = vld [vmem:[%s1 + $0x14] sm:$0xf]
      %v438 = vld [vmem:[%s1 + $0x18] sm:$0xf]
      %v439 = vld [vmem:[%s1 + $0x1c] sm:$0xf]
      %v440 = vld [vmem:[%s1 + $0x20] sm:$0xf]
      %v441 = vld [vmem:[%s1 + $0x24] sm:$0xf]
      %v442 = vld [vmem:[%s1 + $0x28] sm:$0xf]
      %v443 = vld [vmem:[%s1 + $0x2c] sm:$0xf]
      %v444 = vld [vmem:[%s1 + $0x30] sm:$0xf]
      %v445 = vld [vmem:[%s1 + $0x34] sm:$0xf]
      %v446 = vld [vmem:[%s1 + $0x38] sm:$0xf]
      %v447 = vld [vmem:[%s1 + $0x3c] sm:$0xf]
      %v448 = vld [vmem:[%s1 + $0x40] sm:$0xf]
      %v449 = vld [vmem:[%s1 + $0x44] sm:$0xf]
      %v450 = vld [vmem:[%s1 + $0x48] sm:$0xf]
      %v451 = vld [vmem:[%s1 + $0x4c] sm:$0x3]
      %v452 = vlaneseq
      %v453 = vshrl.u32 %v452, 7
      %v454 = vsub.s32 0, %v453
      %v455 = vrot.slane %v431, %v454
      %v520 = vunpack.c.l.b16 %v367
      %v521 = vunpack.c.h.b16 %v367
      %v522 = vunpack.c.l.b16 %v368
      %v523 = vunpack.c.h.b16 %v368
      %v524 = vunpack.c.l.b16 %v369
      %v525 = vunpack.c.h.b16 %v369
      %v526 = vunpack.c.l.b16 %v370
      %v527 = vunpack.c.h.b16 %v370
      %v528 = vunpack.c.l.b16 %v371
      %v529 = vunpack.c.h.b16 %v371
      %v530 = vunpack.c.l.b16 %v372
      %v531 = vunpack.c.h.b16 %v372
      %v532 = vunpack.c.l.b16 %v373
      %v533 = vunpack.c.h.b16 %v373
      %v534 = vunpack.c.l.b16 %v374
      %v535 = vunpack.c.h.b16 %v374
      %v536 = vunpack.c.l.b16 %v375
      %v537 = vunpack.c.h.b16 %v375
      %v538 = vunpack.c.l.b16 %v376
      %v539 = vunpack.c.h.b16 %v376
      %v540 = vunpack.c.l.b16 %v377
      %v541 = vunpack.c.h.b16 %v377
      %v542 = vunpack.c.l.b16 %v378
      %v543 = vunpack.c.h.b16 %v378
      %v544 = vunpack.c.l.b16 %v379
      %v545 = vunpack.c.h.b16 %v379
      %v546 = vunpack.c.l.b16 %v380
      %v547 = vunpack.c.h.b16 %v380
      %v548 = vunpack.c.l.b16 %v381
      %v549 = vunpack.c.h.b16 %v381
      %v550 = vunpack.c.l.b16 %v382
      %v551 = vunpack.c.h.b16 %v382
      %v552 = vunpack.c.l.b16 %v383
      %v553 = vunpack.c.h.b16 %v383
      %v554 = vunpack.c.l.b16 %v384
      %v555 = vunpack.c.h.b16 %v384
      %v556 = vunpack.c.l.b16 %v385
      %v557 = vunpack.c.h.b16 %v385
      %v558 = vunpack.c.l.b16 %v386
      %v559 = vunpack.c.h.b16 %v386
      %v560 = vunpack.c.l.b16 %v387
      %v561 = vunpack.c.h.b16 %v387
      %v562 = vunpack.c.l.b16 %v388
      %v563 = vunpack.c.h.b16 %v388
      %v564 = vunpack.c.l.b16 %v389
      %v565 = vunpack.c.h.b16 %v389
      %v566 = vunpack.c.l.b16 %v390
      %v567 = vunpack.c.h.b16 %v390
      %v568 = vunpack.c.l.b16 %v391
      %v569 = vunpack.c.h.b16 %v391
      %v570 = vunpack.c.l.b16 %v392
      %v571 = vunpack.c.h.b16 %v392
      %v572 = vunpack.c.l.b16 %v393
      %v573 = vunpack.c.h.b16 %v393
      %v574 = vunpack.c.l.b16 %v394
      %v575 = vunpack.c.h.b16 %v394
      %v576 = vunpack.c.l.b16 %v395
      %v577 = vunpack.c.h.b16 %v395
      %v578 = vunpack.c.l.b16 %v396
      %v579 = vunpack.c.h.b16 %v396
      %v580 = vunpack.c.l.b16 %v397
      %v581 = vunpack.c.h.b16 %v397
      %v582 = vunpack.c.l.b16 %v398
      %v583 = vunpack.c.h.b16 %v398
      %v584 = vunpack.c.l.b16 %v399
      %v585 = vunpack.c.h.b16 %v399
      %v586 = vunpack.c.l.b16 %v400
      %v587 = vunpack.c.h.b16 %v400
      %v588 = vunpack.c.l.b16 %v401
      %v589 = vunpack.c.h.b16 %v401
      %v590 = vunpack.c.l.b16 %v402
      %v591 = vunpack.c.h.b16 %v402
      %v592 = vunpack.c.l.b16 %v403
      %v593 = vunpack.c.h.b16 %v403
      %v594 = vunpack.c.l.b16 %v404
      %v595 = vunpack.c.h.b16 %v404
      %v596 = vunpack.c.l.b16 %v405
      %v597 = vunpack.c.h.b16 %v405
      %v598 = vunpack.c.l.b16 %v406
      %v599 = vunpack.c.h.b16 %v406
      %v600 = vunpack.c.l.b16 %v407
      %v601 = vunpack.c.h.b16 %v407
      %v602 = vunpack.c.l.b16 %v408
      %v603 = vunpack.c.h.b16 %v408
      %v604 = vunpack.c.l.b16 %v409
      %v605 = vunpack.c.h.b16 %v409
      %v606 = vunpack.c.l.b16 %v410
      %v607 = vunpack.c.h.b16 %v410
      %v608 = vunpack.c.l.b16 %v411
      %v609 = vunpack.c.h.b16 %v411
      %v610 = vunpack.c.l.b16 %v412
      %v611 = vunpack.c.h.b16 %v412
      %v612 = vunpack.c.l.b16 %v413
      %v613 = vunpack.c.h.b16 %v413
      %v614 = vunpack.c.l.b16 %v414
      %v615 = vunpack.c.h.b16 %v414
      %v616 = vunpack.c.l.b16 %v415
      %v617 = vunpack.c.h.b16 %v415
      %v618 = vunpack.c.l.b16 %v416
      %v619 = vunpack.c.h.b16 %v416
      %v620 = vunpack.c.l.b16 %v417
      %v621 = vunpack.c.h.b16 %v417
      %v622 = vunpack.c.l.b16 %v418
      %v623 = vunpack.c.h.b16 %v418
      %v624 = vunpack.c.l.b16 %v419
      %v625 = vunpack.c.h.b16 %v419
      %v626 = vunpack.c.l.b16 %v420
      %v627 = vunpack.c.h.b16 %v420
      %v628 = vunpack.c.l.b16 %v421
      %v629 = vunpack.c.h.b16 %v421
      %v630 = vunpack.c.l.b16 %v422
      %v631 = vunpack.c.h.b16 %v422
      %v632 = vunpack.c.l.b16 %v423
      %v633 = vunpack.c.h.b16 %v423
      %v634 = vunpack.c.l.b16 %v424
      %v635 = vunpack.c.h.b16 %v424
      %v636 = vunpack.c.l.b16 %v425
      %v637 = vunpack.c.h.b16 %v425
      %v638 = vunpack.c.l.b16 %v426
      %v639 = vunpack.c.h.b16 %v426
      %v640 = vunpack.c.l.b16 %v427
      %v641 = vunpack.c.h.b16 %v427
      %v642 = vunpack.c.l.b16 %v428
      %v643 = vunpack.c.h.b16 %v428
      %v644 = vunpack.c.l.b16 %v429
      %v645 = vunpack.c.h.b16 %v429
      %v646 = vunpack.c.l.b16 %v430
      %v647 = vunpack.c.h.b16 %v430
      %v648 = vpack.c.b16 %v522, %v520
      %v649 = vpack.c.b16 %v523, %v521
      %v650 = vpack.c.b16 %v526, %v524
      %v651 = vpack.c.b16 %v527, %v525
      %v652 = vpack.c.b16 %v530, %v528
      %v653 = vpack.c.b16 %v531, %v529
      %v654 = vpack.c.b16 %v534, %v532
      %v655 = vpack.c.b16 %v535, %v533
      %v656 = vpack.c.b16 %v538, %v536
      %v657 = vpack.c.b16 %v539, %v537
      %v658 = vpack.c.b16 %v542, %v540
      %v659 = vpack.c.b16 %v543, %v541
      %v660 = vpack.c.b16 %v546, %v544
      %v661 = vpack.c.b16 %v547, %v545
      %v662 = vpack.c.b16 %v550, %v548
      %v663 = vpack.c.b16 %v551, %v549
      %v664 = vpack.c.b16 %v554, %v552
      %v665 = vpack.c.b16 %v555, %v553
      %v666 = vpack.c.b16 %v558, %v556
      %v667 = vpack.c.b16 %v559, %v557
      %v668 = vpack.c.b16 %v562, %v560
      %v669 = vpack.c.b16 %v563, %v561
      %v670 = vpack.c.b16 %v566, %v564
      %v671 = vpack.c.b16 %v567, %v565
      %v672 = vpack.c.b16 %v570, %v568
      %v673 = vpack.c.b16 %v571, %v569
      %v674 = vpack.c.b16 %v574, %v572
      %v675 = vpack.c.b16 %v575, %v573
      %v676 = vpack.c.b16 %v578, %v576
      %v677 = vpack.c.b16 %v579, %v577
      %v678 = vpack.c.b16 %v582, %v580
      %v679 = vpack.c.b16 %v583, %v581
      %v680 = vpack.c.b16 %v586, %v584
      %v681 = vpack.c.b16 %v587, %v585
      %v682 = vpack.c.b16 %v590, %v588
      %v683 = vpack.c.b16 %v591, %v589
      %v684 = vpack.c.b16 %v594, %v592
      %v685 = vpack.c.b16 %v595, %v593
      %v686 = vpack.c.b16 %v598, %v596
      %v687 = vpack.c.b16 %v599, %v597
      %v688 = vpack.c.b16 %v602, %v600
      %v689 = vpack.c.b16 %v603, %v601
      %v690 = vpack.c.b16 %v606, %v604
      %v691 = vpack.c.b16 %v607, %v605
      %v692 = vpack.c.b16 %v610, %v608
      %v693 = vpack.c.b16 %v611, %v609
      %v694 = vpack.c.b16 %v614, %v612
      %v695 = vpack.c.b16 %v615, %v613
      %v696 = vpack.c.b16 %v618, %v616
      %v697 = vpack.c.b16 %v619, %v617
      %v698 = vpack.c.b16 %v622, %v620
      %v699 = vpack.c.b16 %v623, %v621
      %v700 = vpack.c.b16 %v626, %v624
      %v701 = vpack.c.b16 %v627, %v625
      %v702 = vpack.c.b16 %v630, %v628
      %v703 = vpack.c.b16 %v631, %v629
      %v704 = vpack.c.b16 %v634, %v632
      %v705 = vpack.c.b16 %v635, %v633
      %v706 = vpack.c.b16 %v638, %v636
      %v707 = vpack.c.b16 %v639, %v637
      %v708 = vpack.c.b16 %v642, %v640
      %v709 = vpack.c.b16 %v643, %v641
      %v710 = vpack.c.b16 %v646, %v644
      %v711 = vpack.c.b16 %v647, %v645
      %v764 = vunpack.c.l.b16 %v432
      %v765 = vunpack.c.l.b16 %v433
      %v766 = vunpack.c.l.b16 %v434
      %v767 = vunpack.c.l.b16 %v435
      %v768 = vunpack.c.l.b16 %v436
      %v769 = vunpack.c.l.b16 %v437
      %v770 = vunpack.c.l.b16 %v438
      %v771 = vunpack.c.l.b16 %v439
      %v772 = vunpack.c.l.b16 %v440
      %v773 = vunpack.c.l.b16 %v441
      %v774 = vunpack.c.l.b16 %v442
      %v775 = vunpack.c.l.b16 %v443
      %v776 = vunpack.c.l.b16 %v444
      %v777 = vunpack.c.l.b16 %v445
      %v778 = vunpack.c.l.b16 %v446
      %v779 = vunpack.c.l.b16 %v447
      %v780 = vunpack.c.l.b16 %v448
      %v781 = vunpack.c.l.b16 %v449
      %v782 = vunpack.c.l.b16 %v450
      %v783 = vunpack.c.l.b16 %v451
      %v784 = vpack.c.b16 %v765, %v764
      %v785 = vpack.c.b16 %v767, %v766
      %v786 = vpack.c.b16 %v769, %v768
      %v787 = vpack.c.b16 %v771, %v770
      %v788 = vpack.c.b16 %v773, %v772
      %v789 = vpack.c.b16 %v775, %v774
      %v790 = vpack.c.b16 %v777, %v776
      %v791 = vpack.c.b16 %v779, %v778
      %v792 = vpack.c.b16 %v781, %v780
      %v793 = vpack.c.b16 %v783, %v782
      %vm803 = vcmask 228352
      %v805 = vsel %vm803, %v649, 0
      %v808 = vsel %vm803, %v651, 0
      %v811 = vsel %vm803, %v653, 0
      %v814 = vsel %vm803, %v655, 0
      %v817 = vsel %vm803, %v657, 0
      %v820 = vsel %vm803, %v659, 0
      %v823 = vsel %vm803, %v661, 0
      %v826 = vsel %vm803, %v663, 0
      %v829 = vsel %vm803, %v665, 0
      %v832 = vsel %vm803, %v667, 0
      %v835 = vsel %vm803, %v669, 0
      %v838 = vsel %vm803, %v671, 0
      %v841 = vsel %vm803, %v673, 0
      %v844 = vsel %vm803, %v675, 0
      %v847 = vsel %vm803, %v677, 0
      %v850 = vsel %vm803, %v679, 0
      %v853 = vsel %vm803, %v681, 0
      %v856 = vsel %vm803, %v683, 0
      %v859 = vsel %vm803, %v685, 0
      %v862 = vsel %vm803, %v687, 0
      %v865 = vsel %vm803, %v689, 0
      %v868 = vsel %vm803, %v691, 0
      %v871 = vsel %vm803, %v693, 0
      %v874 = vsel %vm803, %v695, 0
      %v877 = vsel %vm803, %v697, 0
      %v880 = vsel %vm803, %v699, 0
      %v883 = vsel %vm803, %v701, 0
      %v886 = vsel %vm803, %v703, 0
      %v889 = vsel %vm803, %v705, 0
      %v892 = vsel %vm803, %v707, 0
      %v895 = vsel %vm803, %v709, 0
      %v898 = vsel %vm803, %v711, 0
      %vm900 = vcmask 1045504
      %v902 = vsel %vm900, %v793, 0
      %904 = vmatprep.subr.bf16.mxu0 0
      %905 = vmatpush1.bf16.msra.mxu0 %v784
      %906 = vmatprep.subr.bf16.mxu0 0
      %907 = vmatpush1.bf16.msra.mxu0 %v785
      %908 = vmatprep.subr.bf16.mxu0 0
      %909 = vmatpush1.bf16.msra.mxu0 %v786
      %910 = vmatprep.subr.bf16.mxu0 0
      %911 = vmatpush1.bf16.msra.mxu0 %v787
      %912 = vmatprep.subr.bf16.mxu0 0
      %913 = vmatpush1.bf16.msra.mxu0 %v788
      %914 = vmatprep.subr.bf16.mxu0 0
      %915 = vmatpush1.bf16.msra.mxu0 %v789
      %916 = vmatprep.subr.bf16.mxu0 0
      %917 = vmatpush1.bf16.msra.mxu0 %v790
      %918 = vmatprep.subr.bf16.mxu0 0
      %919 = vmatpush1.bf16.msra.mxu0 %v791
      %920 = vmatprep.subr.bf16.mxu0 0
      %921 = vmatpush1.bf16.msra.mxu0 %v792
      %922 = vmatprep.subr.bf16.mxu0 0
      %923 = vmatpush1.bf16.msra.mxu0 %v902
      %924 = vmatprep.subr.bf16.mxu0 0
      %925 = vmatpush1.bf16.msra.mxu0 0
      %926 = vmatprep.subr.bf16.mxu0 0
      %927 = vmatpush1.bf16.msra.mxu0 0
      %928 = vmatprep.subr.bf16.mxu0 0
      %929 = vmatpush1.bf16.msra.mxu0 0
      %930 = vmatprep.subr.bf16.mxu0 0
      %931 = vmatpush1.bf16.msra.mxu0 0
      %932 = vmatprep.subr.bf16.mxu0 0
      %933 = vmatpush1.bf16.msra.mxu0 0
      %934 = vmatprep.subr.bf16.mxu0 0
      %935 = vmatpush1.bf16.msra.mxu0 0
      %936 = vmatprep.mubr.bf16.mxu0 %v805
      %937 = vmatmul.mubr.bf16.gmra.mrb[0].mxu0 %v648
      %v938 = vpop.f32.mrb[0].mxu0
      %v939 = vadd.f32 %v455, %v938
      %v940 = vpop.f32.mrb[0].mxu0
      %v941 = vpop.f32.mrb[0].mxu0
      %v942 = vadd.f32 %v455, %v941
      %v943 = vpop.f32.mrb[0].mxu0
      %944 = vmatprep.mubr.bf16.mxu0 %v808
      %945 = vmatmul.mubr.bf16.gmra.mrb[0].mxu0 %v650
      %v946 = vpop.f32.mrb[0].mxu0
      %v947 = vadd.f32 %v455, %v946
      %v948 = vpop.f32.mrb[0].mxu0
      %v949 = vpop.f32.mrb[0].mxu0
      %v950 = vadd.f32 %v455, %v949
      %v951 = vpop.f32.mrb[0].mxu0
      %952 = vmatprep.mubr.bf16.mxu0 %v811
      %953 = vmatmul.mubr.bf16.gmra.mrb[0].mxu0 %v652
      %v954 = vpop.f32.mrb[0].mxu0
      %v955 = vadd.f32 %v455, %v954
      %v956 = vpop.f32.mrb[0].mxu0
      %v957 = vpop.f32.mrb[0].mxu0
      %v958 = vadd.f32 %v455, %v957
      %v959 = vpop.f32.mrb[0].mxu0
      %960 = vmatprep.mubr.bf16.mxu0 %v814
      %961 = vmatmul.mubr.bf16.gmra.mrb[0].mxu0 %v654
      %v962 = vpop.f32.mrb[0].mxu0
      %v963 = vadd.f32 %v455, %v962
      %v964 = vpop.f32.mrb[0].mxu0
      %v965 = vpop.f32.mrb[0].mxu0
      %v966 = vadd.f32 %v455, %v965
      %v967 = vpop.f32.mrb[0].mxu0
      %968 = vmatprep.mubr.bf16.mxu0 %v817
      %969 = vmatmul.mubr.bf16.gmra.mrb[0].mxu0 %v656
      %v970 = vpop.f32.mrb[0].mxu0
      %v971 = vadd.f32 %v455, %v970
      %v972 = vpop.f32.mrb[0].mxu0
      %v973 = vpop.f32.mrb[0].mxu0
      %v974 = vadd.f32 %v455, %v973
      %v975 = vpop.f32.mrb[0].mxu0
      %976 = vmatprep.mubr.bf16.mxu0 %v820
      %977 = vmatmul.mubr.bf16.gmra.mrb[0].mxu0 %v658
      %v978 = vpop.f32.mrb[0].mxu0
      %v979 = vadd.f32 %v455, %v978
      %v980 = vpop.f32.mrb[0].mxu0
      %v981 = vpop.f32.mrb[0].mxu0
      %v982 = vadd.f32 %v455, %v981
      %v983 = vpop.f32.mrb[0].mxu0
      %984 = vmatprep.mubr.bf16.mxu0 %v823
      %985 = vmatmul.mubr.bf16.gmra.mrb[0].mxu0 %v660
      %v986 = vpop.f32.mrb[0].mxu0
      %v987 = vadd.f32 %v455, %v986
      %v988 = vpop.f32.mrb[0].mxu0
      %v989 = vpop.f32.mrb[0].mxu0
      %v990 = vadd.f32 %v455, %v989
      %v991 = vpop.f32.mrb[0].mxu0
      %992 = vmatprep.mubr.bf16.mxu0 %v826
      %993 = vmatmul.mubr.bf16.gmra.mrb[0].mxu0 %v662
      %v994 = vpop.f32.mrb[0].mxu0
      %v995 = vadd.f32 %v455, %v994
      %v996 = vpop.f32.mrb[0].mxu0
      %v997 = vpop.f32.mrb[0].mxu0
      %v998 = vadd.f32 %v455, %v997
      %v999 = vpop.f32.mrb[0].mxu0
      %1000 = vmatprep.mubr.bf16.mxu0 %v829
      %1001 = vmatmul.mubr.bf16.gmra.mrb[0].mxu0 %v664
      %v1002 = vpop.f32.mrb[0].mxu0
      %v1003 = vadd.f32 %v455, %v1002
      %v1004 = vpop.f32.mrb[0].mxu0
      %v1005 = vpop.f32.mrb[0].mxu0
      %v1006 = vadd.f32 %v455, %v1005
      %v1007 = vpop.f32.mrb[0].mxu0
      %1008 = vmatprep.mubr.bf16.mxu0 %v832
      %1009 = vmatmul.mubr.bf16.gmra.mrb[0].mxu0 %v666
      %v1010 = vpop.f32.mrb[0].mxu0
      %v1011 = vadd.f32 %v455, %v1010
      %v1012 = vpop.f32.mrb[0].mxu0
      %v1013 = vpop.f32.mrb[0].mxu0
      %v1014 = vadd.f32 %v455, %v1013
      %v1015 = vpop.f32.mrb[0].mxu0
      %1016 = vmatprep.mubr.bf16.mxu0 %v835
      %1017 = vmatmul.mubr.bf16.gmra.mrb[0].mxu0 %v668
      %v1018 = vpop.f32.mrb[0].mxu0
      %v1019 = vadd.f32 %v455, %v1018
      %v1020 = vpop.f32.mrb[0].mxu0
      %v1021 = vpop.f32.mrb[0].mxu0
      %v1022 = vadd.f32 %v455, %v1021
      %v1023 = vpop.f32.mrb[0].mxu0
      %1024 = vmatprep.mubr.bf16.mxu0 %v838
      %1025 = vmatmul.mubr.bf16.gmra.mrb[0].mxu0 %v670
      %v1026 = vpop.f32.mrb[0].mxu0
      %v1027 = vadd.f32 %v455, %v1026
      %v1028 = vpop.f32.mrb[0].mxu0
      %v1029 = vpop.f32.mrb[0].mxu0
      %v1030 = vadd.f32 %v455, %v1029
      %v1031 = vpop.f32.mrb[0].mxu0
      %1032 = vmatprep.mubr.bf16.mxu0 %v841
      %1033 = vmatmul.mubr.bf16.gmra.mrb[0].mxu0 %v672
      %v1034 = vpop.f32.mrb[0].mxu0
      %v1035 = vadd.f32 %v455, %v1034
      %v1036 = vpop.f32.mrb[0].mxu0
      %v1037 = vpop.f32.mrb[0].mxu0
      %v1038 = vadd.f32 %v455, %v1037
      %v1039 = vpop.f32.mrb[0].mxu0
      %1040 = vmatprep.mubr.bf16.mxu0 %v844
      %1041 = vmatmul.mubr.bf16.gmra.mrb[0].mxu0 %v674
      %v1042 = vpop.f32.mrb[0].mxu0
      %v1043 = vadd.f32 %v455, %v1042
      %v1044 = vpop.f32.mrb[0].mxu0
      %v1045 = vpop.f32.mrb[0].mxu0
      %v1046 = vadd.f32 %v455, %v1045
      %v1047 = vpop.f32.mrb[0].mxu0
      %1048 = vmatprep.mubr.bf16.mxu0 %v847
      %1049 = vmatmul.mubr.bf16.gmra.mrb[0].mxu0 %v676
      %v1050 = vpop.f32.mrb[0].mxu0
      %v1051 = vadd.f32 %v455, %v1050
      %v1052 = vpop.f32.mrb[0].mxu0
      %v1053 = vpop.f32.mrb[0].mxu0
      %v1054 = vadd.f32 %v455, %v1053
      %v1055 = vpop.f32.mrb[0].mxu0
      %1056 = vmatprep.mubr.bf16.mxu0 %v850
      %1057 = vmatmul.mubr.bf16.gmra.mrb[0].mxu0 %v678
      %v1058 = vpop.f32.mrb[0].mxu0
      %v1059 = vadd.f32 %v455, %v1058
      %v1060 = vpop.f32.mrb[0].mxu0
      %v1061 = vpop.f32.mrb[0].mxu0
      %v1062 = vadd.f32 %v455, %v1061
      %v1063 = vpop.f32.mrb[0].mxu0
      %1064 = vmatprep.mubr.bf16.mxu0 %v853
      %1065 = vmatmul.mubr.bf16.gmra.mrb[0].mxu0 %v680
      %v1066 = vpop.f32.mrb[0].mxu0
      %v1067 = vadd.f32 %v455, %v1066
      %v1068 = vpop.f32.mrb[0].mxu0
      %v1069 = vpop.f32.mrb[0].mxu0
      %v1070 = vadd.f32 %v455, %v1069
      %v1071 = vpop.f32.mrb[0].mxu0
      %1072 = vmatprep.mubr.bf16.mxu0 %v856
      %1073 = vmatmul.mubr.bf16.gmra.mrb[0].mxu0 %v682
      %v1074 = vpop.f32.mrb[0].mxu0
      %v1075 = vadd.f32 %v455, %v1074
      %v1076 = vpop.f32.mrb[0].mxu0
      %v1077 = vpop.f32.mrb[0].mxu0
      %v1078 = vadd.f32 %v455, %v1077
      %v1079 = vpop.f32.mrb[0].mxu0
      %1080 = vmatprep.mubr.bf16.mxu0 %v859
      %1081 = vmatmul.mubr.bf16.gmra.mrb[0].mxu0 %v684
      %v1082 = vpop.f32.mrb[0].mxu0
      %v1083 = vadd.f32 %v455, %v1082
      %v1084 = vpop.f32.mrb[0].mxu0
      %v1085 = vpop.f32.mrb[0].mxu0
      %v1086 = vadd.f32 %v455, %v1085
      %v1087 = vpop.f32.mrb[0].mxu0
      %1088 = vmatprep.mubr.bf16.mxu0 %v862
      %1089 = vmatmul.mubr.bf16.gmra.mrb[0].mxu0 %v686
      %v1090 = vpop.f32.mrb[0].mxu0
      %v1091 = vadd.f32 %v455, %v1090
      %v1092 = vpop.f32.mrb[0].mxu0
      %v1093 = vpop.f32.mrb[0].mxu0
      %v1094 = vadd.f32 %v455, %v1093
      %v1095 = vpop.f32.mrb[0].mxu0
      %1096 = vmatprep.mubr.bf16.mxu0 %v865
      %1097 = vmatmul.mubr.bf16.gmra.mrb[0].mxu0 %v688
      %v1098 = vpop.f32.mrb[0].mxu0
      %v1099 = vadd.f32 %v455, %v1098
      %v1100 = vpop.f32.mrb[0].mxu0
      %v1101 = vpop.f32.mrb[0].mxu0
      %v1102 = vadd.f32 %v455, %v1101
      %v1103 = vpop.f32.mrb[0].mxu0
      %1104 = vmatprep.mubr.bf16.mxu0 %v868
      %1105 = vmatmul.mubr.bf16.gmra.mrb[0].mxu0 %v690
      %v1106 = vpop.f32.mrb[0].mxu0
      %v1107 = vadd.f32 %v455, %v1106
      %v1108 = vpop.f32.mrb[0].mxu0
      %v1109 = vpop.f32.mrb[0].mxu0
      %v1110 = vadd.f32 %v455, %v1109
      %v1111 = vpop.f32.mrb[0].mxu0
      %1112 = vmatprep.mubr.bf16.mxu0 %v871
      %1113 = vmatmul.mubr.bf16.gmra.mrb[0].mxu0 %v692
      %v1114 = vpop.f32.mrb[0].mxu0
      %v1115 = vadd.f32 %v455, %v1114
      %v1116 = vpop.f32.mrb[0].mxu0
      %v1117 = vpop.f32.mrb[0].mxu0
      %v1118 = vadd.f32 %v455, %v1117
      %v1119 = vpop.f32.mrb[0].mxu0
      %1120 = vmatprep.mubr.bf16.mxu0 %v874
      %1121 = vmatmul.mubr.bf16.gmra.mrb[0].mxu0 %v694
      %v1122 = vpop.f32.mrb[0].mxu0
      %v1123 = vadd.f32 %v455, %v1122
      %v1124 = vpop.f32.mrb[0].mxu0
      %v1125 = vpop.f32.mrb[0].mxu0
      %v1126 = vadd.f32 %v455, %v1125
      %v1127 = vpop.f32.mrb[0].mxu0
      %1128 = vmatprep.mubr.bf16.mxu0 %v877
      %1129 = vmatmul.mubr.bf16.gmra.mrb[0].mxu0 %v696
      %v1130 = vpop.f32.mrb[0].mxu0
      %v1131 = vadd.f32 %v455, %v1130
      %v1132 = vpop.f32.mrb[0].mxu0
      %v1133 = vpop.f32.mrb[0].mxu0
      %v1134 = vadd.f32 %v455, %v1133
      %v1135 = vpop.f32.mrb[0].mxu0
      %1136 = vmatprep.mubr.bf16.mxu0 %v880
      %1137 = vmatmul.mubr.bf16.gmra.mrb[0].mxu0 %v698
      %v1138 = vpop.f32.mrb[0].mxu0
      %v1139 = vadd.f32 %v455, %v1138
      %v1140 = vpop.f32.mrb[0].mxu0
      %v1141 = vpop.f32.mrb[0].mxu0
      %v1142 = vadd.f32 %v455, %v1141
      %v1143 = vpop.f32.mrb[0].mxu0
      %1144 = vmatprep.mubr.bf16.mxu0 %v883
      %1145 = vmatmul.mubr.bf16.gmra.mrb[0].mxu0 %v700
      %v1146 = vpop.f32.mrb[0].mxu0
      %v1147 = vadd.f32 %v455, %v1146
      %v1148 = vpop.f32.mrb[0].mxu0
      %v1149 = vpop.f32.mrb[0].mxu0
      %v1150 = vadd.f32 %v455, %v1149
      %v1151 = vpop.f32.mrb[0].mxu0
      %1152 = vmatprep.mubr.bf16.mxu0 %v886
      %1153 = vmatmul.mubr.bf16.gmra.mrb[0].mxu0 %v702
      %v1154 = vpop.f32.mrb[0].mxu0
      %v1155 = vadd.f32 %v455, %v1154
      %v1156 = vpop.f32.mrb[0].mxu0
      %v1157 = vpop.f32.mrb[0].mxu0
      %v1158 = vadd.f32 %v455, %v1157
      %v1159 = vpop.f32.mrb[0].mxu0
      %1160 = vmatprep.mubr.bf16.mxu0 %v889
      %1161 = vmatmul.mubr.bf16.gmra.mrb[0].mxu0 %v704
      %v1162 = vpop.f32.mrb[0].mxu0
      %v1163 = vadd.f32 %v455, %v1162
      %v1164 = vpop.f32.mrb[0].mxu0
      %v1165 = vpop.f32.mrb[0].mxu0
      %v1166 = vadd.f32 %v455, %v1165
      %v1167 = vpop.f32.mrb[0].mxu0
      %1168 = vmatprep.mubr.bf16.mxu0 %v892
      %1169 = vmatmul.mubr.bf16.gmra.mrb[0].mxu0 %v706
      %v1170 = vpop.f32.mrb[0].mxu0
      %v1171 = vadd.f32 %v455, %v1170
      %v1172 = vpop.f32.mrb[0].mxu0
      %v1173 = vpop.f32.mrb[0].mxu0
      %v1174 = vadd.f32 %v455, %v1173
      %v1175 = vpop.f32.mrb[0].mxu0
      %1176 = vmatprep.mubr.bf16.mxu0 %v895
      %1177 = vmatmul.mubr.bf16.gmra.mrb[0].mxu0 %v708
      %v1178 = vpop.f32.mrb[0].mxu0
      %v1179 = vadd.f32 %v455, %v1178
      %v1180 = vpop.f32.mrb[0].mxu0
      %v1181 = vpop.f32.mrb[0].mxu0
      %v1182 = vadd.f32 %v455, %v1181
      %v1183 = vpop.f32.mrb[0].mxu0
      %1184 = vmatprep.mubr.bf16.mxu0 %v898
      %1185 = vmatmul.mubr.bf16.gmra.mrb[0].mxu0 %v710
      %v1186 = vpop.f32.mrb[0].mxu0
      %v1187 = vadd.f32 %v455, %v1186
      %v1188 = vpop.f32.mrb[0].mxu0
      %v1189 = vpop.f32.mrb[0].mxu0
      %v1190 = vadd.f32 %v455, %v1189
      %v1191 = vpop.f32.mrb[0].mxu0
      %1192 = vdwg.mxu0
      %v1193 = vmax.f32 %v939, 0.0
      %v1194 = vmax.f32 %v942, 0.0
      %v1195 = vmax.f32 %v947, 0.0
      %v1196 = vmax.f32 %v950, 0.0
      %v1197 = vmax.f32 %v955, 0.0
      %v1198 = vmax.f32 %v958, 0.0
      %v1199 = vmax.f32 %v963, 0.0
      %v1200 = vmax.f32 %v966, 0.0
      %v1201 = vmax.f32 %v971, 0.0
      %v1202 = vmax.f32 %v974, 0.0
      %v1203 = vmax.f32 %v979, 0.0
      %v1204 = vmax.f32 %v982, 0.0
      %v1205 = vmax.f32 %v987, 0.0
      %v1206 = vmax.f32 %v990, 0.0
      %v1207 = vmax.f32 %v995, 0.0
      %v1208 = vmax.f32 %v998, 0.0
      %v1209 = vmax.f32 %v1003, 0.0
      %v1210 = vmax.f32 %v1006, 0.0
      %v1211 = vmax.f32 %v1011, 0.0
      %v1212 = vmax.f32 %v1014, 0.0
      %v1213 = vmax.f32 %v1019, 0.0
      %v1214 = vmax.f32 %v1022, 0.0
      %v1215 = vmax.f32 %v1027, 0.0
      %v1216 = vmax.f32 %v1030, 0.0
      %v1217 = vmax.f32 %v1035, 0.0
      %v1218 = vmax.f32 %v1038, 0.0
      %v1219 = vmax.f32 %v1043, 0.0
      %v1220 = vmax.f32 %v1046, 0.0
      %v1221 = vmax.f32 %v1051, 0.0
      %v1222 = vmax.f32 %v1054, 0.0
      %v1223 = vmax.f32 %v1059, 0.0
      %v1224 = vmax.f32 %v1062, 0.0
      %v1225 = vmax.f32 %v1067, 0.0
      %v1226 = vmax.f32 %v1070, 0.0
      %v1227 = vmax.f32 %v1075, 0.0
      %v1228 = vmax.f32 %v1078, 0.0
      %v1229 = vmax.f32 %v1083, 0.0
      %v1230 = vmax.f32 %v1086, 0.0
      %v1231 = vmax.f32 %v1091, 0.0
      %v1232 = vmax.f32 %v1094, 0.0
      %v1233 = vmax.f32 %v1099, 0.0
      %v1234 = vmax.f32 %v1102, 0.0
      %v1235 = vmax.f32 %v1107, 0.0
      %v1236 = vmax.f32 %v1110, 0.0
      %v1237 = vmax.f32 %v1115, 0.0
      %v1238 = vmax.f32 %v1118, 0.0
      %v1239 = vmax.f32 %v1123, 0.0
      %v1240 = vmax.f32 %v1126, 0.0
      %v1241 = vmax.f32 %v1131, 0.0
      %v1242 = vmax.f32 %v1134, 0.0
      %v1243 = vmax.f32 %v1139, 0.0
      %v1244 = vmax.f32 %v1142, 0.0
      %v1245 = vmax.f32 %v1147, 0.0
      %v1246 = vmax.f32 %v1150, 0.0
      %v1247 = vmax.f32 %v1155, 0.0
      %v1248 = vmax.f32 %v1158, 0.0
      %v1249 = vmax.f32 %v1163, 0.0
      %v1250 = vmax.f32 %v1166, 0.0
      %v1251 = vmax.f32 %v1171, 0.0
      %v1252 = vmax.f32 %v1174, 0.0
      %v1253 = vmax.f32 %v1179, 0.0
      %v1254 = vmax.f32 %v1182, 0.0
      %v1255 = vmax.f32 %v1187, 0.0
      %v1256 = vmax.f32 %v1190, 0.0
      %v1257 = vpack.c.bf16 %v1194, %v1193
      %v1258 = vpack.c.bf16 %v1196, %v1195
      %v1259 = vpack.c.bf16 %v1198, %v1197
      %v1260 = vpack.c.bf16 %v1200, %v1199
      %v1261 = vpack.c.bf16 %v1202, %v1201
      %v1262 = vpack.c.bf16 %v1204, %v1203
      %v1263 = vpack.c.bf16 %v1206, %v1205
      %v1264 = vpack.c.bf16 %v1208, %v1207
      %v1265 = vpack.c.bf16 %v1210, %v1209
      %v1266 = vpack.c.bf16 %v1212, %v1211
      %v1267 = vpack.c.bf16 %v1214, %v1213
      %v1268 = vpack.c.bf16 %v1216, %v1215
      %v1269 = vpack.c.bf16 %v1218, %v1217
      %v1270 = vpack.c.bf16 %v1220, %v1219
      %v1271 = vpack.c.bf16 %v1222, %v1221
      %v1272 = vpack.c.bf16 %v1224, %v1223
      %v1273 = vpack.c.bf16 %v1226, %v1225
      %v1274 = vpack.c.bf16 %v1228, %v1227
      %v1275 = vpack.c.bf16 %v1230, %v1229
      %v1276 = vpack.c.bf16 %v1232, %v1231
      %v1277 = vpack.c.bf16 %v1234, %v1233
      %v1278 = vpack.c.bf16 %v1236, %v1235
      %v1279 = vpack.c.bf16 %v1238, %v1237
      %v1280 = vpack.c.bf16 %v1240, %v1239
      %v1281 = vpack.c.bf16 %v1242, %v1241
      %v1282 = vpack.c.bf16 %v1244, %v1243
      %v1283 = vpack.c.bf16 %v1246, %v1245
      %v1284 = vpack.c.bf16 %v1248, %v1247
      %v1285 = vpack.c.bf16 %v1250, %v1249
      %v1286 = vpack.c.bf16 %v1252, %v1251
      %v1287 = vpack.c.bf16 %v1254, %v1253
      %v1288 = vpack.c.bf16 %v1256, %v1255
      %v1289 = vld [vmem:[%s2] sm:$0xf]
      %v1290 = vld [vmem:[%s2 + $0x4] sm:$0xf]
      %v1291 = vld [vmem:[%s2 + $0x8] sm:$0xf]
      %v1292 = vld [vmem:[%s2 + $0xc] sm:$0xf]
      %v1293 = vld [vmem:[%s2 + $0x10] sm:$0xf]
      %v1294 = vld [vmem:[%s2 + $0x14] sm:$0xf]
      %v1295 = vld [vmem:[%s2 + $0x18] sm:$0xf]
      %v1296 = vld [vmem:[%s2 + $0x1c] sm:$0xf]
      %v1297 = vld [vmem:[%s2 + $0x20] sm:$0xf]
      %v1298 = vld [vmem:[%s2 + $0x24] sm:$0xf]
      %v1299 = vld [vmem:[%s2 + $0x28] sm:$0xf]
      %v1300 = vld [vmem:[%s2 + $0x2c] sm:$0xf]
      %v1301 = vld [vmem:[%s2 + $0x30] sm:$0xf]
      %v1302 = vld [vmem:[%s2 + $0x34] sm:$0xf]
      %v1303 = vld [vmem:[%s2 + $0x38] sm:$0xf]
      %v1304 = vld [vmem:[%s2 + $0x3c] sm:$0xf]
      %v1305 = vlaneseq
      %v1306 = vshrl.u32 %v1305, 7
      %v1307 = vsub.s32 1, %v1306
      %v1308 = vrot.slane %v431, %v1307
      %v1325 = vunpack.c.l.b16 %v1289
      %v1326 = vunpack.c.l.b16 %v1290
      %v1327 = vunpack.c.l.b16 %v1291
      %v1328 = vunpack.c.l.b16 %v1292
      %v1329 = vunpack.c.l.b16 %v1293
      %v1330 = vunpack.c.l.b16 %v1294
      %v1331 = vunpack.c.l.b16 %v1295
      %v1332 = vunpack.c.l.b16 %v1296
      %v1333 = vunpack.c.l.b16 %v1297
      %v1334 = vunpack.c.l.b16 %v1298
      %v1335 = vunpack.c.l.b16 %v1299
      %v1336 = vunpack.c.l.b16 %v1300
      %v1337 = vunpack.c.l.b16 %v1301
      %v1338 = vunpack.c.l.b16 %v1302
      %v1339 = vunpack.c.l.b16 %v1303
      %v1340 = vunpack.c.l.b16 %v1304
      %v1341 = vpack.c.b16 %v1326, %v1325
      %v1342 = vpack.c.b16 %v1328, %v1327
      %v1343 = vpack.c.b16 %v1330, %v1329
      %v1344 = vpack.c.b16 %v1332, %v1331
      %v1345 = vpack.c.b16 %v1334, %v1333
      %v1346 = vpack.c.b16 %v1336, %v1335
      %v1347 = vpack.c.b16 %v1338, %v1337
      %v1348 = vpack.c.b16 %v1340, %v1339
      %1357 = vmatprep.subr.bf16.mxu0 0
      %1358 = vmatpush1.bf16.msra.mxu0 %v1341
      %1359 = vmatprep.subr.bf16.mxu0 0
      %1360 = vmatpush1.bf16.msra.mxu0 %v1342
      %1361 = vmatprep.subr.bf16.mxu0 0
      %1362 = vmatpush1.bf16.msra.mxu0 %v1343
      %1363 = vmatprep.subr.bf16.mxu0 0
      %1364 = vmatpush1.bf16.msra.mxu0 %v1344
      %1365 = vmatprep.subr.bf16.mxu0 0
      %1366 = vmatpush1.bf16.msra.mxu0 %v1345
      %1367 = vmatprep.subr.bf16.mxu0 0
      %1368 = vmatpush1.bf16.msra.mxu0 %v1346
      %1369 = vmatprep.subr.bf16.mxu0 0
      %1370 = vmatpush1.bf16.msra.mxu0 %v1347
      %1371 = vmatprep.subr.bf16.mxu0 0
      %1372 = vmatpush1.bf16.msra.mxu0 %v1348
      %1373 = vmatprep.subr.bf16.mxu0 0
      %1374 = vmatpush1.bf16.msra.mxu0 0
      %1375 = vmatprep.subr.bf16.mxu0 0
      %1376 = vmatpush1.bf16.msra.mxu0 0
      %1377 = vmatprep.subr.bf16.mxu0 0
      %1378 = vmatpush1.bf16.msra.mxu0 0
      %1379 = vmatprep.subr.bf16.mxu0 0
      %1380 = vmatpush1.bf16.msra.mxu0 0
      %1381 = vmatprep.subr.bf16.mxu0 0
      %1382 = vmatpush1.bf16.msra.mxu0 0
      %1383 = vmatprep.subr.bf16.mxu0 0
      %1384 = vmatpush1.bf16.msra.mxu0 0
      %1385 = vmatprep.subr.bf16.mxu0 0
      %1386 = vmatpush1.bf16.msra.mxu0 0
      %1387 = vmatprep.subr.bf16.mxu0 0
      %1388 = vmatpush1.bf16.msra.mxu0 0
      %1389 = vmatprep.mubr.bf16.mxu0 0
      %1390 = vmatmul.mubr.bf16.gmra.mrb[0].mxu0 %v1257
      %v1391 = vpop.f32.mrb[0].mxu0
      %v1392 = vadd.f32 %v1308, %v1391
      %v1393 = vpop.f32.mrb[0].mxu0
      %v1394 = vpop.f32.mrb[0].mxu0
      %v1395 = vadd.f32 %v1308, %v1394
      %v1396 = vpop.f32.mrb[0].mxu0
      %1397 = vmatprep.mubr.bf16.mxu0 0
      %1398 = vmatmul.mubr.bf16.gmra.mrb[0].mxu0 %v1258
      %v1399 = vpop.f32.mrb[0].mxu0
      %v1400 = vadd.f32 %v1308, %v1399
      %v1401 = vpop.f32.mrb[0].mxu0
      %v1402 = vpop.f32.mrb[0].mxu0
      %v1403 = vadd.f32 %v1308, %v1402
      %v1404 = vpop.f32.mrb[0].mxu0
      %1405 = vmatprep.mubr.bf16.mxu0 0
      %1406 = vmatmul.mubr.bf16.gmra.mrb[0].mxu0 %v1259
      %v1407 = vpop.f32.mrb[0].mxu0
      %v1408 = vadd.f32 %v1308, %v1407
      %v1409 = vpop.f32.mrb[0].mxu0
      %v1410 = vpop.f32.mrb[0].mxu0
      %v1411 = vadd.f32 %v1308, %v1410
      %v1412 = vpop.f32.mrb[0].mxu0
      %1413 = vmatprep.mubr.bf16.mxu0 0
      %1414 = vmatmul.mubr.bf16.gmra.mrb[0].mxu0 %v1260
      %v1415 = vpop.f32.mrb[0].mxu0
      %v1416 = vadd.f32 %v1308, %v1415
      %v1417 = vpop.f32.mrb[0].mxu0
      %v1418 = vpop.f32.mrb[0].mxu0
      %v1419 = vadd.f32 %v1308, %v1418
      %v1420 = vpop.f32.mrb[0].mxu0
      %1421 = vmatprep.mubr.bf16.mxu0 0
      %1422 = vmatmul.mubr.bf16.gmra.mrb[0].mxu0 %v1261
      %v1423 = vpop.f32.mrb[0].mxu0
      %v1424 = vadd.f32 %v1308, %v1423
      %v1425 = vpop.f32.mrb[0].mxu0
      %v1426 = vpop.f32.mrb[0].mxu0
      %v1427 = vadd.f32 %v1308, %v1426
      %v1428 = vpop.f32.mrb[0].mxu0
      %1429 = vmatprep.mubr.bf16.mxu0 0
      %1430 = vmatmul.mubr.bf16.gmra.mrb[0].mxu0 %v1262
      %v1431 = vpop.f32.mrb[0].mxu0
      %v1432 = vadd.f32 %v1308, %v1431
      %v1433 = vpop.f32.mrb[0].mxu0
      %v1434 = vpop.f32.mrb[0].mxu0
      %v1435 = vadd.f32 %v1308, %v1434
      %v1436 = vpop.f32.mrb[0].mxu0
      %1437 = vmatprep.mubr.bf16.mxu0 0
      %1438 = vmatmul.mubr.bf16.gmra.mrb[0].mxu0 %v1263
      %v1439 = vpop.f32.mrb[0].mxu0
      %v1440 = vadd.f32 %v1308, %v1439
      %v1441 = vpop.f32.mrb[0].mxu0
      %v1442 = vpop.f32.mrb[0].mxu0
      %v1443 = vadd.f32 %v1308, %v1442
      %v1444 = vpop.f32.mrb[0].mxu0
      %1445 = vmatprep.mubr.bf16.mxu0 0
      %1446 = vmatmul.mubr.bf16.gmra.mrb[0].mxu0 %v1264
      %v1447 = vpop.f32.mrb[0].mxu0
      %v1448 = vadd.f32 %v1308, %v1447
      %v1449 = vpop.f32.mrb[0].mxu0
      %v1450 = vpop.f32.mrb[0].mxu0
      %v1451 = vadd.f32 %v1308, %v1450
      %v1452 = vpop.f32.mrb[0].mxu0
      %1453 = vmatprep.mubr.bf16.mxu0 0
      %1454 = vmatmul.mubr.bf16.gmra.mrb[0].mxu0 %v1265
      %v1455 = vpop.f32.mrb[0].mxu0
      %v1456 = vadd.f32 %v1308, %v1455
      %v1457 = vpop.f32.mrb[0].mxu0
      %v1458 = vpop.f32.mrb[0].mxu0
      %v1459 = vadd.f32 %v1308, %v1458
      %v1460 = vpop.f32.mrb[0].mxu0
      %1461 = vmatprep.mubr.bf16.mxu0 0
      %1462 = vmatmul.mubr.bf16.gmra.mrb[0].mxu0 %v1266
      %v1463 = vpop.f32.mrb[0].mxu0
      %v1464 = vadd.f32 %v1308, %v1463
      %v1465 = vpop.f32.mrb[0].mxu0
      %v1466 = vpop.f32.mrb[0].mxu0
      %v1467 = vadd.f32 %v1308, %v1466
      %v1468 = vpop.f32.mrb[0].mxu0
      %1469 = vmatprep.mubr.bf16.mxu0 0
      %1470 = vmatmul.mubr.bf16.gmra.mrb[0].mxu0 %v1267
      %v1471 = vpop.f32.mrb[0].mxu0
      %v1472 = vadd.f32 %v1308, %v1471
      %v1473 = vpop.f32.mrb[0].mxu0
      %v1474 = vpop.f32.mrb[0].mxu0
      %v1475 = vadd.f32 %v1308, %v1474
      %v1476 = vpop.f32.mrb[0].mxu0
      %1477 = vmatprep.mubr.bf16.mxu0 0
      %1478 = vmatmul.mubr.bf16.gmra.mrb[0].mxu0 %v1268
      %v1479 = vpop.f32.mrb[0].mxu0
      %v1480 = vadd.f32 %v1308, %v1479
      %v1481 = vpop.f32.mrb[0].mxu0
      %v1482 = vpop.f32.mrb[0].mxu0
      %v1483 = vadd.f32 %v1308, %v1482
      %v1484 = vpop.f32.mrb[0].mxu0
      %1485 = vmatprep.mubr.bf16.mxu0 0
      %1486 = vmatmul.mubr.bf16.gmra.mrb[0].mxu0 %v1269
      %v1487 = vpop.f32.mrb[0].mxu0
      %v1488 = vadd.f32 %v1308, %v1487
      %v1489 = vpop.f32.mrb[0].mxu0
      %v1490 = vpop.f32.mrb[0].mxu0
      %v1491 = vadd.f32 %v1308, %v1490
      %v1492 = vpop.f32.mrb[0].mxu0
      %1493 = vmatprep.mubr.bf16.mxu0 0
      %1494 = vmatmul.mubr.bf16.gmra.mrb[0].mxu0 %v1270
      %v1495 = vpop.f32.mrb[0].mxu0
      %v1496 = vadd.f32 %v1308, %v1495
      %v1497 = vpop.f32.mrb[0].mxu0
      %v1498 = vpop.f32.mrb[0].mxu0
      %v1499 = vadd.f32 %v1308, %v1498
      %v1500 = vpop.f32.mrb[0].mxu0
      %1501 = vmatprep.mubr.bf16.mxu0 0
      %1502 = vmatmul.mubr.bf16.gmra.mrb[0].mxu0 %v1271
      %v1503 = vpop.f32.mrb[0].mxu0
      %v1504 = vadd.f32 %v1308, %v1503
      %v1505 = vpop.f32.mrb[0].mxu0
      %v1506 = vpop.f32.mrb[0].mxu0
      %v1507 = vadd.f32 %v1308, %v1506
      %v1508 = vpop.f32.mrb[0].mxu0
      %1509 = vmatprep.mubr.bf16.mxu0 0
      %1510 = vmatmul.mubr.bf16.gmra.mrb[0].mxu0 %v1272
      %v1511 = vpop.f32.mrb[0].mxu0
      %v1512 = vadd.f32 %v1308, %v1511
      %v1513 = vpop.f32.mrb[0].mxu0
      %v1514 = vpop.f32.mrb[0].mxu0
      %v1515 = vadd.f32 %v1308, %v1514
      %v1516 = vpop.f32.mrb[0].mxu0
      %1517 = vmatprep.mubr.bf16.mxu0 0
      %1518 = vmatmul.mubr.bf16.gmra.mrb[0].mxu0 %v1273
      %v1519 = vpop.f32.mrb[0].mxu0
      %v1520 = vadd.f32 %v1308, %v1519
      %v1521 = vpop.f32.mrb[0].mxu0
      %v1522 = vpop.f32.mrb[0].mxu0
      %v1523 = vadd.f32 %v1308, %v1522
      %v1524 = vpop.f32.mrb[0].mxu0
      %1525 = vmatprep.mubr.bf16.mxu0 0
      %1526 = vmatmul.mubr.bf16.gmra.mrb[0].mxu0 %v1274
      %v1527 = vpop.f32.mrb[0].mxu0
      %v1528 = vadd.f32 %v1308, %v1527
      %v1529 = vpop.f32.mrb[0].mxu0
      %v1530 = vpop.f32.mrb[0].mxu0
      %v1531 = vadd.f32 %v1308, %v1530
      %v1532 = vpop.f32.mrb[0].mxu0
      %1533 = vmatprep.mubr.bf16.mxu0 0
      %1534 = vmatmul.mubr.bf16.gmra.mrb[0].mxu0 %v1275
      %v1535 = vpop.f32.mrb[0].mxu0
      %v1536 = vadd.f32 %v1308, %v1535
      %v1537 = vpop.f32.mrb[0].mxu0
      %v1538 = vpop.f32.mrb[0].mxu0
      %v1539 = vadd.f32 %v1308, %v1538
      %v1540 = vpop.f32.mrb[0].mxu0
      %1541 = vmatprep.mubr.bf16.mxu0 0
      %1542 = vmatmul.mubr.bf16.gmra.mrb[0].mxu0 %v1276
      %v1543 = vpop.f32.mrb[0].mxu0
      %v1544 = vadd.f32 %v1308, %v1543
      %v1545 = vpop.f32.mrb[0].mxu0
      %v1546 = vpop.f32.mrb[0].mxu0
      %v1547 = vadd.f32 %v1308, %v1546
      %v1548 = vpop.f32.mrb[0].mxu0
      %1549 = vmatprep.mubr.bf16.mxu0 0
      %1550 = vmatmul.mubr.bf16.gmra.mrb[0].mxu0 %v1277
      %v1551 = vpop.f32.mrb[0].mxu0
      %v1552 = vadd.f32 %v1308, %v1551
      %v1553 = vpop.f32.mrb[0].mxu0
      %v1554 = vpop.f32.mrb[0].mxu0
      %v1555 = vadd.f32 %v1308, %v1554
      %v1556 = vpop.f32.mrb[0].mxu0
      %1557 = vmatprep.mubr.bf16.mxu0 0
      %1558 = vmatmul.mubr.bf16.gmra.mrb[0].mxu0 %v1278
      %v1559 = vpop.f32.mrb[0].mxu0
      %v1560 = vadd.f32 %v1308, %v1559
      %v1561 = vpop.f32.mrb[0].mxu0
      %v1562 = vpop.f32.mrb[0].mxu0
      %v1563 = vadd.f32 %v1308, %v1562
      %v1564 = vpop.f32.mrb[0].mxu0
      %1565 = vmatprep.mubr.bf16.mxu0 0
      %1566 = vmatmul.mubr.bf16.gmra.mrb[0].mxu0 %v1279
      %v1567 = vpop.f32.mrb[0].mxu0
      %v1568 = vadd.f32 %v1308, %v1567
      %v1569 = vpop.f32.mrb[0].mxu0
      %v1570 = vpop.f32.mrb[0].mxu0
      %v1571 = vadd.f32 %v1308, %v1570
      %v1572 = vpop.f32.mrb[0].mxu0
      %1573 = vmatprep.mubr.bf16.mxu0 0
      %1574 = vmatmul.mubr.bf16.gmra.mrb[0].mxu0 %v1280
      %v1575 = vpop.f32.mrb[0].mxu0
      %v1576 = vadd.f32 %v1308, %v1575
      %v1577 = vpop.f32.mrb[0].mxu0
      %v1578 = vpop.f32.mrb[0].mxu0
      %v1579 = vadd.f32 %v1308, %v1578
      %v1580 = vpop.f32.mrb[0].mxu0
      %1581 = vmatprep.mubr.bf16.mxu0 0
      %1582 = vmatmul.mubr.bf16.gmra.mrb[0].mxu0 %v1281
      %v1583 = vpop.f32.mrb[0].mxu0
      %v1584 = vadd.f32 %v1308, %v1583
      %v1585 = vpop.f32.mrb[0].mxu0
      %v1586 = vpop.f32.mrb[0].mxu0
      %v1587 = vadd.f32 %v1308, %v1586
      %v1588 = vpop.f32.mrb[0].mxu0
      %1589 = vmatprep.mubr.bf16.mxu0 0
      %1590 = vmatmul.mubr.bf16.gmra.mrb[0].mxu0 %v1282
      %v1591 = vpop.f32.mrb[0].mxu0
      %v1592 = vadd.f32 %v1308, %v1591
      %v1593 = vpop.f32.mrb[0].mxu0
      %v1594 = vpop.f32.mrb[0].mxu0
      %v1595 = vadd.f32 %v1308, %v1594
      %v1596 = vpop.f32.mrb[0].mxu0
      %1597 = vmatprep.mubr.bf16.mxu0 0
      %1598 = vmatmul.mubr.bf16.gmra.mrb[0].mxu0 %v1283
      %v1599 = vpop.f32.mrb[0].mxu0
      %v1600 = vadd.f32 %v1308, %v1599
      %v1601 = vpop.f32.mrb[0].mxu0
      %v1602 = vpop.f32.mrb[0].mxu0
      %v1603 = vadd.f32 %v1308, %v1602
      %v1604 = vpop.f32.mrb[0].mxu0
      %1605 = vmatprep.mubr.bf16.mxu0 0
      %1606 = vmatmul.mubr.bf16.gmra.mrb[0].mxu0 %v1284
      %v1607 = vpop.f32.mrb[0].mxu0
      %v1608 = vadd.f32 %v1308, %v1607
      %v1609 = vpop.f32.mrb[0].mxu0
      %v1610 = vpop.f32.mrb[0].mxu0
      %v1611 = vadd.f32 %v1308, %v1610
      %v1612 = vpop.f32.mrb[0].mxu0
      %1613 = vmatprep.mubr.bf16.mxu0 0
      %1614 = vmatmul.mubr.bf16.gmra.mrb[0].mxu0 %v1285
      %v1615 = vpop.f32.mrb[0].mxu0
      %v1616 = vadd.f32 %v1308, %v1615
      %v1617 = vpop.f32.mrb[0].mxu0
      %v1618 = vpop.f32.mrb[0].mxu0
      %v1619 = vadd.f32 %v1308, %v1618
      %v1620 = vpop.f32.mrb[0].mxu0
      %1621 = vmatprep.mubr.bf16.mxu0 0
      %1622 = vmatmul.mubr.bf16.gmra.mrb[0].mxu0 %v1286
      %v1623 = vpop.f32.mrb[0].mxu0
      %v1624 = vadd.f32 %v1308, %v1623
      %v1625 = vpop.f32.mrb[0].mxu0
      %v1626 = vpop.f32.mrb[0].mxu0
      %v1627 = vadd.f32 %v1308, %v1626
      %v1628 = vpop.f32.mrb[0].mxu0
      %1629 = vmatprep.mubr.bf16.mxu0 0
      %1630 = vmatmul.mubr.bf16.gmra.mrb[0].mxu0 %v1287
      %v1631 = vpop.f32.mrb[0].mxu0
      %v1632 = vadd.f32 %v1308, %v1631
      %v1633 = vpop.f32.mrb[0].mxu0
      %v1634 = vpop.f32.mrb[0].mxu0
      %v1635 = vadd.f32 %v1308, %v1634
      %v1636 = vpop.f32.mrb[0].mxu0
      %1637 = vmatprep.mubr.bf16.mxu0 0
      %1638 = vmatmul.mubr.bf16.gmra.mrb[0].mxu0 %v1288
      %v1639 = vpop.f32.mrb[0].mxu0
      %v1640 = vadd.f32 %v1308, %v1639
      %v1641 = vpop.f32.mrb[0].mxu0
      %v1642 = vpop.f32.mrb[0].mxu0
      %v1643 = vadd.f32 %v1308, %v1642
      %v1644 = vpop.f32.mrb[0].mxu0
      %1645 = vdwg.mxu0
      %v1646 = vmax.f32 %v1392, 0.0
      %v1647 = vmax.f32 %v1395, 0.0
      %v1648 = vmax.f32 %v1400, 0.0
      %v1649 = vmax.f32 %v1403, 0.0
      %v1650 = vmax.f32 %v1408, 0.0
      %v1651 = vmax.f32 %v1411, 0.0
      %v1652 = vmax.f32 %v1416, 0.0
      %v1653 = vmax.f32 %v1419, 0.0
      %v1654 = vmax.f32 %v1424, 0.0
      %v1655 = vmax.f32 %v1427, 0.0
      %v1656 = vmax.f32 %v1432, 0.0
      %v1657 = vmax.f32 %v1435, 0.0
      %v1658 = vmax.f32 %v1440, 0.0
      %v1659 = vmax.f32 %v1443, 0.0
      %v1660 = vmax.f32 %v1448, 0.0
      %v1661 = vmax.f32 %v1451, 0.0
      %v1662 = vmax.f32 %v1456, 0.0
      %v1663 = vmax.f32 %v1459, 0.0
      %v1664 = vmax.f32 %v1464, 0.0
      %v1665 = vmax.f32 %v1467, 0.0
      %v1666 = vmax.f32 %v1472, 0.0
      %v1667 = vmax.f32 %v1475, 0.0
      %v1668 = vmax.f32 %v1480, 0.0
      %v1669 = vmax.f32 %v1483, 0.0
      %v1670 = vmax.f32 %v1488, 0.0
      %v1671 = vmax.f32 %v1491, 0.0
      %v1672 = vmax.f32 %v1496, 0.0
      %v1673 = vmax.f32 %v1499, 0.0
      %v1674 = vmax.f32 %v1504, 0.0
      %v1675 = vmax.f32 %v1507, 0.0
      %v1676 = vmax.f32 %v1512, 0.0
      %v1677 = vmax.f32 %v1515, 0.0
      %v1678 = vmax.f32 %v1520, 0.0
      %v1679 = vmax.f32 %v1523, 0.0
      %v1680 = vmax.f32 %v1528, 0.0
      %v1681 = vmax.f32 %v1531, 0.0
      %v1682 = vmax.f32 %v1536, 0.0
      %v1683 = vmax.f32 %v1539, 0.0
      %v1684 = vmax.f32 %v1544, 0.0
      %v1685 = vmax.f32 %v1547, 0.0
      %v1686 = vmax.f32 %v1552, 0.0
      %v1687 = vmax.f32 %v1555, 0.0
      %v1688 = vmax.f32 %v1560, 0.0
      %v1689 = vmax.f32 %v1563, 0.0
      %v1690 = vmax.f32 %v1568, 0.0
      %v1691 = vmax.f32 %v1571, 0.0
      %v1692 = vmax.f32 %v1576, 0.0
      %v1693 = vmax.f32 %v1579, 0.0
      %v1694 = vmax.f32 %v1584, 0.0
      %v1695 = vmax.f32 %v1587, 0.0
      %v1696 = vmax.f32 %v1592, 0.0
      %v1697 = vmax.f32 %v1595, 0.0
      %v1698 = vmax.f32 %v1600, 0.0
      %v1699 = vmax.f32 %v1603, 0.0
      %v1700 = vmax.f32 %v1608, 0.0
      %v1701 = vmax.f32 %v1611, 0.0
      %v1702 = vmax.f32 %v1616, 0.0
      %v1703 = vmax.f32 %v1619, 0.0
      %v1704 = vmax.f32 %v1624, 0.0
      %v1705 = vmax.f32 %v1627, 0.0
      %v1706 = vmax.f32 %v1632, 0.0
      %v1707 = vmax.f32 %v1635, 0.0
      %v1708 = vmax.f32 %v1640, 0.0
      %v1709 = vmax.f32 %v1643, 0.0
      %v1710 = vpack.c.bf16 %v1647, %v1646
      %v1711 = vpack.c.bf16 %v1649, %v1648
      %v1712 = vpack.c.bf16 %v1651, %v1650
      %v1713 = vpack.c.bf16 %v1653, %v1652
      %v1714 = vpack.c.bf16 %v1655, %v1654
      %v1715 = vpack.c.bf16 %v1657, %v1656
      %v1716 = vpack.c.bf16 %v1659, %v1658
      %v1717 = vpack.c.bf16 %v1661, %v1660
      %v1718 = vpack.c.bf16 %v1663, %v1662
      %v1719 = vpack.c.bf16 %v1665, %v1664
      %v1720 = vpack.c.bf16 %v1667, %v1666
      %v1721 = vpack.c.bf16 %v1669, %v1668
      %v1722 = vpack.c.bf16 %v1671, %v1670
      %v1723 = vpack.c.bf16 %v1673, %v1672
      %v1724 = vpack.c.bf16 %v1675, %v1674
      %v1725 = vpack.c.bf16 %v1677, %v1676
      %v1726 = vpack.c.bf16 %v1679, %v1678
      %v1727 = vpack.c.bf16 %v1681, %v1680
      %v1728 = vpack.c.bf16 %v1683, %v1682
      %v1729 = vpack.c.bf16 %v1685, %v1684
      %v1730 = vpack.c.bf16 %v1687, %v1686
      %v1731 = vpack.c.bf16 %v1689, %v1688
      %v1732 = vpack.c.bf16 %v1691, %v1690
      %v1733 = vpack.c.bf16 %v1693, %v1692
      %v1734 = vpack.c.bf16 %v1695, %v1694
      %v1735 = vpack.c.bf16 %v1697, %v1696
      %v1736 = vpack.c.bf16 %v1699, %v1698
      %v1737 = vpack.c.bf16 %v1701, %v1700
      %v1738 = vpack.c.bf16 %v1703, %v1702
      %v1739 = vpack.c.bf16 %v1705, %v1704
      %v1740 = vpack.c.bf16 %v1707, %v1706
      %v1741 = vpack.c.bf16 %v1709, %v1708
      %v1742 = vld [vmem:[%s3] sm:$0xf]
      %v1743 = vld [vmem:[%s3 + $0x4] sm:$0xf]
      %v1744 = vld [vmem:[%s3 + $0x8] sm:$0xf]
      %v1745 = vld [vmem:[%s3 + $0xc] sm:$0xf]
      %v1746 = vld [vmem:[%s3 + $0x10] sm:$0xf]
      %v1747 = vld [vmem:[%s3 + $0x14] sm:$0xf]
      %v1748 = vld [vmem:[%s3 + $0x18] sm:$0xf]
      %v1749 = vld [vmem:[%s3 + $0x1c] sm:$0xf]
      %v1750 = vld [vmem:[%s3 + $0x20] sm:$0xf]
      %v1751 = vld [vmem:[%s3 + $0x24] sm:$0xf]
      %v1752 = vld [vmem:[%s3 + $0x28] sm:$0xf]
      %v1753 = vld [vmem:[%s3 + $0x2c] sm:$0xf]
      %v1754 = vld [vmem:[%s3 + $0x30] sm:$0xf]
      %v1755 = vld [vmem:[%s3 + $0x34] sm:$0xf]
      %v1756 = vld [vmem:[%s3 + $0x38] sm:$0xf]
      %v1757 = vld [vmem:[%s3 + $0x3c] sm:$0xf]
      %v1758 = vlaneseq
      %v1759 = vshrl.u32 %v1758, 7
      %v1760 = vsub.s32 2, %v1759
      %v1761 = vrot.slane %v431, %v1760
      %v1778 = vunpack.c.l.b16 %v1742
      %v1779 = vunpack.c.l.b16 %v1743
      %v1780 = vunpack.c.l.b16 %v1744
      %v1781 = vunpack.c.l.b16 %v1745
      %v1782 = vunpack.c.l.b16 %v1746
      %v1783 = vunpack.c.l.b16 %v1747
      %v1784 = vunpack.c.l.b16 %v1748
      %v1785 = vunpack.c.l.b16 %v1749
      %v1786 = vunpack.c.l.b16 %v1750
      %v1787 = vunpack.c.l.b16 %v1751
      %v1788 = vunpack.c.l.b16 %v1752
      %v1789 = vunpack.c.l.b16 %v1753
      %v1790 = vunpack.c.l.b16 %v1754
      %v1791 = vunpack.c.l.b16 %v1755
      %v1792 = vunpack.c.l.b16 %v1756
      %v1793 = vunpack.c.l.b16 %v1757
      %v1794 = vpack.c.b16 %v1779, %v1778
      %v1795 = vpack.c.b16 %v1781, %v1780
      %v1796 = vpack.c.b16 %v1783, %v1782
      %v1797 = vpack.c.b16 %v1785, %v1784
      %v1798 = vpack.c.b16 %v1787, %v1786
      %v1799 = vpack.c.b16 %v1789, %v1788
      %v1800 = vpack.c.b16 %v1791, %v1790
      %v1801 = vpack.c.b16 %v1793, %v1792
      %1810 = vmatprep.subr.bf16.mxu0 0
      %1811 = vmatpush1.bf16.msra.mxu0 %v1794
      %1812 = vmatprep.subr.bf16.mxu0 0
      %1813 = vmatpush1.bf16.msra.mxu0 %v1795
      %1814 = vmatprep.subr.bf16.mxu0 0
      %1815 = vmatpush1.bf16.msra.mxu0 %v1796
      %1816 = vmatprep.subr.bf16.mxu0 0
      %1817 = vmatpush1.bf16.msra.mxu0 %v1797
      %1818 = vmatprep.subr.bf16.mxu0 0
      %1819 = vmatpush1.bf16.msra.mxu0 %v1798
      %1820 = vmatprep.subr.bf16.mxu0 0
      %1821 = vmatpush1.bf16.msra.mxu0 %v1799
      %1822 = vmatprep.subr.bf16.mxu0 0
      %1823 = vmatpush1.bf16.msra.mxu0 %v1800
      %1824 = vmatprep.subr.bf16.mxu0 0
      %1825 = vmatpush1.bf16.msra.mxu0 %v1801
      %1826 = vmatprep.subr.bf16.mxu0 0
      %1827 = vmatpush1.bf16.msra.mxu0 0
      %1828 = vmatprep.subr.bf16.mxu0 0
      %1829 = vmatpush1.bf16.msra.mxu0 0
      %1830 = vmatprep.subr.bf16.mxu0 0
      %1831 = vmatpush1.bf16.msra.mxu0 0
      %1832 = vmatprep.subr.bf16.mxu0 0
      %1833 = vmatpush1.bf16.msra.mxu0 0
      %1834 = vmatprep.subr.bf16.mxu0 0
      %1835 = vmatpush1.bf16.msra.mxu0 0
      %1836 = vmatprep.subr.bf16.mxu0 0
      %1837 = vmatpush1.bf16.msra.mxu0 0
      %1838 = vmatprep.subr.bf16.mxu0 0
      %1839 = vmatpush1.bf16.msra.mxu0 0
      %1840 = vmatprep.subr.bf16.mxu0 0
      %1841 = vmatpush1.bf16.msra.mxu0 0
      %1842 = vmatprep.mubr.bf16.mxu0 0
      %1843 = vmatmul.mubr.bf16.gmra.mrb[0].mxu0 %v1710
      %v1844 = vpop.f32.mrb[0].mxu0
      %v1845 = vadd.f32 %v1761, %v1844
      %v1846 = vpop.f32.mrb[0].mxu0
      %v1847 = vpop.f32.mrb[0].mxu0
      %v1848 = vadd.f32 %v1761, %v1847
      %v1849 = vpop.f32.mrb[0].mxu0
      %1850 = vmatprep.mubr.bf16.mxu0 0
      %1851 = vmatmul.mubr.bf16.gmra.mrb[0].mxu0 %v1711
      %v1852 = vpop.f32.mrb[0].mxu0
      %v1853 = vadd.f32 %v1761, %v1852
      %v1854 = vpop.f32.mrb[0].mxu0
      %v1855 = vpop.f32.mrb[0].mxu0
      %v1856 = vadd.f32 %v1761, %v1855
      %v1857 = vpop.f32.mrb[0].mxu0
      %1858 = vmatprep.mubr.bf16.mxu0 0
      %1859 = vmatmul.mubr.bf16.gmra.mrb[0].mxu0 %v1712
      %v1860 = vpop.f32.mrb[0].mxu0
      %v1861 = vadd.f32 %v1761, %v1860
      %v1862 = vpop.f32.mrb[0].mxu0
      %v1863 = vpop.f32.mrb[0].mxu0
      %v1864 = vadd.f32 %v1761, %v1863
      %v1865 = vpop.f32.mrb[0].mxu0
      %1866 = vmatprep.mubr.bf16.mxu0 0
      %1867 = vmatmul.mubr.bf16.gmra.mrb[0].mxu0 %v1713
      %v1868 = vpop.f32.mrb[0].mxu0
      %v1869 = vadd.f32 %v1761, %v1868
      %v1870 = vpop.f32.mrb[0].mxu0
      %v1871 = vpop.f32.mrb[0].mxu0
      %v1872 = vadd.f32 %v1761, %v1871
      %v1873 = vpop.f32.mrb[0].mxu0
      %1874 = vmatprep.mubr.bf16.mxu0 0
      %1875 = vmatmul.mubr.bf16.gmra.mrb[0].mxu0 %v1714
      %v1876 = vpop.f32.mrb[0].mxu0
      %v1877 = vadd.f32 %v1761, %v1876
      %v1878 = vpop.f32.mrb[0].mxu0
      %v1879 = vpop.f32.mrb[0].mxu0
      %v1880 = vadd.f32 %v1761, %v1879
      %v1881 = vpop.f32.mrb[0].mxu0
      %1882 = vmatprep.mubr.bf16.mxu0 0
      %1883 = vmatmul.mubr.bf16.gmra.mrb[0].mxu0 %v1715
      %v1884 = vpop.f32.mrb[0].mxu0
      %v1885 = vadd.f32 %v1761, %v1884
      %v1886 = vpop.f32.mrb[0].mxu0
      %v1887 = vpop.f32.mrb[0].mxu0
      %v1888 = vadd.f32 %v1761, %v1887
      %v1889 = vpop.f32.mrb[0].mxu0
      %1890 = vmatprep.mubr.bf16.mxu0 0
      %1891 = vmatmul.mubr.bf16.gmra.mrb[0].mxu0 %v1716
      %v1892 = vpop.f32.mrb[0].mxu0
      %v1893 = vadd.f32 %v1761, %v1892
      %v1894 = vpop.f32.mrb[0].mxu0
      %v1895 = vpop.f32.mrb[0].mxu0
      %v1896 = vadd.f32 %v1761, %v1895
      %v1897 = vpop.f32.mrb[0].mxu0
      %1898 = vmatprep.mubr.bf16.mxu0 0
      %1899 = vmatmul.mubr.bf16.gmra.mrb[0].mxu0 %v1717
      %v1900 = vpop.f32.mrb[0].mxu0
      %v1901 = vadd.f32 %v1761, %v1900
      %v1902 = vpop.f32.mrb[0].mxu0
      %v1903 = vpop.f32.mrb[0].mxu0
      %v1904 = vadd.f32 %v1761, %v1903
      %v1905 = vpop.f32.mrb[0].mxu0
      %1906 = vmatprep.mubr.bf16.mxu0 0
      %1907 = vmatmul.mubr.bf16.gmra.mrb[0].mxu0 %v1718
      %v1908 = vpop.f32.mrb[0].mxu0
      %v1909 = vadd.f32 %v1761, %v1908
      %v1910 = vpop.f32.mrb[0].mxu0
      %v1911 = vpop.f32.mrb[0].mxu0
      %v1912 = vadd.f32 %v1761, %v1911
      %v1913 = vpop.f32.mrb[0].mxu0
      %1914 = vmatprep.mubr.bf16.mxu0 0
      %1915 = vmatmul.mubr.bf16.gmra.mrb[0].mxu0 %v1719
      %v1916 = vpop.f32.mrb[0].mxu0
      %v1917 = vadd.f32 %v1761, %v1916
      %v1918 = vpop.f32.mrb[0].mxu0
      %v1919 = vpop.f32.mrb[0].mxu0
      %v1920 = vadd.f32 %v1761, %v1919
      %v1921 = vpop.f32.mrb[0].mxu0
      %1922 = vmatprep.mubr.bf16.mxu0 0
      %1923 = vmatmul.mubr.bf16.gmra.mrb[0].mxu0 %v1720
      %v1924 = vpop.f32.mrb[0].mxu0
      %v1925 = vadd.f32 %v1761, %v1924
      %v1926 = vpop.f32.mrb[0].mxu0
      %v1927 = vpop.f32.mrb[0].mxu0
      %v1928 = vadd.f32 %v1761, %v1927
      %v1929 = vpop.f32.mrb[0].mxu0
      %1930 = vmatprep.mubr.bf16.mxu0 0
      %1931 = vmatmul.mubr.bf16.gmra.mrb[0].mxu0 %v1721
      %v1932 = vpop.f32.mrb[0].mxu0
      %v1933 = vadd.f32 %v1761, %v1932
      %v1934 = vpop.f32.mrb[0].mxu0
      %v1935 = vpop.f32.mrb[0].mxu0
      %v1936 = vadd.f32 %v1761, %v1935
      %v1937 = vpop.f32.mrb[0].mxu0
      %1938 = vmatprep.mubr.bf16.mxu0 0
      %1939 = vmatmul.mubr.bf16.gmra.mrb[0].mxu0 %v1722
      %v1940 = vpop.f32.mrb[0].mxu0
      %v1941 = vadd.f32 %v1761, %v1940
      %v1942 = vpop.f32.mrb[0].mxu0
      %v1943 = vpop.f32.mrb[0].mxu0
      %v1944 = vadd.f32 %v1761, %v1943
      %v1945 = vpop.f32.mrb[0].mxu0
      %1946 = vmatprep.mubr.bf16.mxu0 0
      %1947 = vmatmul.mubr.bf16.gmra.mrb[0].mxu0 %v1723
      %v1948 = vpop.f32.mrb[0].mxu0
      %v1949 = vadd.f32 %v1761, %v1948
      %v1950 = vpop.f32.mrb[0].mxu0
      %v1951 = vpop.f32.mrb[0].mxu0
      %v1952 = vadd.f32 %v1761, %v1951
      %v1953 = vpop.f32.mrb[0].mxu0
      %1954 = vmatprep.mubr.bf16.mxu0 0
      %1955 = vmatmul.mubr.bf16.gmra.mrb[0].mxu0 %v1724
      %v1956 = vpop.f32.mrb[0].mxu0
      %v1957 = vadd.f32 %v1761, %v1956
      %v1958 = vpop.f32.mrb[0].mxu0
      %v1959 = vpop.f32.mrb[0].mxu0
      %v1960 = vadd.f32 %v1761, %v1959
      %v1961 = vpop.f32.mrb[0].mxu0
      %1962 = vmatprep.mubr.bf16.mxu0 0
      %1963 = vmatmul.mubr.bf16.gmra.mrb[0].mxu0 %v1725
      %v1964 = vpop.f32.mrb[0].mxu0
      %v1965 = vadd.f32 %v1761, %v1964
      %v1966 = vpop.f32.mrb[0].mxu0
      %v1967 = vpop.f32.mrb[0].mxu0
      %v1968 = vadd.f32 %v1761, %v1967
      %v1969 = vpop.f32.mrb[0].mxu0
      %1970 = vmatprep.mubr.bf16.mxu0 0
      %1971 = vmatmul.mubr.bf16.gmra.mrb[0].mxu0 %v1726
      %v1972 = vpop.f32.mrb[0].mxu0
      %v1973 = vadd.f32 %v1761, %v1972
      %v1974 = vpop.f32.mrb[0].mxu0
      %v1975 = vpop.f32.mrb[0].mxu0
      %v1976 = vadd.f32 %v1761, %v1975
      %v1977 = vpop.f32.mrb[0].mxu0
      %1978 = vmatprep.mubr.bf16.mxu0 0
      %1979 = vmatmul.mubr.bf16.gmra.mrb[0].mxu0 %v1727
      %v1980 = vpop.f32.mrb[0].mxu0
      %v1981 = vadd.f32 %v1761, %v1980
      %v1982 = vpop.f32.mrb[0].mxu0
      %v1983 = vpop.f32.mrb[0].mxu0
      %v1984 = vadd.f32 %v1761, %v1983
      %v1985 = vpop.f32.mrb[0].mxu0
      %1986 = vmatprep.mubr.bf16.mxu0 0
      %1987 = vmatmul.mubr.bf16.gmra.mrb[0].mxu0 %v1728
      %v1988 = vpop.f32.mrb[0].mxu0
      %v1989 = vadd.f32 %v1761, %v1988
      %v1990 = vpop.f32.mrb[0].mxu0
      %v1991 = vpop.f32.mrb[0].mxu0
      %v1992 = vadd.f32 %v1761, %v1991
      %v1993 = vpop.f32.mrb[0].mxu0
      %1994 = vmatprep.mubr.bf16.mxu0 0
      %1995 = vmatmul.mubr.bf16.gmra.mrb[0].mxu0 %v1729
      %v1996 = vpop.f32.mrb[0].mxu0
      %v1997 = vadd.f32 %v1761, %v1996
      %v1998 = vpop.f32.mrb[0].mxu0
      %v1999 = vpop.f32.mrb[0].mxu0
      %v2000 = vadd.f32 %v1761, %v1999
      %v2001 = vpop.f32.mrb[0].mxu0
      %2002 = vmatprep.mubr.bf16.mxu0 0
      %2003 = vmatmul.mubr.bf16.gmra.mrb[0].mxu0 %v1730
      %v2004 = vpop.f32.mrb[0].mxu0
      %v2005 = vadd.f32 %v1761, %v2004
      %v2006 = vpop.f32.mrb[0].mxu0
      %v2007 = vpop.f32.mrb[0].mxu0
      %v2008 = vadd.f32 %v1761, %v2007
      %v2009 = vpop.f32.mrb[0].mxu0
      %2010 = vmatprep.mubr.bf16.mxu0 0
      %2011 = vmatmul.mubr.bf16.gmra.mrb[0].mxu0 %v1731
      %v2012 = vpop.f32.mrb[0].mxu0
      %v2013 = vadd.f32 %v1761, %v2012
      %v2014 = vpop.f32.mrb[0].mxu0
      %v2015 = vpop.f32.mrb[0].mxu0
      %v2016 = vadd.f32 %v1761, %v2015
      %v2017 = vpop.f32.mrb[0].mxu0
      %2018 = vmatprep.mubr.bf16.mxu0 0
      %2019 = vmatmul.mubr.bf16.gmra.mrb[0].mxu0 %v1732
      %v2020 = vpop.f32.mrb[0].mxu0
      %v2021 = vadd.f32 %v1761, %v2020
      %v2022 = vpop.f32.mrb[0].mxu0
      %v2023 = vpop.f32.mrb[0].mxu0
      %v2024 = vadd.f32 %v1761, %v2023
      %v2025 = vpop.f32.mrb[0].mxu0
      %2026 = vmatprep.mubr.bf16.mxu0 0
      %2027 = vmatmul.mubr.bf16.gmra.mrb[0].mxu0 %v1733
      %v2028 = vpop.f32.mrb[0].mxu0
      %v2029 = vadd.f32 %v1761, %v2028
      %v2030 = vpop.f32.mrb[0].mxu0
      %v2031 = vpop.f32.mrb[0].mxu0
      %v2032 = vadd.f32 %v1761, %v2031
      %v2033 = vpop.f32.mrb[0].mxu0
      %2034 = vmatprep.mubr.bf16.mxu0 0
      %2035 = vmatmul.mubr.bf16.gmra.mrb[0].mxu0 %v1734
      %v2036 = vpop.f32.mrb[0].mxu0
      %v2037 = vadd.f32 %v1761, %v2036
      %v2038 = vpop.f32.mrb[0].mxu0
      %v2039 = vpop.f32.mrb[0].mxu0
      %v2040 = vadd.f32 %v1761, %v2039
      %v2041 = vpop.f32.mrb[0].mxu0
      %2042 = vmatprep.mubr.bf16.mxu0 0
      %2043 = vmatmul.mubr.bf16.gmra.mrb[0].mxu0 %v1735
      %v2044 = vpop.f32.mrb[0].mxu0
      %v2045 = vadd.f32 %v1761, %v2044
      %v2046 = vpop.f32.mrb[0].mxu0
      %v2047 = vpop.f32.mrb[0].mxu0
      %v2048 = vadd.f32 %v1761, %v2047
      %v2049 = vpop.f32.mrb[0].mxu0
      %2050 = vmatprep.mubr.bf16.mxu0 0
      %2051 = vmatmul.mubr.bf16.gmra.mrb[0].mxu0 %v1736
      %v2052 = vpop.f32.mrb[0].mxu0
      %v2053 = vadd.f32 %v1761, %v2052
      %v2054 = vpop.f32.mrb[0].mxu0
      %v2055 = vpop.f32.mrb[0].mxu0
      %v2056 = vadd.f32 %v1761, %v2055
      %v2057 = vpop.f32.mrb[0].mxu0
      %2058 = vmatprep.mubr.bf16.mxu0 0
      %2059 = vmatmul.mubr.bf16.gmra.mrb[0].mxu0 %v1737
      %v2060 = vpop.f32.mrb[0].mxu0
      %v2061 = vadd.f32 %v1761, %v2060
      %v2062 = vpop.f32.mrb[0].mxu0
      %v2063 = vpop.f32.mrb[0].mxu0
      %v2064 = vadd.f32 %v1761, %v2063
      %v2065 = vpop.f32.mrb[0].mxu0
      %2066 = vmatprep.mubr.bf16.mxu0 0
      %2067 = vmatmul.mubr.bf16.gmra.mrb[0].mxu0 %v1738
      %v2068 = vpop.f32.mrb[0].mxu0
      %v2069 = vadd.f32 %v1761, %v2068
      %v2070 = vpop.f32.mrb[0].mxu0
      %v2071 = vpop.f32.mrb[0].mxu0
      %v2072 = vadd.f32 %v1761, %v2071
      %v2073 = vpop.f32.mrb[0].mxu0
      %2074 = vmatprep.mubr.bf16.mxu0 0
      %2075 = vmatmul.mubr.bf16.gmra.mrb[0].mxu0 %v1739
      %v2076 = vpop.f32.mrb[0].mxu0
      %v2077 = vadd.f32 %v1761, %v2076
      %v2078 = vpop.f32.mrb[0].mxu0
      %v2079 = vpop.f32.mrb[0].mxu0
      %v2080 = vadd.f32 %v1761, %v2079
      %v2081 = vpop.f32.mrb[0].mxu0
      %2082 = vmatprep.mubr.bf16.mxu0 0
      %2083 = vmatmul.mubr.bf16.gmra.mrb[0].mxu0 %v1740
      %v2084 = vpop.f32.mrb[0].mxu0
      %v2085 = vadd.f32 %v1761, %v2084
      %v2086 = vpop.f32.mrb[0].mxu0
      %v2087 = vpop.f32.mrb[0].mxu0
      %v2088 = vadd.f32 %v1761, %v2087
      %v2089 = vpop.f32.mrb[0].mxu0
      %2090 = vmatprep.mubr.bf16.mxu0 0
      %2091 = vmatmul.mubr.bf16.gmra.mrb[0].mxu0 %v1741
      %v2092 = vpop.f32.mrb[0].mxu0
      %v2093 = vadd.f32 %v1761, %v2092
      %v2094 = vpop.f32.mrb[0].mxu0
      %v2095 = vpop.f32.mrb[0].mxu0
      %v2096 = vadd.f32 %v1761, %v2095
      %v2097 = vpop.f32.mrb[0].mxu0
      %2098 = vdwg.mxu0
      %v2099 = vmax.f32 %v1845, 0.0
      %v2100 = vmax.f32 %v1848, 0.0
      %v2101 = vmax.f32 %v1853, 0.0
      %v2102 = vmax.f32 %v1856, 0.0
      %v2103 = vmax.f32 %v1861, 0.0
      %v2104 = vmax.f32 %v1864, 0.0
      %v2105 = vmax.f32 %v1869, 0.0
      %v2106 = vmax.f32 %v1872, 0.0
      %v2107 = vmax.f32 %v1877, 0.0
      %v2108 = vmax.f32 %v1880, 0.0
      %v2109 = vmax.f32 %v1885, 0.0
      %v2110 = vmax.f32 %v1888, 0.0
      %v2111 = vmax.f32 %v1893, 0.0
      %v2112 = vmax.f32 %v1896, 0.0
      %v2113 = vmax.f32 %v1901, 0.0
      %v2114 = vmax.f32 %v1904, 0.0
      %v2115 = vmax.f32 %v1909, 0.0
      %v2116 = vmax.f32 %v1912, 0.0
      %v2117 = vmax.f32 %v1917, 0.0
      %v2118 = vmax.f32 %v1920, 0.0
      %v2119 = vmax.f32 %v1925, 0.0
      %v2120 = vmax.f32 %v1928, 0.0
      %v2121 = vmax.f32 %v1933, 0.0
      %v2122 = vmax.f32 %v1936, 0.0
      %v2123 = vmax.f32 %v1941, 0.0
      %v2124 = vmax.f32 %v1944, 0.0
      %v2125 = vmax.f32 %v1949, 0.0
      %v2126 = vmax.f32 %v1952, 0.0
      %v2127 = vmax.f32 %v1957, 0.0
      %v2128 = vmax.f32 %v1960, 0.0
      %v2129 = vmax.f32 %v1965, 0.0
      %v2130 = vmax.f32 %v1968, 0.0
      %v2131 = vmax.f32 %v1973, 0.0
      %v2132 = vmax.f32 %v1976, 0.0
      %v2133 = vmax.f32 %v1981, 0.0
      %v2134 = vmax.f32 %v1984, 0.0
      %v2135 = vmax.f32 %v1989, 0.0
      %v2136 = vmax.f32 %v1992, 0.0
      %v2137 = vmax.f32 %v1997, 0.0
      %v2138 = vmax.f32 %v2000, 0.0
      %v2139 = vmax.f32 %v2005, 0.0
      %v2140 = vmax.f32 %v2008, 0.0
      %v2141 = vmax.f32 %v2013, 0.0
      %v2142 = vmax.f32 %v2016, 0.0
      %v2143 = vmax.f32 %v2021, 0.0
      %v2144 = vmax.f32 %v2024, 0.0
      %v2145 = vmax.f32 %v2029, 0.0
      %v2146 = vmax.f32 %v2032, 0.0
      %v2147 = vmax.f32 %v2037, 0.0
      %v2148 = vmax.f32 %v2040, 0.0
      %v2149 = vmax.f32 %v2045, 0.0
      %v2150 = vmax.f32 %v2048, 0.0
      %v2151 = vmax.f32 %v2053, 0.0
      %v2152 = vmax.f32 %v2056, 0.0
      %v2153 = vmax.f32 %v2061, 0.0
      %v2154 = vmax.f32 %v2064, 0.0
      %v2155 = vmax.f32 %v2069, 0.0
      %v2156 = vmax.f32 %v2072, 0.0
      %v2157 = vmax.f32 %v2077, 0.0
      %v2158 = vmax.f32 %v2080, 0.0
      %v2159 = vmax.f32 %v2085, 0.0
      %v2160 = vmax.f32 %v2088, 0.0
      %v2161 = vmax.f32 %v2093, 0.0
      %v2162 = vmax.f32 %v2096, 0.0
      %v2163 = vpack.c.bf16 %v2100, %v2099
      %v2164 = vpack.c.bf16 %v2102, %v2101
      %v2165 = vpack.c.bf16 %v2104, %v2103
      %v2166 = vpack.c.bf16 %v2106, %v2105
      %v2167 = vpack.c.bf16 %v2108, %v2107
      %v2168 = vpack.c.bf16 %v2110, %v2109
      %v2169 = vpack.c.bf16 %v2112, %v2111
      %v2170 = vpack.c.bf16 %v2114, %v2113
      %v2171 = vpack.c.bf16 %v2116, %v2115
      %v2172 = vpack.c.bf16 %v2118, %v2117
      %v2173 = vpack.c.bf16 %v2120, %v2119
      %v2174 = vpack.c.bf16 %v2122, %v2121
      %v2175 = vpack.c.bf16 %v2124, %v2123
      %v2176 = vpack.c.bf16 %v2126, %v2125
      %v2177 = vpack.c.bf16 %v2128, %v2127
      %v2178 = vpack.c.bf16 %v2130, %v2129
      %v2179 = vpack.c.bf16 %v2132, %v2131
      %v2180 = vpack.c.bf16 %v2134, %v2133
      %v2181 = vpack.c.bf16 %v2136, %v2135
      %v2182 = vpack.c.bf16 %v2138, %v2137
      %v2183 = vpack.c.bf16 %v2140, %v2139
      %v2184 = vpack.c.bf16 %v2142, %v2141
      %v2185 = vpack.c.bf16 %v2144, %v2143
      %v2186 = vpack.c.bf16 %v2146, %v2145
      %v2187 = vpack.c.bf16 %v2148, %v2147
      %v2188 = vpack.c.bf16 %v2150, %v2149
      %v2189 = vpack.c.bf16 %v2152, %v2151
      %v2190 = vpack.c.bf16 %v2154, %v2153
      %v2191 = vpack.c.bf16 %v2156, %v2155
      %v2192 = vpack.c.bf16 %v2158, %v2157
      %v2193 = vpack.c.bf16 %v2160, %v2159
      %v2194 = vpack.c.bf16 %v2162, %v2161
      %v2195 = vld [vmem:[%s4] sm:$0xf]
      %v2196 = vld [vmem:[%s4 + $0x4] sm:$0xf]
      %v2197 = vld [vmem:[%s4 + $0x8] sm:$0xf]
      %v2198 = vld [vmem:[%s4 + $0xc] sm:$0xf]
      %v2199 = vld [vmem:[%s4 + $0x10] sm:$0xf]
      %v2200 = vld [vmem:[%s4 + $0x14] sm:$0xf]
      %v2201 = vld [vmem:[%s4 + $0x18] sm:$0xf]
      %v2202 = vld [vmem:[%s4 + $0x1c] sm:$0xf]
      %v2203 = vld [vmem:[%s4 + $0x20] sm:$0xf]
      %v2204 = vld [vmem:[%s4 + $0x24] sm:$0xf]
      %v2205 = vld [vmem:[%s4 + $0x28] sm:$0xf]
      %v2206 = vld [vmem:[%s4 + $0x2c] sm:$0xf]
      %v2207 = vld [vmem:[%s4 + $0x30] sm:$0xf]
      %v2208 = vld [vmem:[%s4 + $0x34] sm:$0xf]
      %v2209 = vld [vmem:[%s4 + $0x38] sm:$0xf]
      %v2210 = vld [vmem:[%s4 + $0x3c] sm:$0xf]
      %v2211 = vlaneseq
      %v2212 = vshrl.u32 %v2211, 7
      %v2213 = vsub.s32 3, %v2212
      %v2214 = vrot.slane %v431, %v2213
      %v2231 = vunpack.c.l.b16 %v2195
      %v2232 = vunpack.c.l.b16 %v2196
      %v2233 = vunpack.c.l.b16 %v2197
      %v2234 = vunpack.c.l.b16 %v2198
      %v2235 = vunpack.c.l.b16 %v2199
      %v2236 = vunpack.c.l.b16 %v2200
      %v2237 = vunpack.c.l.b16 %v2201
      %v2238 = vunpack.c.l.b16 %v2202
      %v2239 = vunpack.c.l.b16 %v2203
      %v2240 = vunpack.c.l.b16 %v2204
      %v2241 = vunpack.c.l.b16 %v2205
      %v2242 = vunpack.c.l.b16 %v2206
      %v2243 = vunpack.c.l.b16 %v2207
      %v2244 = vunpack.c.l.b16 %v2208
      %v2245 = vunpack.c.l.b16 %v2209
      %v2246 = vunpack.c.l.b16 %v2210
      %v2247 = vpack.c.b16 %v2232, %v2231
      %v2248 = vpack.c.b16 %v2234, %v2233
      %v2249 = vpack.c.b16 %v2236, %v2235
      %v2250 = vpack.c.b16 %v2238, %v2237
      %v2251 = vpack.c.b16 %v2240, %v2239
      %v2252 = vpack.c.b16 %v2242, %v2241
      %v2253 = vpack.c.b16 %v2244, %v2243
      %v2254 = vpack.c.b16 %v2246, %v2245
      %2263 = vmatprep.subr.bf16.mxu0 0
      %2264 = vmatpush1.bf16.msra.mxu0 %v2247
      %2265 = vmatprep.subr.bf16.mxu0 0
      %2266 = vmatpush1.bf16.msra.mxu0 %v2248
      %2267 = vmatprep.subr.bf16.mxu0 0
      %2268 = vmatpush1.bf16.msra.mxu0 %v2249
      %2269 = vmatprep.subr.bf16.mxu0 0
      %2270 = vmatpush1.bf16.msra.mxu0 %v2250
      %2271 = vmatprep.subr.bf16.mxu0 0
      %2272 = vmatpush1.bf16.msra.mxu0 %v2251
      %2273 = vmatprep.subr.bf16.mxu0 0
      %2274 = vmatpush1.bf16.msra.mxu0 %v2252
      %2275 = vmatprep.subr.bf16.mxu0 0
      %2276 = vmatpush1.bf16.msra.mxu0 %v2253
      %2277 = vmatprep.subr.bf16.mxu0 0
      %2278 = vmatpush1.bf16.msra.mxu0 %v2254
      %2279 = vmatprep.subr.bf16.mxu0 0
      %2280 = vmatpush1.bf16.msra.mxu0 0
      %2281 = vmatprep.subr.bf16.mxu0 0
      %2282 = vmatpush1.bf16.msra.mxu0 0
      %2283 = vmatprep.subr.bf16.mxu0 0
      %2284 = vmatpush1.bf16.msra.mxu0 0
      %2285 = vmatprep.subr.bf16.mxu0 0
      %2286 = vmatpush1.bf16.msra.mxu0 0
      %2287 = vmatprep.subr.bf16.mxu0 0
      %2288 = vmatpush1.bf16.msra.mxu0 0
      %2289 = vmatprep.subr.bf16.mxu0 0
      %2290 = vmatpush1.bf16.msra.mxu0 0
      %2291 = vmatprep.subr.bf16.mxu0 0
      %2292 = vmatpush1.bf16.msra.mxu0 0
      %2293 = vmatprep.subr.bf16.mxu0 0
      %2294 = vmatpush1.bf16.msra.mxu0 0
      %2295 = vmatprep.mubr.bf16.mxu0 0
      %2296 = vmatmul.mubr.bf16.gmra.mrb[0].mxu0 %v2163
      %v2297 = vpop.f32.mrb[0].mxu0
      %v2298 = vadd.f32 %v2214, %v2297
      %v2299 = vpop.f32.mrb[0].mxu0
      %v2300 = vpop.f32.mrb[0].mxu0
      %v2301 = vadd.f32 %v2214, %v2300
      %v2302 = vpop.f32.mrb[0].mxu0
      %2303 = vmatprep.mubr.bf16.mxu0 0
      %2304 = vmatmul.mubr.bf16.gmra.mrb[0].mxu0 %v2164
      %v2305 = vpop.f32.mrb[0].mxu0
      %v2306 = vadd.f32 %v2214, %v2305
      %v2307 = vpop.f32.mrb[0].mxu0
      %v2308 = vpop.f32.mrb[0].mxu0
      %v2309 = vadd.f32 %v2214, %v2308
      %v2310 = vpop.f32.mrb[0].mxu0
      %2311 = vmatprep.mubr.bf16.mxu0 0
      %2312 = vmatmul.mubr.bf16.gmra.mrb[0].mxu0 %v2165
      %v2313 = vpop.f32.mrb[0].mxu0
      %v2314 = vadd.f32 %v2214, %v2313
      %v2315 = vpop.f32.mrb[0].mxu0
      %v2316 = vpop.f32.mrb[0].mxu0
      %v2317 = vadd.f32 %v2214, %v2316
      %v2318 = vpop.f32.mrb[0].mxu0
      %2319 = vmatprep.mubr.bf16.mxu0 0
      %2320 = vmatmul.mubr.bf16.gmra.mrb[0].mxu0 %v2166
      %v2321 = vpop.f32.mrb[0].mxu0
      %v2322 = vadd.f32 %v2214, %v2321
      %v2323 = vpop.f32.mrb[0].mxu0
      %v2324 = vpop.f32.mrb[0].mxu0
      %v2325 = vadd.f32 %v2214, %v2324
      %v2326 = vpop.f32.mrb[0].mxu0
      %2327 = vmatprep.mubr.bf16.mxu0 0
      %2328 = vmatmul.mubr.bf16.gmra.mrb[0].mxu0 %v2167
      %v2329 = vpop.f32.mrb[0].mxu0
      %v2330 = vadd.f32 %v2214, %v2329
      %v2331 = vpop.f32.mrb[0].mxu0
      %v2332 = vpop.f32.mrb[0].mxu0
      %v2333 = vadd.f32 %v2214, %v2332
      %v2334 = vpop.f32.mrb[0].mxu0
      %2335 = vmatprep.mubr.bf16.mxu0 0
      %2336 = vmatmul.mubr.bf16.gmra.mrb[0].mxu0 %v2168
      %v2337 = vpop.f32.mrb[0].mxu0
      %v2338 = vadd.f32 %v2214, %v2337
      %v2339 = vpop.f32.mrb[0].mxu0
      %v2340 = vpop.f32.mrb[0].mxu0
      %v2341 = vadd.f32 %v2214, %v2340
      %v2342 = vpop.f32.mrb[0].mxu0
      %2343 = vmatprep.mubr.bf16.mxu0 0
      %2344 = vmatmul.mubr.bf16.gmra.mrb[0].mxu0 %v2169
      %v2345 = vpop.f32.mrb[0].mxu0
      %v2346 = vadd.f32 %v2214, %v2345
      %v2347 = vpop.f32.mrb[0].mxu0
      %v2348 = vpop.f32.mrb[0].mxu0
      %v2349 = vadd.f32 %v2214, %v2348
      %v2350 = vpop.f32.mrb[0].mxu0
      %2351 = vmatprep.mubr.bf16.mxu0 0
      %2352 = vmatmul.mubr.bf16.gmra.mrb[0].mxu0 %v2170
      %v2353 = vpop.f32.mrb[0].mxu0
      %v2354 = vadd.f32 %v2214, %v2353
      %v2355 = vpop.f32.mrb[0].mxu0
      %v2356 = vpop.f32.mrb[0].mxu0
      %v2357 = vadd.f32 %v2214, %v2356
      %v2358 = vpop.f32.mrb[0].mxu0
      %2359 = vmatprep.mubr.bf16.mxu0 0
      %2360 = vmatmul.mubr.bf16.gmra.mrb[0].mxu0 %v2171
      %v2361 = vpop.f32.mrb[0].mxu0
      %v2362 = vadd.f32 %v2214, %v2361
      %v2363 = vpop.f32.mrb[0].mxu0
      %v2364 = vpop.f32.mrb[0].mxu0
      %v2365 = vadd.f32 %v2214, %v2364
      %v2366 = vpop.f32.mrb[0].mxu0
      %2367 = vmatprep.mubr.bf16.mxu0 0
      %2368 = vmatmul.mubr.bf16.gmra.mrb[0].mxu0 %v2172
      %v2369 = vpop.f32.mrb[0].mxu0
      %v2370 = vadd.f32 %v2214, %v2369
      %v2371 = vpop.f32.mrb[0].mxu0
      %v2372 = vpop.f32.mrb[0].mxu0
      %v2373 = vadd.f32 %v2214, %v2372
      %v2374 = vpop.f32.mrb[0].mxu0
      %2375 = vmatprep.mubr.bf16.mxu0 0
      %2376 = vmatmul.mubr.bf16.gmra.mrb[0].mxu0 %v2173
      %v2377 = vpop.f32.mrb[0].mxu0
      %v2378 = vadd.f32 %v2214, %v2377
      %v2379 = vpop.f32.mrb[0].mxu0
      %v2380 = vpop.f32.mrb[0].mxu0
      %v2381 = vadd.f32 %v2214, %v2380
      %v2382 = vpop.f32.mrb[0].mxu0
      %2383 = vmatprep.mubr.bf16.mxu0 0
      %2384 = vmatmul.mubr.bf16.gmra.mrb[0].mxu0 %v2174
      %v2385 = vpop.f32.mrb[0].mxu0
      %v2386 = vadd.f32 %v2214, %v2385
      %v2387 = vpop.f32.mrb[0].mxu0
      %v2388 = vpop.f32.mrb[0].mxu0
      %v2389 = vadd.f32 %v2214, %v2388
      %v2390 = vpop.f32.mrb[0].mxu0
      %2391 = vmatprep.mubr.bf16.mxu0 0
      %2392 = vmatmul.mubr.bf16.gmra.mrb[0].mxu0 %v2175
      %v2393 = vpop.f32.mrb[0].mxu0
      %v2394 = vadd.f32 %v2214, %v2393
      %v2395 = vpop.f32.mrb[0].mxu0
      %v2396 = vpop.f32.mrb[0].mxu0
      %v2397 = vadd.f32 %v2214, %v2396
      %v2398 = vpop.f32.mrb[0].mxu0
      %2399 = vmatprep.mubr.bf16.mxu0 0
      %2400 = vmatmul.mubr.bf16.gmra.mrb[0].mxu0 %v2176
      %v2401 = vpop.f32.mrb[0].mxu0
      %v2402 = vadd.f32 %v2214, %v2401
      %v2403 = vpop.f32.mrb[0].mxu0
      %v2404 = vpop.f32.mrb[0].mxu0
      %v2405 = vadd.f32 %v2214, %v2404
      %v2406 = vpop.f32.mrb[0].mxu0
      %2407 = vmatprep.mubr.bf16.mxu0 0
      %2408 = vmatmul.mubr.bf16.gmra.mrb[0].mxu0 %v2177
      %v2409 = vpop.f32.mrb[0].mxu0
      %v2410 = vadd.f32 %v2214, %v2409
      %v2411 = vpop.f32.mrb[0].mxu0
      %v2412 = vpop.f32.mrb[0].mxu0
      %v2413 = vadd.f32 %v2214, %v2412
      %v2414 = vpop.f32.mrb[0].mxu0
      %2415 = vmatprep.mubr.bf16.mxu0 0
      %2416 = vmatmul.mubr.bf16.gmra.mrb[0].mxu0 %v2178
      %v2417 = vpop.f32.mrb[0].mxu0
      %v2418 = vadd.f32 %v2214, %v2417
      %v2419 = vpop.f32.mrb[0].mxu0
      %v2420 = vpop.f32.mrb[0].mxu0
      %v2421 = vadd.f32 %v2214, %v2420
      %v2422 = vpop.f32.mrb[0].mxu0
      %2423 = vmatprep.mubr.bf16.mxu0 0
      %2424 = vmatmul.mubr.bf16.gmra.mrb[0].mxu0 %v2179
      %v2425 = vpop.f32.mrb[0].mxu0
      %v2426 = vadd.f32 %v2214, %v2425
      %v2427 = vpop.f32.mrb[0].mxu0
      %v2428 = vpop.f32.mrb[0].mxu0
      %v2429 = vadd.f32 %v2214, %v2428
      %v2430 = vpop.f32.mrb[0].mxu0
      %2431 = vmatprep.mubr.bf16.mxu0 0
      %2432 = vmatmul.mubr.bf16.gmra.mrb[0].mxu0 %v2180
      %v2433 = vpop.f32.mrb[0].mxu0
      %v2434 = vadd.f32 %v2214, %v2433
      %v2435 = vpop.f32.mrb[0].mxu0
      %v2436 = vpop.f32.mrb[0].mxu0
      %v2437 = vadd.f32 %v2214, %v2436
      %v2438 = vpop.f32.mrb[0].mxu0
      %2439 = vmatprep.mubr.bf16.mxu0 0
      %2440 = vmatmul.mubr.bf16.gmra.mrb[0].mxu0 %v2181
      %v2441 = vpop.f32.mrb[0].mxu0
      %v2442 = vadd.f32 %v2214, %v2441
      %v2443 = vpop.f32.mrb[0].mxu0
      %v2444 = vpop.f32.mrb[0].mxu0
      %v2445 = vadd.f32 %v2214, %v2444
      %v2446 = vpop.f32.mrb[0].mxu0
      %2447 = vmatprep.mubr.bf16.mxu0 0
      %2448 = vmatmul.mubr.bf16.gmra.mrb[0].mxu0 %v2182
      %v2449 = vpop.f32.mrb[0].mxu0
      %v2450 = vadd.f32 %v2214, %v2449
      %v2451 = vpop.f32.mrb[0].mxu0
      %v2452 = vpop.f32.mrb[0].mxu0
      %v2453 = vadd.f32 %v2214, %v2452
      %v2454 = vpop.f32.mrb[0].mxu0
      %2455 = vmatprep.mubr.bf16.mxu0 0
      %2456 = vmatmul.mubr.bf16.gmra.mrb[0].mxu0 %v2183
      %v2457 = vpop.f32.mrb[0].mxu0
      %v2458 = vadd.f32 %v2214, %v2457
      %v2459 = vpop.f32.mrb[0].mxu0
      %v2460 = vpop.f32.mrb[0].mxu0
      %v2461 = vadd.f32 %v2214, %v2460
      %v2462 = vpop.f32.mrb[0].mxu0
      %2463 = vmatprep.mubr.bf16.mxu0 0
      %2464 = vmatmul.mubr.bf16.gmra.mrb[0].mxu0 %v2184
      %v2465 = vpop.f32.mrb[0].mxu0
      %v2466 = vadd.f32 %v2214, %v2465
      %v2467 = vpop.f32.mrb[0].mxu0
      %v2468 = vpop.f32.mrb[0].mxu0
      %v2469 = vadd.f32 %v2214, %v2468
      %v2470 = vpop.f32.mrb[0].mxu0
      %2471 = vmatprep.mubr.bf16.mxu0 0
      %2472 = vmatmul.mubr.bf16.gmra.mrb[0].mxu0 %v2185
      %v2473 = vpop.f32.mrb[0].mxu0
      %v2474 = vadd.f32 %v2214, %v2473
      %v2475 = vpop.f32.mrb[0].mxu0
      %v2476 = vpop.f32.mrb[0].mxu0
      %v2477 = vadd.f32 %v2214, %v2476
      %v2478 = vpop.f32.mrb[0].mxu0
      %2479 = vmatprep.mubr.bf16.mxu0 0
      %2480 = vmatmul.mubr.bf16.gmra.mrb[0].mxu0 %v2186
      %v2481 = vpop.f32.mrb[0].mxu0
      %v2482 = vadd.f32 %v2214, %v2481
      %v2483 = vpop.f32.mrb[0].mxu0
      %v2484 = vpop.f32.mrb[0].mxu0
      %v2485 = vadd.f32 %v2214, %v2484
      %v2486 = vpop.f32.mrb[0].mxu0
      %2487 = vmatprep.mubr.bf16.mxu0 0
      %2488 = vmatmul.mubr.bf16.gmra.mrb[0].mxu0 %v2187
      %v2489 = vpop.f32.mrb[0].mxu0
      %v2490 = vadd.f32 %v2214, %v2489
      %v2491 = vpop.f32.mrb[0].mxu0
      %v2492 = vpop.f32.mrb[0].mxu0
      %v2493 = vadd.f32 %v2214, %v2492
      %v2494 = vpop.f32.mrb[0].mxu0
      %2495 = vmatprep.mubr.bf16.mxu0 0
      %2496 = vmatmul.mubr.bf16.gmra.mrb[0].mxu0 %v2188
      %v2497 = vpop.f32.mrb[0].mxu0
      %v2498 = vadd.f32 %v2214, %v2497
      %v2499 = vpop.f32.mrb[0].mxu0
      %v2500 = vpop.f32.mrb[0].mxu0
      %v2501 = vadd.f32 %v2214, %v2500
      %v2502 = vpop.f32.mrb[0].mxu0
      %2503 = vmatprep.mubr.bf16.mxu0 0
      %2504 = vmatmul.mubr.bf16.gmra.mrb[0].mxu0 %v2189
      %v2505 = vpop.f32.mrb[0].mxu0
      %v2506 = vadd.f32 %v2214, %v2505
      %v2507 = vpop.f32.mrb[0].mxu0
      %v2508 = vpop.f32.mrb[0].mxu0
      %v2509 = vadd.f32 %v2214, %v2508
      %v2510 = vpop.f32.mrb[0].mxu0
      %2511 = vmatprep.mubr.bf16.mxu0 0
      %2512 = vmatmul.mubr.bf16.gmra.mrb[0].mxu0 %v2190
      %v2513 = vpop.f32.mrb[0].mxu0
      %v2514 = vadd.f32 %v2214, %v2513
      %v2515 = vpop.f32.mrb[0].mxu0
      %v2516 = vpop.f32.mrb[0].mxu0
      %v2517 = vadd.f32 %v2214, %v2516
      %v2518 = vpop.f32.mrb[0].mxu0
      %2519 = vmatprep.mubr.bf16.mxu0 0
      %2520 = vmatmul.mubr.bf16.gmra.mrb[0].mxu0 %v2191
      %v2521 = vpop.f32.mrb[0].mxu0
      %v2522 = vadd.f32 %v2214, %v2521
      %v2523 = vpop.f32.mrb[0].mxu0
      %v2524 = vpop.f32.mrb[0].mxu0
      %v2525 = vadd.f32 %v2214, %v2524
      %v2526 = vpop.f32.mrb[0].mxu0
      %2527 = vmatprep.mubr.bf16.mxu0 0
      %2528 = vmatmul.mubr.bf16.gmra.mrb[0].mxu0 %v2192
      %v2529 = vpop.f32.mrb[0].mxu0
      %v2530 = vadd.f32 %v2214, %v2529
      %v2531 = vpop.f32.mrb[0].mxu0
      %v2532 = vpop.f32.mrb[0].mxu0
      %v2533 = vadd.f32 %v2214, %v2532
      %v2534 = vpop.f32.mrb[0].mxu0
      %2535 = vmatprep.mubr.bf16.mxu0 0
      %2536 = vmatmul.mubr.bf16.gmra.mrb[0].mxu0 %v2193
      %v2537 = vpop.f32.mrb[0].mxu0
      %v2538 = vadd.f32 %v2214, %v2537
      %v2539 = vpop.f32.mrb[0].mxu0
      %v2540 = vpop.f32.mrb[0].mxu0
      %v2541 = vadd.f32 %v2214, %v2540
      %v2542 = vpop.f32.mrb[0].mxu0
      %2543 = vmatprep.mubr.bf16.mxu0 0
      %2544 = vmatmul.mubr.bf16.gmra.mrb[0].mxu0 %v2194
      %v2545 = vpop.f32.mrb[0].mxu0
      %v2546 = vadd.f32 %v2214, %v2545
      %v2547 = vpop.f32.mrb[0].mxu0
      %v2548 = vpop.f32.mrb[0].mxu0
      %v2549 = vadd.f32 %v2214, %v2548
      %v2550 = vpop.f32.mrb[0].mxu0
      %2551 = vdwg.mxu0
      %v2552 = vmax.f32 %v2298, 0.0
      %v2553 = vmax.f32 %v2301, 0.0
      %v2554 = vmax.f32 %v2306, 0.0
      %v2555 = vmax.f32 %v2309, 0.0
      %v2556 = vmax.f32 %v2314, 0.0
      %v2557 = vmax.f32 %v2317, 0.0
      %v2558 = vmax.f32 %v2322, 0.0
      %v2559 = vmax.f32 %v2325, 0.0
      %v2560 = vmax.f32 %v2330, 0.0
      %v2561 = vmax.f32 %v2333, 0.0
      %v2562 = vmax.f32 %v2338, 0.0
      %v2563 = vmax.f32 %v2341, 0.0
      %v2564 = vmax.f32 %v2346, 0.0
      %v2565 = vmax.f32 %v2349, 0.0
      %v2566 = vmax.f32 %v2354, 0.0
      %v2567 = vmax.f32 %v2357, 0.0
      %v2568 = vmax.f32 %v2362, 0.0
      %v2569 = vmax.f32 %v2365, 0.0
      %v2570 = vmax.f32 %v2370, 0.0
      %v2571 = vmax.f32 %v2373, 0.0
      %v2572 = vmax.f32 %v2378, 0.0
      %v2573 = vmax.f32 %v2381, 0.0
      %v2574 = vmax.f32 %v2386, 0.0
      %v2575 = vmax.f32 %v2389, 0.0
      %v2576 = vmax.f32 %v2394, 0.0
      %v2577 = vmax.f32 %v2397, 0.0
      %v2578 = vmax.f32 %v2402, 0.0
      %v2579 = vmax.f32 %v2405, 0.0
      %v2580 = vmax.f32 %v2410, 0.0
      %v2581 = vmax.f32 %v2413, 0.0
      %v2582 = vmax.f32 %v2418, 0.0
      %v2583 = vmax.f32 %v2421, 0.0
      %v2584 = vmax.f32 %v2426, 0.0
      %v2585 = vmax.f32 %v2429, 0.0
      %v2586 = vmax.f32 %v2434, 0.0
      %v2587 = vmax.f32 %v2437, 0.0
      %v2588 = vmax.f32 %v2442, 0.0
      %v2589 = vmax.f32 %v2445, 0.0
      %v2590 = vmax.f32 %v2450, 0.0
      %v2591 = vmax.f32 %v2453, 0.0
      %v2592 = vmax.f32 %v2458, 0.0
      %v2593 = vmax.f32 %v2461, 0.0
      %v2594 = vmax.f32 %v2466, 0.0
      %v2595 = vmax.f32 %v2469, 0.0
      %v2596 = vmax.f32 %v2474, 0.0
      %v2597 = vmax.f32 %v2477, 0.0
      %v2598 = vmax.f32 %v2482, 0.0
      %v2599 = vmax.f32 %v2485, 0.0
      %v2600 = vmax.f32 %v2490, 0.0
      %v2601 = vmax.f32 %v2493, 0.0
      %v2602 = vmax.f32 %v2498, 0.0
      %v2603 = vmax.f32 %v2501, 0.0
      %v2604 = vmax.f32 %v2506, 0.0
      %v2605 = vmax.f32 %v2509, 0.0
      %v2606 = vmax.f32 %v2514, 0.0
      %v2607 = vmax.f32 %v2517, 0.0
      %v2608 = vmax.f32 %v2522, 0.0
      %v2609 = vmax.f32 %v2525, 0.0
      %v2610 = vmax.f32 %v2530, 0.0
      %v2611 = vmax.f32 %v2533, 0.0
      %v2612 = vmax.f32 %v2538, 0.0
      %v2613 = vmax.f32 %v2541, 0.0
      %v2614 = vmax.f32 %v2546, 0.0
      %v2615 = vmax.f32 %v2549, 0.0
      %2616 = vrot.lane.b32.xlu0 %v367, 103
      %v2617 = vpop.permute.xlu0 %2616
      %2618 = vrot.lane.b32.xlu0 %v368, 103
      %v2619 = vpop.permute.xlu0 %2618
      %2620 = vrot.lane.b32.xlu0 %v369, 103
      %v2621 = vpop.permute.xlu0 %2620
      %2622 = vrot.lane.b32.xlu0 %v370, 103
      %v2623 = vpop.permute.xlu0 %2622
      %2624 = vrot.lane.b32.xlu0 %v371, 103
      %v2625 = vpop.permute.xlu0 %2624
      %2626 = vrot.lane.b32.xlu0 %v372, 103
      %v2627 = vpop.permute.xlu0 %2626
      %2628 = vrot.lane.b32.xlu0 %v373, 103
      %v2629 = vpop.permute.xlu0 %2628
      %2630 = vrot.lane.b32.xlu0 %v374, 103
      %v2631 = vpop.permute.xlu0 %2630
      %2632 = vrot.lane.b32.xlu0 %v375, 103
      %v2633 = vpop.permute.xlu0 %2632
      %2634 = vrot.lane.b32.xlu0 %v376, 103
      %v2635 = vpop.permute.xlu0 %2634
      %2636 = vrot.lane.b32.xlu0 %v377, 103
      %v2637 = vpop.permute.xlu0 %2636
      %2638 = vrot.lane.b32.xlu0 %v378, 103
      %v2639 = vpop.permute.xlu0 %2638
      %2640 = vrot.lane.b32.xlu0 %v379, 103
      %v2641 = vpop.permute.xlu0 %2640
      %2642 = vrot.lane.b32.xlu0 %v380, 103
      %v2643 = vpop.permute.xlu0 %2642
      %2644 = vrot.lane.b32.xlu0 %v381, 103
      %v2645 = vpop.permute.xlu0 %2644
      %2646 = vrot.lane.b32.xlu0 %v382, 103
      %v2647 = vpop.permute.xlu0 %2646
      %2648 = vrot.lane.b32.xlu0 %v383, 103
      %v2649 = vpop.permute.xlu0 %2648
      %2650 = vrot.lane.b32.xlu0 %v384, 103
      %v2651 = vpop.permute.xlu0 %2650
      %2652 = vrot.lane.b32.xlu0 %v385, 103
      %v2653 = vpop.permute.xlu0 %2652
      %2654 = vrot.lane.b32.xlu0 %v386, 103
      %v2655 = vpop.permute.xlu0 %2654
      %2656 = vrot.lane.b32.xlu0 %v387, 103
      %v2657 = vpop.permute.xlu0 %2656
      %2658 = vrot.lane.b32.xlu0 %v388, 103
      %v2659 = vpop.permute.xlu0 %2658
      %2660 = vrot.lane.b32.xlu0 %v389, 103
      %v2661 = vpop.permute.xlu0 %2660
      %2662 = vrot.lane.b32.xlu0 %v390, 103
      %v2663 = vpop.permute.xlu0 %2662
      %2664 = vrot.lane.b32.xlu0 %v391, 103
      %v2665 = vpop.permute.xlu0 %2664
      %2666 = vrot.lane.b32.xlu0 %v392, 103
      %v2667 = vpop.permute.xlu0 %2666
      %2668 = vrot.lane.b32.xlu0 %v393, 103
      %v2669 = vpop.permute.xlu0 %2668
      %2670 = vrot.lane.b32.xlu0 %v394, 103
      %v2671 = vpop.permute.xlu0 %2670
      %2672 = vrot.lane.b32.xlu0 %v395, 103
      %v2673 = vpop.permute.xlu0 %2672
      %2674 = vrot.lane.b32.xlu0 %v396, 103
      %v2675 = vpop.permute.xlu0 %2674
      %2676 = vrot.lane.b32.xlu0 %v397, 103
      %v2677 = vpop.permute.xlu0 %2676
      %2678 = vrot.lane.b32.xlu0 %v398, 103
      %v2679 = vpop.permute.xlu0 %2678
      %2680 = vrot.lane.b32.xlu0 %v399, 103
      %v2681 = vpop.permute.xlu0 %2680
      %2682 = vrot.lane.b32.xlu0 %v400, 103
      %v2683 = vpop.permute.xlu0 %2682
      %2684 = vrot.lane.b32.xlu0 %v401, 103
      %v2685 = vpop.permute.xlu0 %2684
      %2686 = vrot.lane.b32.xlu0 %v402, 103
      %v2687 = vpop.permute.xlu0 %2686
      %2688 = vrot.lane.b32.xlu0 %v403, 103
      %v2689 = vpop.permute.xlu0 %2688
      %2690 = vrot.lane.b32.xlu0 %v404, 103
      %v2691 = vpop.permute.xlu0 %2690
      %2692 = vrot.lane.b32.xlu0 %v405, 103
      %v2693 = vpop.permute.xlu0 %2692
      %2694 = vrot.lane.b32.xlu0 %v406, 103
      %v2695 = vpop.permute.xlu0 %2694
      %2696 = vrot.lane.b32.xlu0 %v407, 103
      %v2697 = vpop.permute.xlu0 %2696
      %2698 = vrot.lane.b32.xlu0 %v408, 103
      %v2699 = vpop.permute.xlu0 %2698
      %2700 = vrot.lane.b32.xlu0 %v409, 103
      %v2701 = vpop.permute.xlu0 %2700
      %2702 = vrot.lane.b32.xlu0 %v410, 103
      %v2703 = vpop.permute.xlu0 %2702
      %2704 = vrot.lane.b32.xlu0 %v411, 103
      %v2705 = vpop.permute.xlu0 %2704
      %2706 = vrot.lane.b32.xlu0 %v412, 103
      %v2707 = vpop.permute.xlu0 %2706
      %2708 = vrot.lane.b32.xlu0 %v413, 103
      %v2709 = vpop.permute.xlu0 %2708
      %2710 = vrot.lane.b32.xlu0 %v414, 103
      %v2711 = vpop.permute.xlu0 %2710
      %2712 = vrot.lane.b32.xlu0 %v415, 103
      %v2713 = vpop.permute.xlu0 %2712
      %2714 = vrot.lane.b32.xlu0 %v416, 103
      %v2715 = vpop.permute.xlu0 %2714
      %2716 = vrot.lane.b32.xlu0 %v417, 103
      %v2717 = vpop.permute.xlu0 %2716
      %2718 = vrot.lane.b32.xlu0 %v418, 103
      %v2719 = vpop.permute.xlu0 %2718
      %2720 = vrot.lane.b32.xlu0 %v419, 103
      %v2721 = vpop.permute.xlu0 %2720
      %2722 = vrot.lane.b32.xlu0 %v420, 103
      %v2723 = vpop.permute.xlu0 %2722
      %2724 = vrot.lane.b32.xlu0 %v421, 103
      %v2725 = vpop.permute.xlu0 %2724
      %2726 = vrot.lane.b32.xlu0 %v422, 103
      %v2727 = vpop.permute.xlu0 %2726
      %2728 = vrot.lane.b32.xlu0 %v423, 103
      %v2729 = vpop.permute.xlu0 %2728
      %2730 = vrot.lane.b32.xlu0 %v424, 103
      %v2731 = vpop.permute.xlu0 %2730
      %2732 = vrot.lane.b32.xlu0 %v425, 103
      %v2733 = vpop.permute.xlu0 %2732
      %2734 = vrot.lane.b32.xlu0 %v426, 103
      %v2735 = vpop.permute.xlu0 %2734
      %2736 = vrot.lane.b32.xlu0 %v427, 103
      %v2737 = vpop.permute.xlu0 %2736
      %2738 = vrot.lane.b32.xlu0 %v428, 103
      %v2739 = vpop.permute.xlu0 %2738
      %2740 = vrot.lane.b32.xlu0 %v429, 103
      %v2741 = vpop.permute.xlu0 %2740
      %2742 = vrot.lane.b32.xlu0 %v430, 103
      %v2743 = vpop.permute.xlu0 %2742
      %v2744 = vrot.slane %v2617, 4
      %v2745 = vrot.slane %v2619, 4
      %v2746 = vrot.slane %v2621, 4
      %v2747 = vrot.slane %v2623, 4
      %v2748 = vrot.slane %v2625, 4
      %v2749 = vrot.slane %v2627, 4
      %v2750 = vrot.slane %v2629, 4
      %v2751 = vrot.slane %v2631, 4
      %v2752 = vrot.slane %v2633, 4
      %v2753 = vrot.slane %v2635, 4
      %v2754 = vrot.slane %v2637, 4
      %v2755 = vrot.slane %v2639, 4
      %v2756 = vrot.slane %v2641, 4
      %v2757 = vrot.slane %v2643, 4
      %v2758 = vrot.slane %v2645, 4
      %v2759 = vrot.slane %v2647, 4
      %v2760 = vrot.slane %v2649, 4
      %v2761 = vrot.slane %v2651, 4
      %v2762 = vrot.slane %v2653, 4
      %v2763 = vrot.slane %v2655, 4
      %v2764 = vrot.slane %v2657, 4
      %v2765 = vrot.slane %v2659, 4
      %v2766 = vrot.slane %v2661, 4
      %v2767 = vrot.slane %v2663, 4
      %v2768 = vrot.slane %v2665, 4
      %v2769 = vrot.slane %v2667, 4
      %v2770 = vrot.slane %v2669, 4
      %v2771 = vrot.slane %v2671, 4
      %v2772 = vrot.slane %v2673, 4
      %v2773 = vrot.slane %v2675, 4
      %v2774 = vrot.slane %v2677, 4
      %v2775 = vrot.slane %v2679, 4
      %v2776 = vrot.slane %v2681, 4
      %v2777 = vrot.slane %v2683, 4
      %v2778 = vrot.slane %v2685, 4
      %v2779 = vrot.slane %v2687, 4
      %v2780 = vrot.slane %v2689, 4
      %v2781 = vrot.slane %v2691, 4
      %v2782 = vrot.slane %v2693, 4
      %v2783 = vrot.slane %v2695, 4
      %v2784 = vrot.slane %v2697, 4
      %v2785 = vrot.slane %v2699, 4
      %v2786 = vrot.slane %v2701, 4
      %v2787 = vrot.slane %v2703, 4
      %v2788 = vrot.slane %v2705, 4
      %v2789 = vrot.slane %v2707, 4
      %v2790 = vrot.slane %v2709, 4
      %v2791 = vrot.slane %v2711, 4
      %v2792 = vrot.slane %v2713, 4
      %v2793 = vrot.slane %v2715, 4
      %v2794 = vrot.slane %v2717, 4
      %v2795 = vrot.slane %v2719, 4
      %v2796 = vrot.slane %v2721, 4
      %v2797 = vrot.slane %v2723, 4
      %v2798 = vrot.slane %v2725, 4
      %v2799 = vrot.slane %v2727, 4
      %v2800 = vrot.slane %v2729, 4
      %v2801 = vrot.slane %v2731, 4
      %v2802 = vrot.slane %v2733, 4
      %v2803 = vrot.slane %v2735, 4
      %v2804 = vrot.slane %v2737, 4
      %v2805 = vrot.slane %v2739, 4
      %v2806 = vrot.slane %v2741, 4
      %v2807 = vrot.slane %v2743, 4
      %v2872 = vunpack.c.l.bf16 %v2744
      %v2873 = vunpack.c.l.bf16 %v2745
      %v2874 = vunpack.c.l.bf16 %v2746
      %v2875 = vunpack.c.l.bf16 %v2747
      %v2876 = vunpack.c.l.bf16 %v2748
      %v2877 = vunpack.c.l.bf16 %v2749
      %v2878 = vunpack.c.l.bf16 %v2750
      %v2879 = vunpack.c.l.bf16 %v2751
      %v2880 = vunpack.c.l.bf16 %v2752
      %v2881 = vunpack.c.l.bf16 %v2753
      %v2882 = vunpack.c.l.bf16 %v2754
      %v2883 = vunpack.c.l.bf16 %v2755
      %v2884 = vunpack.c.l.bf16 %v2756
      %v2885 = vunpack.c.l.bf16 %v2757
      %v2886 = vunpack.c.l.bf16 %v2758
      %v2887 = vunpack.c.l.bf16 %v2759
      %v2888 = vunpack.c.l.bf16 %v2760
      %v2889 = vunpack.c.l.bf16 %v2761
      %v2890 = vunpack.c.l.bf16 %v2762
      %v2891 = vunpack.c.l.bf16 %v2763
      %v2892 = vunpack.c.l.bf16 %v2764
      %v2893 = vunpack.c.l.bf16 %v2765
      %v2894 = vunpack.c.l.bf16 %v2766
      %v2895 = vunpack.c.l.bf16 %v2767
      %v2896 = vunpack.c.l.bf16 %v2768
      %v2897 = vunpack.c.l.bf16 %v2769
      %v2898 = vunpack.c.l.bf16 %v2770
      %v2899 = vunpack.c.l.bf16 %v2771
      %v2900 = vunpack.c.l.bf16 %v2772
      %v2901 = vunpack.c.l.bf16 %v2773
      %v2902 = vunpack.c.l.bf16 %v2774
      %v2903 = vunpack.c.l.bf16 %v2775
      %v2904 = vunpack.c.l.bf16 %v2776
      %v2905 = vunpack.c.l.bf16 %v2777
      %v2906 = vunpack.c.l.bf16 %v2778
      %v2907 = vunpack.c.l.bf16 %v2779
      %v2908 = vunpack.c.l.bf16 %v2780
      %v2909 = vunpack.c.l.bf16 %v2781
      %v2910 = vunpack.c.l.bf16 %v2782
      %v2911 = vunpack.c.l.bf16 %v2783
      %v2912 = vunpack.c.l.bf16 %v2784
      %v2913 = vunpack.c.l.bf16 %v2785
      %v2914 = vunpack.c.l.bf16 %v2786
      %v2915 = vunpack.c.l.bf16 %v2787
      %v2916 = vunpack.c.l.bf16 %v2788
      %v2917 = vunpack.c.l.bf16 %v2789
      %v2918 = vunpack.c.l.bf16 %v2790
      %v2919 = vunpack.c.l.bf16 %v2791
      %v2920 = vunpack.c.l.bf16 %v2792
      %v2921 = vunpack.c.l.bf16 %v2793
      %v2922 = vunpack.c.l.bf16 %v2794
      %v2923 = vunpack.c.l.bf16 %v2795
      %v2924 = vunpack.c.l.bf16 %v2796
      %v2925 = vunpack.c.l.bf16 %v2797
      %v2926 = vunpack.c.l.bf16 %v2798
      %v2927 = vunpack.c.l.bf16 %v2799
      %v2928 = vunpack.c.l.bf16 %v2800
      %v2929 = vunpack.c.l.bf16 %v2801
      %v2930 = vunpack.c.l.bf16 %v2802
      %v2931 = vunpack.c.l.bf16 %v2803
      %v2932 = vunpack.c.l.bf16 %v2804
      %v2933 = vunpack.c.l.bf16 %v2805
      %v2934 = vunpack.c.l.bf16 %v2806
      %v2935 = vunpack.c.l.bf16 %v2807
      %v2936 = vld [vmem:[%s6] sm:$0x7]
      %v2937 = vpack.c.bf16 %v2553, %v2552
      %v2938 = vpack.c.bf16 %v2555, %v2554
      %v2939 = vpack.c.bf16 %v2557, %v2556
      %v2940 = vpack.c.bf16 %v2559, %v2558
      %v2941 = vpack.c.bf16 %v2561, %v2560
      %v2942 = vpack.c.bf16 %v2563, %v2562
      %v2943 = vpack.c.bf16 %v2565, %v2564
      %v2944 = vpack.c.bf16 %v2567, %v2566
      %v2945 = vpack.c.bf16 %v2569, %v2568
      %v2946 = vpack.c.bf16 %v2571, %v2570
      %v2947 = vpack.c.bf16 %v2573, %v2572
      %v2948 = vpack.c.bf16 %v2575, %v2574
      %v2949 = vpack.c.bf16 %v2577, %v2576
      %v2950 = vpack.c.bf16 %v2579, %v2578
      %v2951 = vpack.c.bf16 %v2581, %v2580
      %v2952 = vpack.c.bf16 %v2583, %v2582
      %v2953 = vpack.c.bf16 %v2585, %v2584
      %v2954 = vpack.c.bf16 %v2587, %v2586
      %v2955 = vpack.c.bf16 %v2589, %v2588
      %v2956 = vpack.c.bf16 %v2591, %v2590
      %v2957 = vpack.c.bf16 %v2593, %v2592
      %v2958 = vpack.c.bf16 %v2595, %v2594
      %v2959 = vpack.c.bf16 %v2597, %v2596
      %v2960 = vpack.c.bf16 %v2599, %v2598
      %v2961 = vpack.c.bf16 %v2601, %v2600
      %v2962 = vpack.c.bf16 %v2603, %v2602
      %v2963 = vpack.c.bf16 %v2605, %v2604
      %v2964 = vpack.c.bf16 %v2607, %v2606
      %v2965 = vpack.c.bf16 %v2609, %v2608
      %v2966 = vpack.c.bf16 %v2611, %v2610
      %v2967 = vpack.c.bf16 %v2613, %v2612
      %v2968 = vpack.c.bf16 %v2615, %v2614
      %v2969 = vld [vmem:[%s5] sm:$0xf]
      %v2970 = vld [vmem:[%s5 + $0x4] sm:$0xf]
      %v2971 = vld [vmem:[%s5 + $0x8] sm:$0xf]
      %v2972 = vld [vmem:[%s5 + $0xc] sm:$0xf]
      %v2973 = vld [vmem:[%s5 + $0x10] sm:$0xf]
      %v2974 = vld [vmem:[%s5 + $0x14] sm:$0xf]
      %v2975 = vld [vmem:[%s5 + $0x18] sm:$0xf]
      %v2976 = vld [vmem:[%s5 + $0x1c] sm:$0xf]
      %v2977 = vld [vmem:[%s5 + $0x20] sm:$0xf]
      %v2978 = vld [vmem:[%s5 + $0x24] sm:$0xf]
      %v2979 = vld [vmem:[%s5 + $0x28] sm:$0xf]
      %v2980 = vld [vmem:[%s5 + $0x2c] sm:$0xf]
      %v2981 = vld [vmem:[%s5 + $0x30] sm:$0xf]
      %v2982 = vld [vmem:[%s5 + $0x34] sm:$0xf]
      %v2983 = vld [vmem:[%s5 + $0x38] sm:$0xf]
      %v2984 = vld [vmem:[%s5 + $0x3c] sm:$0xf]
      %2986 = vset.pattern.permute.xlu0 0
      %2987 = vperm.xlu0 %2986, %v2872
      %v2988 = vpop.permute.xlu0 %2987
      %2991 = vset.pattern.permute.xlu0 0
      %2992 = vperm.xlu0 %2991, %v2873
      %v2993 = vpop.permute.xlu0 %2992
      %2996 = vset.pattern.permute.xlu0 0
      %2997 = vperm.xlu0 %2996, %v2874
      %v2998 = vpop.permute.xlu0 %2997
      %3001 = vset.pattern.permute.xlu0 0
      %3002 = vperm.xlu0 %3001, %v2875
      %v3003 = vpop.permute.xlu0 %3002
      %3006 = vset.pattern.permute.xlu0 0
      %3007 = vperm.xlu0 %3006, %v2876
      %v3008 = vpop.permute.xlu0 %3007
      %3011 = vset.pattern.permute.xlu0 0
      %3012 = vperm.xlu0 %3011, %v2877
      %v3013 = vpop.permute.xlu0 %3012
      %3016 = vset.pattern.permute.xlu0 0
      %3017 = vperm.xlu0 %3016, %v2878
      %v3018 = vpop.permute.xlu0 %3017
      %3021 = vset.pattern.permute.xlu0 0
      %3022 = vperm.xlu0 %3021, %v2879
      %v3023 = vpop.permute.xlu0 %3022
      %3026 = vset.pattern.permute.xlu0 0
      %3027 = vperm.xlu0 %3026, %v2880
      %v3028 = vpop.permute.xlu0 %3027
      %3031 = vset.pattern.permute.xlu0 0
      %3032 = vperm.xlu0 %3031, %v2881
      %v3033 = vpop.permute.xlu0 %3032
      %3036 = vset.pattern.permute.xlu0 0
      %3037 = vperm.xlu0 %3036, %v2882
      %v3038 = vpop.permute.xlu0 %3037
      %3041 = vset.pattern.permute.xlu0 0
      %3042 = vperm.xlu0 %3041, %v2883
      %v3043 = vpop.permute.xlu0 %3042
      %3046 = vset.pattern.permute.xlu0 0
      %3047 = vperm.xlu0 %3046, %v2884
      %v3048 = vpop.permute.xlu0 %3047
      %3051 = vset.pattern.permute.xlu0 0
      %3052 = vperm.xlu0 %3051, %v2885
      %v3053 = vpop.permute.xlu0 %3052
      %3056 = vset.pattern.permute.xlu0 0
      %3057 = vperm.xlu0 %3056, %v2886
      %v3058 = vpop.permute.xlu0 %3057
      %3061 = vset.pattern.permute.xlu0 0
      %3062 = vperm.xlu0 %3061, %v2887
      %v3063 = vpop.permute.xlu0 %3062
      %3066 = vset.pattern.permute.xlu0 0
      %3067 = vperm.xlu0 %3066, %v2888
      %v3068 = vpop.permute.xlu0 %3067
      %3071 = vset.pattern.permute.xlu0 0
      %3072 = vperm.xlu0 %3071, %v2889
      %v3073 = vpop.permute.xlu0 %3072
      %3076 = vset.pattern.permute.xlu0 0
      %3077 = vperm.xlu0 %3076, %v2890
      %v3078 = vpop.permute.xlu0 %3077
      %3081 = vset.pattern.permute.xlu0 0
      %3082 = vperm.xlu0 %3081, %v2891
      %v3083 = vpop.permute.xlu0 %3082
      %3086 = vset.pattern.permute.xlu0 0
      %3087 = vperm.xlu0 %3086, %v2892
      %v3088 = vpop.permute.xlu0 %3087
      %3091 = vset.pattern.permute.xlu0 0
      %3092 = vperm.xlu0 %3091, %v2893
      %v3093 = vpop.permute.xlu0 %3092
      %3096 = vset.pattern.permute.xlu0 0
      %3097 = vperm.xlu0 %3096, %v2894
      %v3098 = vpop.permute.xlu0 %3097
      %3101 = vset.pattern.permute.xlu0 0
      %3102 = vperm.xlu0 %3101, %v2895
      %v3103 = vpop.permute.xlu0 %3102
      %3106 = vset.pattern.permute.xlu0 0
      %3107 = vperm.xlu0 %3106, %v2896
      %v3108 = vpop.permute.xlu0 %3107
      %3111 = vset.pattern.permute.xlu0 0
      %3112 = vperm.xlu0 %3111, %v2897
      %v3113 = vpop.permute.xlu0 %3112
      %3116 = vset.pattern.permute.xlu0 0
      %3117 = vperm.xlu0 %3116, %v2898
      %v3118 = vpop.permute.xlu0 %3117
      %3121 = vset.pattern.permute.xlu0 0
      %3122 = vperm.xlu0 %3121, %v2899
      %v3123 = vpop.permute.xlu0 %3122
      %3126 = vset.pattern.permute.xlu0 0
      %3127 = vperm.xlu0 %3126, %v2900
      %v3128 = vpop.permute.xlu0 %3127
      %3131 = vset.pattern.permute.xlu0 0
      %3132 = vperm.xlu0 %3131, %v2901
      %v3133 = vpop.permute.xlu0 %3132
      %3136 = vset.pattern.permute.xlu0 0
      %3137 = vperm.xlu0 %3136, %v2902
      %v3138 = vpop.permute.xlu0 %3137
      %3141 = vset.pattern.permute.xlu0 0
      %3142 = vperm.xlu0 %3141, %v2903
      %v3143 = vpop.permute.xlu0 %3142
      %3146 = vset.pattern.permute.xlu0 0
      %3147 = vperm.xlu0 %3146, %v2904
      %v3148 = vpop.permute.xlu0 %3147
      %3151 = vset.pattern.permute.xlu0 0
      %3152 = vperm.xlu0 %3151, %v2905
      %v3153 = vpop.permute.xlu0 %3152
      %3156 = vset.pattern.permute.xlu0 0
      %3157 = vperm.xlu0 %3156, %v2906
      %v3158 = vpop.permute.xlu0 %3157
      %3161 = vset.pattern.permute.xlu0 0
      %3162 = vperm.xlu0 %3161, %v2907
      %v3163 = vpop.permute.xlu0 %3162
      %3166 = vset.pattern.permute.xlu0 0
      %3167 = vperm.xlu0 %3166, %v2908
      %v3168 = vpop.permute.xlu0 %3167
      %3171 = vset.pattern.permute.xlu0 0
      %3172 = vperm.xlu0 %3171, %v2909
      %v3173 = vpop.permute.xlu0 %3172
      %3176 = vset.pattern.permute.xlu0 0
      %3177 = vperm.xlu0 %3176, %v2910
      %v3178 = vpop.permute.xlu0 %3177
      %3181 = vset.pattern.permute.xlu0 0
      %3182 = vperm.xlu0 %3181, %v2911
      %v3183 = vpop.permute.xlu0 %3182
      %3186 = vset.pattern.permute.xlu0 0
      %3187 = vperm.xlu0 %3186, %v2912
      %v3188 = vpop.permute.xlu0 %3187
      %3191 = vset.pattern.permute.xlu0 0
      %3192 = vperm.xlu0 %3191, %v2913
      %v3193 = vpop.permute.xlu0 %3192
      %3196 = vset.pattern.permute.xlu0 0
      %3197 = vperm.xlu0 %3196, %v2914
      %v3198 = vpop.permute.xlu0 %3197
      %3201 = vset.pattern.permute.xlu0 0
      %3202 = vperm.xlu0 %3201, %v2915
      %v3203 = vpop.permute.xlu0 %3202
      %3206 = vset.pattern.permute.xlu0 0
      %3207 = vperm.xlu0 %3206, %v2916
      %v3208 = vpop.permute.xlu0 %3207
      %3211 = vset.pattern.permute.xlu0 0
      %3212 = vperm.xlu0 %3211, %v2917
      %v3213 = vpop.permute.xlu0 %3212
      %3216 = vset.pattern.permute.xlu0 0
      %3217 = vperm.xlu0 %3216, %v2918
      %v3218 = vpop.permute.xlu0 %3217
      %3221 = vset.pattern.permute.xlu0 0
      %3222 = vperm.xlu0 %3221, %v2919
      %v3223 = vpop.permute.xlu0 %3222
      %3226 = vset.pattern.permute.xlu0 0
      %3227 = vperm.xlu0 %3226, %v2920
      %v3228 = vpop.permute.xlu0 %3227
      %3231 = vset.pattern.permute.xlu0 0
      %3232 = vperm.xlu0 %3231, %v2921
      %v3233 = vpop.permute.xlu0 %3232
      %3236 = vset.pattern.permute.xlu0 0
      %3237 = vperm.xlu0 %3236, %v2922
      %v3238 = vpop.permute.xlu0 %3237
      %3241 = vset.pattern.permute.xlu0 0
      %3242 = vperm.xlu0 %3241, %v2923
      %v3243 = vpop.permute.xlu0 %3242
      %3246 = vset.pattern.permute.xlu0 0
      %3247 = vperm.xlu0 %3246, %v2924
      %v3248 = vpop.permute.xlu0 %3247
      %3251 = vset.pattern.permute.xlu0 0
      %3252 = vperm.xlu0 %3251, %v2925
      %v3253 = vpop.permute.xlu0 %3252
      %3256 = vset.pattern.permute.xlu0 0
      %3257 = vperm.xlu0 %3256, %v2926
      %v3258 = vpop.permute.xlu0 %3257
      %3261 = vset.pattern.permute.xlu0 0
      %3262 = vperm.xlu0 %3261, %v2927
      %v3263 = vpop.permute.xlu0 %3262
      %3266 = vset.pattern.permute.xlu0 0
      %3267 = vperm.xlu0 %3266, %v2928
      %v3268 = vpop.permute.xlu0 %3267
      %3271 = vset.pattern.permute.xlu0 0
      %3272 = vperm.xlu0 %3271, %v2929
      %v3273 = vpop.permute.xlu0 %3272
      %3276 = vset.pattern.permute.xlu0 0
      %3277 = vperm.xlu0 %3276, %v2930
      %v3278 = vpop.permute.xlu0 %3277
      %3281 = vset.pattern.permute.xlu0 0
      %3282 = vperm.xlu0 %3281, %v2931
      %v3283 = vpop.permute.xlu0 %3282
      %3286 = vset.pattern.permute.xlu0 0
      %3287 = vperm.xlu0 %3286, %v2932
      %v3288 = vpop.permute.xlu0 %3287
      %3291 = vset.pattern.permute.xlu0 0
      %3292 = vperm.xlu0 %3291, %v2933
      %v3293 = vpop.permute.xlu0 %3292
      %3296 = vset.pattern.permute.xlu0 0
      %3297 = vperm.xlu0 %3296, %v2934
      %v3298 = vpop.permute.xlu0 %3297
      %3301 = vset.pattern.permute.xlu0 0
      %3302 = vperm.xlu0 %3301, %v2935
      %v3303 = vpop.permute.xlu0 %3302
      %v3305 = vlaneseq
      %v3306 = vshrl.u32 %v3305, 7
      %v3307 = vsub.s32 0, %v3306
      %v3308 = vrot.slane %v2936, %v3307
      %v3309 = vmul.f32 %v2988, %v3308
      %v3310 = vmul.f32 %v2993, %v3308
      %v3311 = vmul.f32 %v2998, %v3308
      %v3312 = vmul.f32 %v3003, %v3308
      %v3313 = vmul.f32 %v3008, %v3308
      %v3314 = vmul.f32 %v3013, %v3308
      %v3315 = vmul.f32 %v3018, %v3308
      %v3316 = vmul.f32 %v3023, %v3308
      %v3317 = vmul.f32 %v3028, %v3308
      %v3318 = vmul.f32 %v3033, %v3308
      %v3319 = vmul.f32 %v3038, %v3308
      %v3320 = vmul.f32 %v3043, %v3308
      %v3321 = vmul.f32 %v3048, %v3308
      %v3322 = vmul.f32 %v3053, %v3308
      %v3323 = vmul.f32 %v3058, %v3308
      %v3324 = vmul.f32 %v3063, %v3308
      %v3325 = vmul.f32 %v3068, %v3308
      %v3326 = vmul.f32 %v3073, %v3308
      %v3327 = vmul.f32 %v3078, %v3308
      %v3328 = vmul.f32 %v3083, %v3308
      %v3329 = vmul.f32 %v3088, %v3308
      %v3330 = vmul.f32 %v3093, %v3308
      %v3331 = vmul.f32 %v3098, %v3308
      %v3332 = vmul.f32 %v3103, %v3308
      %v3333 = vmul.f32 %v3108, %v3308
      %v3334 = vmul.f32 %v3113, %v3308
      %v3335 = vmul.f32 %v3118, %v3308
      %v3336 = vmul.f32 %v3123, %v3308
      %v3337 = vmul.f32 %v3128, %v3308
      %v3338 = vmul.f32 %v3133, %v3308
      %v3339 = vmul.f32 %v3138, %v3308
      %v3340 = vmul.f32 %v3143, %v3308
      %v3341 = vmul.f32 %v3148, %v3308
      %v3342 = vmul.f32 %v3153, %v3308
      %v3343 = vmul.f32 %v3158, %v3308
      %v3344 = vmul.f32 %v3163, %v3308
      %v3345 = vmul.f32 %v3168, %v3308
      %v3346 = vmul.f32 %v3173, %v3308
      %v3347 = vmul.f32 %v3178, %v3308
      %v3348 = vmul.f32 %v3183, %v3308
      %v3349 = vmul.f32 %v3188, %v3308
      %v3350 = vmul.f32 %v3193, %v3308
      %v3351 = vmul.f32 %v3198, %v3308
      %v3352 = vmul.f32 %v3203, %v3308
      %v3353 = vmul.f32 %v3208, %v3308
      %v3354 = vmul.f32 %v3213, %v3308
      %v3355 = vmul.f32 %v3218, %v3308
      %v3356 = vmul.f32 %v3223, %v3308
      %v3357 = vmul.f32 %v3228, %v3308
      %v3358 = vmul.f32 %v3233, %v3308
      %v3359 = vmul.f32 %v3238, %v3308
      %v3360 = vmul.f32 %v3243, %v3308
      %v3361 = vmul.f32 %v3248, %v3308
      %v3362 = vmul.f32 %v3253, %v3308
      %v3363 = vmul.f32 %v3258, %v3308
      %v3364 = vmul.f32 %v3263, %v3308
      %v3365 = vmul.f32 %v3268, %v3308
      %v3366 = vmul.f32 %v3273, %v3308
      %v3367 = vmul.f32 %v3278, %v3308
      %v3368 = vmul.f32 %v3283, %v3308
      %v3369 = vmul.f32 %v3288, %v3308
      %v3370 = vmul.f32 %v3293, %v3308
      %v3371 = vmul.f32 %v3298, %v3308
      %v3372 = vmul.f32 %v3303, %v3308
      %v3389 = vunpack.c.l.b16 %v2969
      %v3390 = vunpack.c.l.b16 %v2970
      %v3391 = vunpack.c.l.b16 %v2971
      %v3392 = vunpack.c.l.b16 %v2972
      %v3393 = vunpack.c.l.b16 %v2973
      %v3394 = vunpack.c.l.b16 %v2974
      %v3395 = vunpack.c.l.b16 %v2975
      %v3396 = vunpack.c.l.b16 %v2976
      %v3397 = vunpack.c.l.b16 %v2977
      %v3398 = vunpack.c.l.b16 %v2978
      %v3399 = vunpack.c.l.b16 %v2979
      %v3400 = vunpack.c.l.b16 %v2980
      %v3401 = vunpack.c.l.b16 %v2981
      %v3402 = vunpack.c.l.b16 %v2982
      %v3403 = vunpack.c.l.b16 %v2983
      %v3404 = vunpack.c.l.b16 %v2984
      %v3405 = vpack.c.b16 %v3390, %v3389
      %v3406 = vpack.c.b16 %v3392, %v3391
      %v3407 = vpack.c.b16 %v3394, %v3393
      %v3408 = vpack.c.b16 %v3396, %v3395
      %v3409 = vpack.c.b16 %v3398, %v3397
      %v3410 = vpack.c.b16 %v3400, %v3399
      %v3411 = vpack.c.b16 %v3402, %v3401
      %v3412 = vpack.c.b16 %v3404, %v3403
      %3421 = vmatprep.subr.bf16.mxu0 0
      %3422 = vmatpush1.bf16.msra.mxu0 %v3405
      %3423 = vmatprep.subr.bf16.mxu0 0
      %3424 = vmatpush1.bf16.msra.mxu0 %v3406
      %3425 = vmatprep.subr.bf16.mxu0 0
      %3426 = vmatpush1.bf16.msra.mxu0 %v3407
      %3427 = vmatprep.subr.bf16.mxu0 0
      %3428 = vmatpush1.bf16.msra.mxu0 %v3408
      %3429 = vmatprep.subr.bf16.mxu0 0
      %3430 = vmatpush1.bf16.msra.mxu0 %v3409
      %3431 = vmatprep.subr.bf16.mxu0 0
      %3432 = vmatpush1.bf16.msra.mxu0 %v3410
      %3433 = vmatprep.subr.bf16.mxu0 0
      %3434 = vmatpush1.bf16.msra.mxu0 %v3411
      %3435 = vmatprep.subr.bf16.mxu0 0
      %3436 = vmatpush1.bf16.msra.mxu0 %v3412
      %3437 = vmatprep.subr.bf16.mxu0 0
      %3438 = vmatpush1.bf16.msra.mxu0 0
      %3439 = vmatprep.subr.bf16.mxu0 0
      %3440 = vmatpush1.bf16.msra.mxu0 0
      %3441 = vmatprep.subr.bf16.mxu0 0
      %3442 = vmatpush1.bf16.msra.mxu0 0
      %3443 = vmatprep.subr.bf16.mxu0 0
      %3444 = vmatpush1.bf16.msra.mxu0 0
      %3445 = vmatprep.subr.bf16.mxu0 0
      %3446 = vmatpush1.bf16.msra.mxu0 0
      %3447 = vmatprep.subr.bf16.mxu0 0
      %3448 = vmatpush1.bf16.msra.mxu0 0
      %3449 = vmatprep.subr.bf16.mxu0 0
      %3450 = vmatpush1.bf16.msra.mxu0 0
      %3451 = vmatprep.subr.bf16.mxu0 0
      %3452 = vmatpush1.bf16.msra.mxu0 0
      %3453 = vmatprep.mubr.bf16.mxu0 0
      %3454 = vmatmul.mubr.bf16.gmra.mrb[0].mxu0 %v2937
      %v3455 = vpop.f32.mrb[0].mxu0
      %v3456 = vadd.f32 %v3309, %v3455
      %v3457 = vpop.f32.mrb[0].mxu0
      %v3458 = vpop.f32.mrb[0].mxu0
      %v3459 = vadd.f32 %v3310, %v3458
      %v3460 = vpop.f32.mrb[0].mxu0
      %3461 = vmatprep.mubr.bf16.mxu0 0
      %3462 = vmatmul.mubr.bf16.gmra.mrb[0].mxu0 %v2938
      %v3463 = vpop.f32.mrb[0].mxu0
      %v3464 = vadd.f32 %v3311, %v3463
      %v3465 = vpop.f32.mrb[0].mxu0
      %v3466 = vpop.f32.mrb[0].mxu0
      %v3467 = vadd.f32 %v3312, %v3466
      %v3468 = vpop.f32.mrb[0].mxu0
      %3469 = vmatprep.mubr.bf16.mxu0 0
      %3470 = vmatmul.mubr.bf16.gmra.mrb[0].mxu0 %v2939
      %v3471 = vpop.f32.mrb[0].mxu0
      %v3472 = vadd.f32 %v3313, %v3471
      %v3473 = vpop.f32.mrb[0].mxu0
      %v3474 = vpop.f32.mrb[0].mxu0
      %v3475 = vadd.f32 %v3314, %v3474
      %v3476 = vpop.f32.mrb[0].mxu0
      %3477 = vmatprep.mubr.bf16.mxu0 0
      %3478 = vmatmul.mubr.bf16.gmra.mrb[0].mxu0 %v2940
      %v3479 = vpop.f32.mrb[0].mxu0
      %v3480 = vadd.f32 %v3315, %v3479
      %v3481 = vpop.f32.mrb[0].mxu0
      %v3482 = vpop.f32.mrb[0].mxu0
      %v3483 = vadd.f32 %v3316, %v3482
      %v3484 = vpop.f32.mrb[0].mxu0
      %3485 = vmatprep.mubr.bf16.mxu0 0
      %3486 = vmatmul.mubr.bf16.gmra.mrb[0].mxu0 %v2941
      %v3487 = vpop.f32.mrb[0].mxu0
      %v3488 = vadd.f32 %v3317, %v3487
      %v3489 = vpop.f32.mrb[0].mxu0
      %v3490 = vpop.f32.mrb[0].mxu0
      %v3491 = vadd.f32 %v3318, %v3490
      %v3492 = vpop.f32.mrb[0].mxu0
      %3493 = vmatprep.mubr.bf16.mxu0 0
      %3494 = vmatmul.mubr.bf16.gmra.mrb[0].mxu0 %v2942
      %v3495 = vpop.f32.mrb[0].mxu0
      %v3496 = vadd.f32 %v3319, %v3495
      %v3497 = vpop.f32.mrb[0].mxu0
      %v3498 = vpop.f32.mrb[0].mxu0
      %v3499 = vadd.f32 %v3320, %v3498
      %v3500 = vpop.f32.mrb[0].mxu0
      %3501 = vmatprep.mubr.bf16.mxu0 0
      %3502 = vmatmul.mubr.bf16.gmra.mrb[0].mxu0 %v2943
      %v3503 = vpop.f32.mrb[0].mxu0
      %v3504 = vadd.f32 %v3321, %v3503
      %v3505 = vpop.f32.mrb[0].mxu0
      %v3506 = vpop.f32.mrb[0].mxu0
      %v3507 = vadd.f32 %v3322, %v3506
      %v3508 = vpop.f32.mrb[0].mxu0
      %3509 = vmatprep.mubr.bf16.mxu0 0
      %3510 = vmatmul.mubr.bf16.gmra.mrb[0].mxu0 %v2944
      %v3511 = vpop.f32.mrb[0].mxu0
      %v3512 = vadd.f32 %v3323, %v3511
      %v3513 = vpop.f32.mrb[0].mxu0
      %v3514 = vpop.f32.mrb[0].mxu0
      %v3515 = vadd.f32 %v3324, %v3514
      %v3516 = vpop.f32.mrb[0].mxu0
      %3517 = vmatprep.mubr.bf16.mxu0 0
      %3518 = vmatmul.mubr.bf16.gmra.mrb[0].mxu0 %v2945
      %v3519 = vpop.f32.mrb[0].mxu0
      %v3520 = vadd.f32 %v3325, %v3519
      %v3521 = vpop.f32.mrb[0].mxu0
      %v3522 = vpop.f32.mrb[0].mxu0
      %v3523 = vadd.f32 %v3326, %v3522
      %v3524 = vpop.f32.mrb[0].mxu0
      %3525 = vmatprep.mubr.bf16.mxu0 0
      %3526 = vmatmul.mubr.bf16.gmra.mrb[0].mxu0 %v2946
      %v3527 = vpop.f32.mrb[0].mxu0
      %v3528 = vadd.f32 %v3327, %v3527
      %v3529 = vpop.f32.mrb[0].mxu0
      %v3530 = vpop.f32.mrb[0].mxu0
      %v3531 = vadd.f32 %v3328, %v3530
      %v3532 = vpop.f32.mrb[0].mxu0
      %3533 = vmatprep.mubr.bf16.mxu0 0
      %3534 = vmatmul.mubr.bf16.gmra.mrb[0].mxu0 %v2947
      %v3535 = vpop.f32.mrb[0].mxu0
      %v3536 = vadd.f32 %v3329, %v3535
      %v3537 = vpop.f32.mrb[0].mxu0
      %v3538 = vpop.f32.mrb[0].mxu0
      %v3539 = vadd.f32 %v3330, %v3538
      %v3540 = vpop.f32.mrb[0].mxu0
      %3541 = vmatprep.mubr.bf16.mxu0 0
      %3542 = vmatmul.mubr.bf16.gmra.mrb[0].mxu0 %v2948
      %v3543 = vpop.f32.mrb[0].mxu0
      %v3544 = vadd.f32 %v3331, %v3543
      %v3545 = vpop.f32.mrb[0].mxu0
      %v3546 = vpop.f32.mrb[0].mxu0
      %v3547 = vadd.f32 %v3332, %v3546
      %v3548 = vpop.f32.mrb[0].mxu0
      %3549 = vmatprep.mubr.bf16.mxu0 0
      %3550 = vmatmul.mubr.bf16.gmra.mrb[0].mxu0 %v2949
      %v3551 = vpop.f32.mrb[0].mxu0
      %v3552 = vadd.f32 %v3333, %v3551
      %v3553 = vpop.f32.mrb[0].mxu0
      %v3554 = vpop.f32.mrb[0].mxu0
      %v3555 = vadd.f32 %v3334, %v3554
      %v3556 = vpop.f32.mrb[0].mxu0
      %3557 = vmatprep.mubr.bf16.mxu0 0
      %3558 = vmatmul.mubr.bf16.gmra.mrb[0].mxu0 %v2950
      %v3559 = vpop.f32.mrb[0].mxu0
      %v3560 = vadd.f32 %v3335, %v3559
      %v3561 = vpop.f32.mrb[0].mxu0
      %v3562 = vpop.f32.mrb[0].mxu0
      %v3563 = vadd.f32 %v3336, %v3562
      %v3564 = vpop.f32.mrb[0].mxu0
      %3565 = vmatprep.mubr.bf16.mxu0 0
      %3566 = vmatmul.mubr.bf16.gmra.mrb[0].mxu0 %v2951
      %v3567 = vpop.f32.mrb[0].mxu0
      %v3568 = vadd.f32 %v3337, %v3567
      %v3569 = vpop.f32.mrb[0].mxu0
      %v3570 = vpop.f32.mrb[0].mxu0
      %v3571 = vadd.f32 %v3338, %v3570
      %v3572 = vpop.f32.mrb[0].mxu0
      %3573 = vmatprep.mubr.bf16.mxu0 0
      %3574 = vmatmul.mubr.bf16.gmra.mrb[0].mxu0 %v2952
      %v3575 = vpop.f32.mrb[0].mxu0
      %v3576 = vadd.f32 %v3339, %v3575
      %v3577 = vpop.f32.mrb[0].mxu0
      %v3578 = vpop.f32.mrb[0].mxu0
      %v3579 = vadd.f32 %v3340, %v3578
      %v3580 = vpop.f32.mrb[0].mxu0
      %3581 = vmatprep.mubr.bf16.mxu0 0
      %3582 = vmatmul.mubr.bf16.gmra.mrb[0].mxu0 %v2953
      %v3583 = vpop.f32.mrb[0].mxu0
      %v3584 = vadd.f32 %v3341, %v3583
      %v3585 = vpop.f32.mrb[0].mxu0
      %v3586 = vpop.f32.mrb[0].mxu0
      %v3587 = vadd.f32 %v3342, %v3586
      %v3588 = vpop.f32.mrb[0].mxu0
      %3589 = vmatprep.mubr.bf16.mxu0 0
      %3590 = vmatmul.mubr.bf16.gmra.mrb[0].mxu0 %v2954
      %v3591 = vpop.f32.mrb[0].mxu0
      %v3592 = vadd.f32 %v3343, %v3591
      %v3593 = vpop.f32.mrb[0].mxu0
      %v3594 = vpop.f32.mrb[0].mxu0
      %v3595 = vadd.f32 %v3344, %v3594
      %v3596 = vpop.f32.mrb[0].mxu0
      %3597 = vmatprep.mubr.bf16.mxu0 0
      %3598 = vmatmul.mubr.bf16.gmra.mrb[0].mxu0 %v2955
      %v3599 = vpop.f32.mrb[0].mxu0
      %v3600 = vadd.f32 %v3345, %v3599
      %v3601 = vpop.f32.mrb[0].mxu0
      %v3602 = vpop.f32.mrb[0].mxu0
      %v3603 = vadd.f32 %v3346, %v3602
      %v3604 = vpop.f32.mrb[0].mxu0
      %3605 = vmatprep.mubr.bf16.mxu0 0
      %3606 = vmatmul.mubr.bf16.gmra.mrb[0].mxu0 %v2956
      %v3607 = vpop.f32.mrb[0].mxu0
      %v3608 = vadd.f32 %v3347, %v3607
      %v3609 = vpop.f32.mrb[0].mxu0
      %v3610 = vpop.f32.mrb[0].mxu0
      %v3611 = vadd.f32 %v3348, %v3610
      %v3612 = vpop.f32.mrb[0].mxu0
      %3613 = vmatprep.mubr.bf16.mxu0 0
      %3614 = vmatmul.mubr.bf16.gmra.mrb[0].mxu0 %v2957
      %v3615 = vpop.f32.mrb[0].mxu0
      %v3616 = vadd.f32 %v3349, %v3615
      %v3617 = vpop.f32.mrb[0].mxu0
      %v3618 = vpop.f32.mrb[0].mxu0
      %v3619 = vadd.f32 %v3350, %v3618
      %v3620 = vpop.f32.mrb[0].mxu0
      %3621 = vmatprep.mubr.bf16.mxu0 0
      %3622 = vmatmul.mubr.bf16.gmra.mrb[0].mxu0 %v2958
      %v3623 = vpop.f32.mrb[0].mxu0
      %v3624 = vadd.f32 %v3351, %v3623
      %v3625 = vpop.f32.mrb[0].mxu0
      %v3626 = vpop.f32.mrb[0].mxu0
      %v3627 = vadd.f32 %v3352, %v3626
      %v3628 = vpop.f32.mrb[0].mxu0
      %3629 = vmatprep.mubr.bf16.mxu0 0
      %3630 = vmatmul.mubr.bf16.gmra.mrb[0].mxu0 %v2959
      %v3631 = vpop.f32.mrb[0].mxu0
      %v3632 = vadd.f32 %v3353, %v3631
      %v3633 = vpop.f32.mrb[0].mxu0
      %v3634 = vpop.f32.mrb[0].mxu0
      %v3635 = vadd.f32 %v3354, %v3634
      %v3636 = vpop.f32.mrb[0].mxu0
      %3637 = vmatprep.mubr.bf16.mxu0 0
      %3638 = vmatmul.mubr.bf16.gmra.mrb[0].mxu0 %v2960
      %v3639 = vpop.f32.mrb[0].mxu0
      %v3640 = vadd.f32 %v3355, %v3639
      %v3641 = vpop.f32.mrb[0].mxu0
      %v3642 = vpop.f32.mrb[0].mxu0
      %v3643 = vadd.f32 %v3356, %v3642
      %v3644 = vpop.f32.mrb[0].mxu0
      %3645 = vmatprep.mubr.bf16.mxu0 0
      %3646 = vmatmul.mubr.bf16.gmra.mrb[0].mxu0 %v2961
      %v3647 = vpop.f32.mrb[0].mxu0
      %v3648 = vadd.f32 %v3357, %v3647
      %v3649 = vpop.f32.mrb[0].mxu0
      %v3650 = vpop.f32.mrb[0].mxu0
      %v3651 = vadd.f32 %v3358, %v3650
      %v3652 = vpop.f32.mrb[0].mxu0
      %3653 = vmatprep.mubr.bf16.mxu0 0
      %3654 = vmatmul.mubr.bf16.gmra.mrb[0].mxu0 %v2962
      %v3655 = vpop.f32.mrb[0].mxu0
      %v3656 = vadd.f32 %v3359, %v3655
      %v3657 = vpop.f32.mrb[0].mxu0
      %v3658 = vpop.f32.mrb[0].mxu0
      %v3659 = vadd.f32 %v3360, %v3658
      %v3660 = vpop.f32.mrb[0].mxu0
      %3661 = vmatprep.mubr.bf16.mxu0 0
      %3662 = vmatmul.mubr.bf16.gmra.mrb[0].mxu0 %v2963
      %v3663 = vpop.f32.mrb[0].mxu0
      %v3664 = vadd.f32 %v3361, %v3663
      %v3665 = vpop.f32.mrb[0].mxu0
      %v3666 = vpop.f32.mrb[0].mxu0
      %v3667 = vadd.f32 %v3362, %v3666
      %v3668 = vpop.f32.mrb[0].mxu0
      %3669 = vmatprep.mubr.bf16.mxu0 0
      %3670 = vmatmul.mubr.bf16.gmra.mrb[0].mxu0 %v2964
      %v3671 = vpop.f32.mrb[0].mxu0
      %v3672 = vadd.f32 %v3363, %v3671
      %v3673 = vpop.f32.mrb[0].mxu0
      %v3674 = vpop.f32.mrb[0].mxu0
      %v3675 = vadd.f32 %v3364, %v3674
      %v3676 = vpop.f32.mrb[0].mxu0
      %3677 = vmatprep.mubr.bf16.mxu0 0
      %3678 = vmatmul.mubr.bf16.gmra.mrb[0].mxu0 %v2965
      %v3679 = vpop.f32.mrb[0].mxu0
      %v3680 = vadd.f32 %v3365, %v3679
      %v3681 = vpop.f32.mrb[0].mxu0
      %v3682 = vpop.f32.mrb[0].mxu0
      %v3683 = vadd.f32 %v3366, %v3682
      %v3684 = vpop.f32.mrb[0].mxu0
      %3685 = vmatprep.mubr.bf16.mxu0 0
      %3686 = vmatmul.mubr.bf16.gmra.mrb[0].mxu0 %v2966
      %v3687 = vpop.f32.mrb[0].mxu0
      %v3688 = vadd.f32 %v3367, %v3687
      %v3689 = vpop.f32.mrb[0].mxu0
      %v3690 = vpop.f32.mrb[0].mxu0
      %v3691 = vadd.f32 %v3368, %v3690
      %v3692 = vpop.f32.mrb[0].mxu0
      %3693 = vmatprep.mubr.bf16.mxu0 0
      %3694 = vmatmul.mubr.bf16.gmra.mrb[0].mxu0 %v2967
      %v3695 = vpop.f32.mrb[0].mxu0
      %v3696 = vadd.f32 %v3369, %v3695
      %v3697 = vpop.f32.mrb[0].mxu0
      %v3698 = vpop.f32.mrb[0].mxu0
      %v3699 = vadd.f32 %v3370, %v3698
      %v3700 = vpop.f32.mrb[0].mxu0
      %3701 = vmatprep.mubr.bf16.mxu0 0
      %3702 = vmatmul.mubr.bf16.gmra.mrb[0].mxu0 %v2968
      %v3703 = vpop.f32.mrb[0].mxu0
      %v3704 = vadd.f32 %v3371, %v3703
      %v3705 = vpop.f32.mrb[0].mxu0
      %v3706 = vpop.f32.mrb[0].mxu0
      %v3707 = vadd.f32 %v3372, %v3706
      %v3708 = vpop.f32.mrb[0].mxu0
      %3709 = vdwg.mxu0
      %3710 = vset.pattern.permute.xlu0 1
      %3711 = vperm.xlu0 %3710, %v2872
      %v3712 = vpop.permute.xlu0 %3711
      %3714 = vset.pattern.permute.xlu0 1
      %3715 = vperm.xlu0 %3714, %v2873
      %v3716 = vpop.permute.xlu0 %3715
      %3718 = vset.pattern.permute.xlu0 1
      %3719 = vperm.xlu0 %3718, %v2874
      %v3720 = vpop.permute.xlu0 %3719
      %3722 = vset.pattern.permute.xlu0 1
      %3723 = vperm.xlu0 %3722, %v2875
      %v3724 = vpop.permute.xlu0 %3723
      %3726 = vset.pattern.permute.xlu0 1
      %3727 = vperm.xlu0 %3726, %v2876
      %v3728 = vpop.permute.xlu0 %3727
      %3730 = vset.pattern.permute.xlu0 1
      %3731 = vperm.xlu0 %3730, %v2877
      %v3732 = vpop.permute.xlu0 %3731
      %3734 = vset.pattern.permute.xlu0 1
      %3735 = vperm.xlu0 %3734, %v2878
      %v3736 = vpop.permute.xlu0 %3735
      %3738 = vset.pattern.permute.xlu0 1
      %3739 = vperm.xlu0 %3738, %v2879
      %v3740 = vpop.permute.xlu0 %3739
      %3742 = vset.pattern.permute.xlu0 1
      %3743 = vperm.xlu0 %3742, %v2880
      %v3744 = vpop.permute.xlu0 %3743
      %3746 = vset.pattern.permute.xlu0 1
      %3747 = vperm.xlu0 %3746, %v2881
      %v3748 = vpop.permute.xlu0 %3747
      %3750 = vset.pattern.permute.xlu0 1
      %3751 = vperm.xlu0 %3750, %v2882
      %v3752 = vpop.permute.xlu0 %3751
      %3754 = vset.pattern.permute.xlu0 1
      %3755 = vperm.xlu0 %3754, %v2883
      %v3756 = vpop.permute.xlu0 %3755
      %3758 = vset.pattern.permute.xlu0 1
      %3759 = vperm.xlu0 %3758, %v2884
      %v3760 = vpop.permute.xlu0 %3759
      %3762 = vset.pattern.permute.xlu0 1
      %3763 = vperm.xlu0 %3762, %v2885
      %v3764 = vpop.permute.xlu0 %3763
      %3766 = vset.pattern.permute.xlu0 1
      %3767 = vperm.xlu0 %3766, %v2886
      %v3768 = vpop.permute.xlu0 %3767
      %3770 = vset.pattern.permute.xlu0 1
      %3771 = vperm.xlu0 %3770, %v2887
      %v3772 = vpop.permute.xlu0 %3771
      %3774 = vset.pattern.permute.xlu0 1
      %3775 = vperm.xlu0 %3774, %v2888
      %v3776 = vpop.permute.xlu0 %3775
      %3778 = vset.pattern.permute.xlu0 1
      %3779 = vperm.xlu0 %3778, %v2889
      %v3780 = vpop.permute.xlu0 %3779
      %3782 = vset.pattern.permute.xlu0 1
      %3783 = vperm.xlu0 %3782, %v2890
      %v3784 = vpop.permute.xlu0 %3783
      %3786 = vset.pattern.permute.xlu0 1
      %3787 = vperm.xlu0 %3786, %v2891
      %v3788 = vpop.permute.xlu0 %3787
      %3790 = vset.pattern.permute.xlu0 1
      %3791 = vperm.xlu0 %3790, %v2892
      %v3792 = vpop.permute.xlu0 %3791
      %3794 = vset.pattern.permute.xlu0 1
      %3795 = vperm.xlu0 %3794, %v2893
      %v3796 = vpop.permute.xlu0 %3795
      %3798 = vset.pattern.permute.xlu0 1
      %3799 = vperm.xlu0 %3798, %v2894
      %v3800 = vpop.permute.xlu0 %3799
      %3802 = vset.pattern.permute.xlu0 1
      %3803 = vperm.xlu0 %3802, %v2895
      %v3804 = vpop.permute.xlu0 %3803
      %3806 = vset.pattern.permute.xlu0 1
      %3807 = vperm.xlu0 %3806, %v2896
      %v3808 = vpop.permute.xlu0 %3807
      %3810 = vset.pattern.permute.xlu0 1
      %3811 = vperm.xlu0 %3810, %v2897
      %v3812 = vpop.permute.xlu0 %3811
      %3814 = vset.pattern.permute.xlu0 1
      %3815 = vperm.xlu0 %3814, %v2898
      %v3816 = vpop.permute.xlu0 %3815
      %3818 = vset.pattern.permute.xlu0 1
      %3819 = vperm.xlu0 %3818, %v2899
      %v3820 = vpop.permute.xlu0 %3819
      %3822 = vset.pattern.permute.xlu0 1
      %3823 = vperm.xlu0 %3822, %v2900
      %v3824 = vpop.permute.xlu0 %3823
      %3826 = vset.pattern.permute.xlu0 1
      %3827 = vperm.xlu0 %3826, %v2901
      %v3828 = vpop.permute.xlu0 %3827
      %3830 = vset.pattern.permute.xlu0 1
      %3831 = vperm.xlu0 %3830, %v2902
      %v3832 = vpop.permute.xlu0 %3831
      %3834 = vset.pattern.permute.xlu0 1
      %3835 = vperm.xlu0 %3834, %v2903
      %v3836 = vpop.permute.xlu0 %3835
      %3838 = vset.pattern.permute.xlu0 1
      %3839 = vperm.xlu0 %3838, %v2904
      %v3840 = vpop.permute.xlu0 %3839
      %3842 = vset.pattern.permute.xlu0 1
      %3843 = vperm.xlu0 %3842, %v2905
      %v3844 = vpop.permute.xlu0 %3843
      %3846 = vset.pattern.permute.xlu0 1
      %3847 = vperm.xlu0 %3846, %v2906
      %v3848 = vpop.permute.xlu0 %3847
      %3850 = vset.pattern.permute.xlu0 1
      %3851 = vperm.xlu0 %3850, %v2907
      %v3852 = vpop.permute.xlu0 %3851
      %3854 = vset.pattern.permute.xlu0 1
      %3855 = vperm.xlu0 %3854, %v2908
      %v3856 = vpop.permute.xlu0 %3855
      %3858 = vset.pattern.permute.xlu0 1
      %3859 = vperm.xlu0 %3858, %v2909
      %v3860 = vpop.permute.xlu0 %3859
      %3862 = vset.pattern.permute.xlu0 1
      %3863 = vperm.xlu0 %3862, %v2910
      %v3864 = vpop.permute.xlu0 %3863
      %3866 = vset.pattern.permute.xlu0 1
      %3867 = vperm.xlu0 %3866, %v2911
      %v3868 = vpop.permute.xlu0 %3867
      %3870 = vset.pattern.permute.xlu0 1
      %3871 = vperm.xlu0 %3870, %v2912
      %v3872 = vpop.permute.xlu0 %3871
      %3874 = vset.pattern.permute.xlu0 1
      %3875 = vperm.xlu0 %3874, %v2913
      %v3876 = vpop.permute.xlu0 %3875
      %3878 = vset.pattern.permute.xlu0 1
      %3879 = vperm.xlu0 %3878, %v2914
      %v3880 = vpop.permute.xlu0 %3879
      %3882 = vset.pattern.permute.xlu0 1
      %3883 = vperm.xlu0 %3882, %v2915
      %v3884 = vpop.permute.xlu0 %3883
      %3886 = vset.pattern.permute.xlu0 1
      %3887 = vperm.xlu0 %3886, %v2916
      %v3888 = vpop.permute.xlu0 %3887
      %3890 = vset.pattern.permute.xlu0 1
      %3891 = vperm.xlu0 %3890, %v2917
      %v3892 = vpop.permute.xlu0 %3891
      %3894 = vset.pattern.permute.xlu0 1
      %3895 = vperm.xlu0 %3894, %v2918
      %v3896 = vpop.permute.xlu0 %3895
      %3898 = vset.pattern.permute.xlu0 1
      %3899 = vperm.xlu0 %3898, %v2919
      %v3900 = vpop.permute.xlu0 %3899
      %3902 = vset.pattern.permute.xlu0 1
      %3903 = vperm.xlu0 %3902, %v2920
      %v3904 = vpop.permute.xlu0 %3903
      %3906 = vset.pattern.permute.xlu0 1
      %3907 = vperm.xlu0 %3906, %v2921
      %v3908 = vpop.permute.xlu0 %3907
      %3910 = vset.pattern.permute.xlu0 1
      %3911 = vperm.xlu0 %3910, %v2922
      %v3912 = vpop.permute.xlu0 %3911
      %3914 = vset.pattern.permute.xlu0 1
      %3915 = vperm.xlu0 %3914, %v2923
      %v3916 = vpop.permute.xlu0 %3915
      %3918 = vset.pattern.permute.xlu0 1
      %3919 = vperm.xlu0 %3918, %v2924
      %v3920 = vpop.permute.xlu0 %3919
      %3922 = vset.pattern.permute.xlu0 1
      %3923 = vperm.xlu0 %3922, %v2925
      %v3924 = vpop.permute.xlu0 %3923
      %3926 = vset.pattern.permute.xlu0 1
      %3927 = vperm.xlu0 %3926, %v2926
      %v3928 = vpop.permute.xlu0 %3927
      %3930 = vset.pattern.permute.xlu0 1
      %3931 = vperm.xlu0 %3930, %v2927
      %v3932 = vpop.permute.xlu0 %3931
      %3934 = vset.pattern.permute.xlu0 1
      %3935 = vperm.xlu0 %3934, %v2928
      %v3936 = vpop.permute.xlu0 %3935
      %3938 = vset.pattern.permute.xlu0 1
      %3939 = vperm.xlu0 %3938, %v2929
      %v3940 = vpop.permute.xlu0 %3939
      %3942 = vset.pattern.permute.xlu0 1
      %3943 = vperm.xlu0 %3942, %v2930
      %v3944 = vpop.permute.xlu0 %3943
      %3946 = vset.pattern.permute.xlu0 1
      %3947 = vperm.xlu0 %3946, %v2931
      %v3948 = vpop.permute.xlu0 %3947
      %3950 = vset.pattern.permute.xlu0 1
      %3951 = vperm.xlu0 %3950, %v2932
      %v3952 = vpop.permute.xlu0 %3951
      %3954 = vset.pattern.permute.xlu0 1
      %3955 = vperm.xlu0 %3954, %v2933
      %v3956 = vpop.permute.xlu0 %3955
      %3958 = vset.pattern.permute.xlu0 1
      %3959 = vperm.xlu0 %3958, %v2934
      %v3960 = vpop.permute.xlu0 %3959
      %3962 = vset.pattern.permute.xlu0 1
      %3963 = vperm.xlu0 %3962, %v2935
      %v3964 = vpop.permute.xlu0 %3963
      %v3966 = vlaneseq
      %v3967 = vshrl.u32 %v3966, 7
      %v3968 = vsub.s32 1, %v3967
      %v3969 = vrot.slane %v2936, %v3968
      %v3970 = vmul.f32 %v3712, %v3969
      %v3971 = vmul.f32 %v3716, %v3969
      %v3972 = vmul.f32 %v3720, %v3969
      %v3973 = vmul.f32 %v3724, %v3969
      %v3974 = vmul.f32 %v3728, %v3969
      %v3975 = vmul.f32 %v3732, %v3969
      %v3976 = vmul.f32 %v3736, %v3969
      %v3977 = vmul.f32 %v3740, %v3969
      %v3978 = vmul.f32 %v3744, %v3969
      %v3979 = vmul.f32 %v3748, %v3969
      %v3980 = vmul.f32 %v3752, %v3969
      %v3981 = vmul.f32 %v3756, %v3969
      %v3982 = vmul.f32 %v3760, %v3969
      %v3983 = vmul.f32 %v3764, %v3969
      %v3984 = vmul.f32 %v3768, %v3969
      %v3985 = vmul.f32 %v3772, %v3969
      %v3986 = vmul.f32 %v3776, %v3969
      %v3987 = vmul.f32 %v3780, %v3969
      %v3988 = vmul.f32 %v3784, %v3969
      %v3989 = vmul.f32 %v3788, %v3969
      %v3990 = vmul.f32 %v3792, %v3969
      %v3991 = vmul.f32 %v3796, %v3969
      %v3992 = vmul.f32 %v3800, %v3969
      %v3993 = vmul.f32 %v3804, %v3969
      %v3994 = vmul.f32 %v3808, %v3969
      %v3995 = vmul.f32 %v3812, %v3969
      %v3996 = vmul.f32 %v3816, %v3969
      %v3997 = vmul.f32 %v3820, %v3969
      %v3998 = vmul.f32 %v3824, %v3969
      %v3999 = vmul.f32 %v3828, %v3969
      %v4000 = vmul.f32 %v3832, %v3969
      %v4001 = vmul.f32 %v3836, %v3969
      %v4002 = vmul.f32 %v3840, %v3969
      %v4003 = vmul.f32 %v3844, %v3969
      %v4004 = vmul.f32 %v3848, %v3969
      %v4005 = vmul.f32 %v3852, %v3969
      %v4006 = vmul.f32 %v3856, %v3969
      %v4007 = vmul.f32 %v3860, %v3969
      %v4008 = vmul.f32 %v3864, %v3969
      %v4009 = vmul.f32 %v3868, %v3969
      %v4010 = vmul.f32 %v3872, %v3969
      %v4011 = vmul.f32 %v3876, %v3969
      %v4012 = vmul.f32 %v3880, %v3969
      %v4013 = vmul.f32 %v3884, %v3969
      %v4014 = vmul.f32 %v3888, %v3969
      %v4015 = vmul.f32 %v3892, %v3969
      %v4016 = vmul.f32 %v3896, %v3969
      %v4017 = vmul.f32 %v3900, %v3969
      %v4018 = vmul.f32 %v3904, %v3969
      %v4019 = vmul.f32 %v3908, %v3969
      %v4020 = vmul.f32 %v3912, %v3969
      %v4021 = vmul.f32 %v3916, %v3969
      %v4022 = vmul.f32 %v3920, %v3969
      %v4023 = vmul.f32 %v3924, %v3969
      %v4024 = vmul.f32 %v3928, %v3969
      %v4025 = vmul.f32 %v3932, %v3969
      %v4026 = vmul.f32 %v3936, %v3969
      %v4027 = vmul.f32 %v3940, %v3969
      %v4028 = vmul.f32 %v3944, %v3969
      %v4029 = vmul.f32 %v3948, %v3969
      %v4030 = vmul.f32 %v3952, %v3969
      %v4031 = vmul.f32 %v3956, %v3969
      %v4032 = vmul.f32 %v3960, %v3969
      %v4033 = vmul.f32 %v3964, %v3969
      %v4034 = vadd.f32 %v3456, %v3970
      %v4035 = vadd.f32 %v3459, %v3971
      %v4036 = vadd.f32 %v3464, %v3972
      %v4037 = vadd.f32 %v3467, %v3973
      %v4038 = vadd.f32 %v3472, %v3974
      %v4039 = vadd.f32 %v3475, %v3975
      %v4040 = vadd.f32 %v3480, %v3976
      %v4041 = vadd.f32 %v3483, %v3977
      %v4042 = vadd.f32 %v3488, %v3978
      %v4043 = vadd.f32 %v3491, %v3979
      %v4044 = vadd.f32 %v3496, %v3980
      %v4045 = vadd.f32 %v3499, %v3981
      %v4046 = vadd.f32 %v3504, %v3982
      %v4047 = vadd.f32 %v3507, %v3983
      %v4048 = vadd.f32 %v3512, %v3984
      %v4049 = vadd.f32 %v3515, %v3985
      %v4050 = vadd.f32 %v3520, %v3986
      %v4051 = vadd.f32 %v3523, %v3987
      %v4052 = vadd.f32 %v3528, %v3988
      %v4053 = vadd.f32 %v3531, %v3989
      %v4054 = vadd.f32 %v3536, %v3990
      %v4055 = vadd.f32 %v3539, %v3991
      %v4056 = vadd.f32 %v3544, %v3992
      %v4057 = vadd.f32 %v3547, %v3993
      %v4058 = vadd.f32 %v3552, %v3994
      %v4059 = vadd.f32 %v3555, %v3995
      %v4060 = vadd.f32 %v3560, %v3996
      %v4061 = vadd.f32 %v3563, %v3997
      %v4062 = vadd.f32 %v3568, %v3998
      %v4063 = vadd.f32 %v3571, %v3999
      %v4064 = vadd.f32 %v3576, %v4000
      %v4065 = vadd.f32 %v3579, %v4001
      %v4066 = vadd.f32 %v3584, %v4002
      %v4067 = vadd.f32 %v3587, %v4003
      %v4068 = vadd.f32 %v3592, %v4004
      %v4069 = vadd.f32 %v3595, %v4005
      %v4070 = vadd.f32 %v3600, %v4006
      %v4071 = vadd.f32 %v3603, %v4007
      %v4072 = vadd.f32 %v3608, %v4008
      %v4073 = vadd.f32 %v3611, %v4009
      %v4074 = vadd.f32 %v3616, %v4010
      %v4075 = vadd.f32 %v3619, %v4011
      %v4076 = vadd.f32 %v3624, %v4012
      %v4077 = vadd.f32 %v3627, %v4013
      %v4078 = vadd.f32 %v3632, %v4014
      %v4079 = vadd.f32 %v3635, %v4015
      %v4080 = vadd.f32 %v3640, %v4016
      %v4081 = vadd.f32 %v3643, %v4017
      %v4082 = vadd.f32 %v3648, %v4018
      %v4083 = vadd.f32 %v3651, %v4019
      %v4084 = vadd.f32 %v3656, %v4020
      %v4085 = vadd.f32 %v3659, %v4021
      %v4086 = vadd.f32 %v3664, %v4022
      %v4087 = vadd.f32 %v3667, %v4023
      %v4088 = vadd.f32 %v3672, %v4024
      %v4089 = vadd.f32 %v3675, %v4025
      %v4090 = vadd.f32 %v3680, %v4026
      %v4091 = vadd.f32 %v3683, %v4027
      %v4092 = vadd.f32 %v3688, %v4028
      %v4093 = vadd.f32 %v3691, %v4029
      %v4094 = vadd.f32 %v3696, %v4030
      %v4095 = vadd.f32 %v3699, %v4031
      %v4096 = vadd.f32 %v3704, %v4032
      %v4097 = vadd.f32 %v3707, %v4033
      %4098 = vset.pattern.permute.xlu0 2
      %4099 = vperm.xlu0 %4098, %v2872
      %v4100 = vpop.permute.xlu0 %4099
      %4102 = vset.pattern.permute.xlu0 2
      %4103 = vperm.xlu0 %4102, %v2873
      %v4104 = vpop.permute.xlu0 %4103
      %4106 = vset.pattern.permute.xlu0 2
      %4107 = vperm.xlu0 %4106, %v2874
      %v4108 = vpop.permute.xlu0 %4107
      %4110 = vset.pattern.permute.xlu0 2
      %4111 = vperm.xlu0 %4110, %v2875
      %v4112 = vpop.permute.xlu0 %4111
      %4114 = vset.pattern.permute.xlu0 2
      %4115 = vperm.xlu0 %4114, %v2876
      %v4116 = vpop.permute.xlu0 %4115
      %4118 = vset.pattern.permute.xlu0 2
      %4119 = vperm.xlu0 %4118, %v2877
      %v4120 = vpop.permute.xlu0 %4119
      %4122 = vset.pattern.permute.xlu0 2
      %4123 = vperm.xlu0 %4122, %v2878
      %v4124 = vpop.permute.xlu0 %4123
      %4126 = vset.pattern.permute.xlu0 2
      %4127 = vperm.xlu0 %4126, %v2879
      %v4128 = vpop.permute.xlu0 %4127
      %4130 = vset.pattern.permute.xlu0 2
      %4131 = vperm.xlu0 %4130, %v2880
      %v4132 = vpop.permute.xlu0 %4131
      %4134 = vset.pattern.permute.xlu0 2
      %4135 = vperm.xlu0 %4134, %v2881
      %v4136 = vpop.permute.xlu0 %4135
      %4138 = vset.pattern.permute.xlu0 2
      %4139 = vperm.xlu0 %4138, %v2882
      %v4140 = vpop.permute.xlu0 %4139
      %4142 = vset.pattern.permute.xlu0 2
      %4143 = vperm.xlu0 %4142, %v2883
      %v4144 = vpop.permute.xlu0 %4143
      %4146 = vset.pattern.permute.xlu0 2
      %4147 = vperm.xlu0 %4146, %v2884
      %v4148 = vpop.permute.xlu0 %4147
      %4150 = vset.pattern.permute.xlu0 2
      %4151 = vperm.xlu0 %4150, %v2885
      %v4152 = vpop.permute.xlu0 %4151
      %4154 = vset.pattern.permute.xlu0 2
      %4155 = vperm.xlu0 %4154, %v2886
      %v4156 = vpop.permute.xlu0 %4155
      %4158 = vset.pattern.permute.xlu0 2
      %4159 = vperm.xlu0 %4158, %v2887
      %v4160 = vpop.permute.xlu0 %4159
      %4162 = vset.pattern.permute.xlu0 2
      %4163 = vperm.xlu0 %4162, %v2888
      %v4164 = vpop.permute.xlu0 %4163
      %4166 = vset.pattern.permute.xlu0 2
      %4167 = vperm.xlu0 %4166, %v2889
      %v4168 = vpop.permute.xlu0 %4167
      %4170 = vset.pattern.permute.xlu0 2
      %4171 = vperm.xlu0 %4170, %v2890
      %v4172 = vpop.permute.xlu0 %4171
      %4174 = vset.pattern.permute.xlu0 2
      %4175 = vperm.xlu0 %4174, %v2891
      %v4176 = vpop.permute.xlu0 %4175
      %4178 = vset.pattern.permute.xlu0 2
      %4179 = vperm.xlu0 %4178, %v2892
      %v4180 = vpop.permute.xlu0 %4179
      %4182 = vset.pattern.permute.xlu0 2
      %4183 = vperm.xlu0 %4182, %v2893
      %v4184 = vpop.permute.xlu0 %4183
      %4186 = vset.pattern.permute.xlu0 2
      %4187 = vperm.xlu0 %4186, %v2894
      %v4188 = vpop.permute.xlu0 %4187
      %4190 = vset.pattern.permute.xlu0 2
      %4191 = vperm.xlu0 %4190, %v2895
      %v4192 = vpop.permute.xlu0 %4191
      %4194 = vset.pattern.permute.xlu0 2
      %4195 = vperm.xlu0 %4194, %v2896
      %v4196 = vpop.permute.xlu0 %4195
      %4198 = vset.pattern.permute.xlu0 2
      %4199 = vperm.xlu0 %4198, %v2897
      %v4200 = vpop.permute.xlu0 %4199
      %4202 = vset.pattern.permute.xlu0 2
      %4203 = vperm.xlu0 %4202, %v2898
      %v4204 = vpop.permute.xlu0 %4203
      %4206 = vset.pattern.permute.xlu0 2
      %4207 = vperm.xlu0 %4206, %v2899
      %v4208 = vpop.permute.xlu0 %4207
      %4210 = vset.pattern.permute.xlu0 2
      %4211 = vperm.xlu0 %4210, %v2900
      %v4212 = vpop.permute.xlu0 %4211
      %4214 = vset.pattern.permute.xlu0 2
      %4215 = vperm.xlu0 %4214, %v2901
      %v4216 = vpop.permute.xlu0 %4215
      %4218 = vset.pattern.permute.xlu0 2
      %4219 = vperm.xlu0 %4218, %v2902
      %v4220 = vpop.permute.xlu0 %4219
      %4222 = vset.pattern.permute.xlu0 2
      %4223 = vperm.xlu0 %4222, %v2903
      %v4224 = vpop.permute.xlu0 %4223
      %4226 = vset.pattern.permute.xlu0 2
      %4227 = vperm.xlu0 %4226, %v2904
      %v4228 = vpop.permute.xlu0 %4227
      %4230 = vset.pattern.permute.xlu0 2
      %4231 = vperm.xlu0 %4230, %v2905
      %v4232 = vpop.permute.xlu0 %4231
      %4234 = vset.pattern.permute.xlu0 2
      %4235 = vperm.xlu0 %4234, %v2906
      %v4236 = vpop.permute.xlu0 %4235
      %4238 = vset.pattern.permute.xlu0 2
      %4239 = vperm.xlu0 %4238, %v2907
      %v4240 = vpop.permute.xlu0 %4239
      %4242 = vset.pattern.permute.xlu0 2
      %4243 = vperm.xlu0 %4242, %v2908
      %v4244 = vpop.permute.xlu0 %4243
      %4246 = vset.pattern.permute.xlu0 2
      %4247 = vperm.xlu0 %4246, %v2909
      %v4248 = vpop.permute.xlu0 %4247
      %4250 = vset.pattern.permute.xlu0 2
      %4251 = vperm.xlu0 %4250, %v2910
      %v4252 = vpop.permute.xlu0 %4251
      %4254 = vset.pattern.permute.xlu0 2
      %4255 = vperm.xlu0 %4254, %v2911
      %v4256 = vpop.permute.xlu0 %4255
      %4258 = vset.pattern.permute.xlu0 2
      %4259 = vperm.xlu0 %4258, %v2912
      %v4260 = vpop.permute.xlu0 %4259
      %4262 = vset.pattern.permute.xlu0 2
      %4263 = vperm.xlu0 %4262, %v2913
      %v4264 = vpop.permute.xlu0 %4263
      %4266 = vset.pattern.permute.xlu0 2
      %4267 = vperm.xlu0 %4266, %v2914
      %v4268 = vpop.permute.xlu0 %4267
      %4270 = vset.pattern.permute.xlu0 2
      %4271 = vperm.xlu0 %4270, %v2915
      %v4272 = vpop.permute.xlu0 %4271
      %4274 = vset.pattern.permute.xlu0 2
      %4275 = vperm.xlu0 %4274, %v2916
      %v4276 = vpop.permute.xlu0 %4275
      %4278 = vset.pattern.permute.xlu0 2
      %4279 = vperm.xlu0 %4278, %v2917
      %v4280 = vpop.permute.xlu0 %4279
      %4282 = vset.pattern.permute.xlu0 2
      %4283 = vperm.xlu0 %4282, %v2918
      %v4284 = vpop.permute.xlu0 %4283
      %4286 = vset.pattern.permute.xlu0 2
      %4287 = vperm.xlu0 %4286, %v2919
      %v4288 = vpop.permute.xlu0 %4287
      %4290 = vset.pattern.permute.xlu0 2
      %4291 = vperm.xlu0 %4290, %v2920
      %v4292 = vpop.permute.xlu0 %4291
      %4294 = vset.pattern.permute.xlu0 2
      %4295 = vperm.xlu0 %4294, %v2921
      %v4296 = vpop.permute.xlu0 %4295
      %4298 = vset.pattern.permute.xlu0 2
      %4299 = vperm.xlu0 %4298, %v2922
      %v4300 = vpop.permute.xlu0 %4299
      %4302 = vset.pattern.permute.xlu0 2
      %4303 = vperm.xlu0 %4302, %v2923
      %v4304 = vpop.permute.xlu0 %4303
      %4306 = vset.pattern.permute.xlu0 2
      %4307 = vperm.xlu0 %4306, %v2924
      %v4308 = vpop.permute.xlu0 %4307
      %4310 = vset.pattern.permute.xlu0 2
      %4311 = vperm.xlu0 %4310, %v2925
      %v4312 = vpop.permute.xlu0 %4311
      %4314 = vset.pattern.permute.xlu0 2
      %4315 = vperm.xlu0 %4314, %v2926
      %v4316 = vpop.permute.xlu0 %4315
      %4318 = vset.pattern.permute.xlu0 2
      %4319 = vperm.xlu0 %4318, %v2927
      %v4320 = vpop.permute.xlu0 %4319
      %4322 = vset.pattern.permute.xlu0 2
      %4323 = vperm.xlu0 %4322, %v2928
      %v4324 = vpop.permute.xlu0 %4323
      %4326 = vset.pattern.permute.xlu0 2
      %4327 = vperm.xlu0 %4326, %v2929
      %v4328 = vpop.permute.xlu0 %4327
      %4330 = vset.pattern.permute.xlu0 2
      %4331 = vperm.xlu0 %4330, %v2930
      %v4332 = vpop.permute.xlu0 %4331
      %4334 = vset.pattern.permute.xlu0 2
      %4335 = vperm.xlu0 %4334, %v2931
      %v4336 = vpop.permute.xlu0 %4335
      %4338 = vset.pattern.permute.xlu0 2
      %4339 = vperm.xlu0 %4338, %v2932
      %v4340 = vpop.permute.xlu0 %4339
      %4342 = vset.pattern.permute.xlu0 2
      %4343 = vperm.xlu0 %4342, %v2933
      %v4344 = vpop.permute.xlu0 %4343
      %4346 = vset.pattern.permute.xlu0 2
      %4347 = vperm.xlu0 %4346, %v2934
      %v4348 = vpop.permute.xlu0 %4347
      %4350 = vset.pattern.permute.xlu0 2
      %4351 = vperm.xlu0 %4350, %v2935
      %v4352 = vpop.permute.xlu0 %4351
      %v4354 = vlaneseq
      %v4355 = vshrl.u32 %v4354, 7
      %v4356 = vsub.s32 2, %v4355
      %v4357 = vrot.slane %v2936, %v4356
      %v4358 = vmul.f32 %v4100, %v4357
      %v4359 = vmul.f32 %v4104, %v4357
      %v4360 = vmul.f32 %v4108, %v4357
      %v4361 = vmul.f32 %v4112, %v4357
      %v4362 = vmul.f32 %v4116, %v4357
      %v4363 = vmul.f32 %v4120, %v4357
      %v4364 = vmul.f32 %v4124, %v4357
      %v4365 = vmul.f32 %v4128, %v4357
      %v4366 = vmul.f32 %v4132, %v4357
      %v4367 = vmul.f32 %v4136, %v4357
      %v4368 = vmul.f32 %v4140, %v4357
      %v4369 = vmul.f32 %v4144, %v4357
      %v4370 = vmul.f32 %v4148, %v4357
      %v4371 = vmul.f32 %v4152, %v4357
      %v4372 = vmul.f32 %v4156, %v4357
      %v4373 = vmul.f32 %v4160, %v4357
      %v4374 = vmul.f32 %v4164, %v4357
      %v4375 = vmul.f32 %v4168, %v4357
      %v4376 = vmul.f32 %v4172, %v4357
      %v4377 = vmul.f32 %v4176, %v4357
      %v4378 = vmul.f32 %v4180, %v4357
      %v4379 = vmul.f32 %v4184, %v4357
      %v4380 = vmul.f32 %v4188, %v4357
      %v4381 = vmul.f32 %v4192, %v4357
      %v4382 = vmul.f32 %v4196, %v4357
      %v4383 = vmul.f32 %v4200, %v4357
      %v4384 = vmul.f32 %v4204, %v4357
      %v4385 = vmul.f32 %v4208, %v4357
      %v4386 = vmul.f32 %v4212, %v4357
      %v4387 = vmul.f32 %v4216, %v4357
      %v4388 = vmul.f32 %v4220, %v4357
      %v4389 = vmul.f32 %v4224, %v4357
      %v4390 = vmul.f32 %v4228, %v4357
      %v4391 = vmul.f32 %v4232, %v4357
      %v4392 = vmul.f32 %v4236, %v4357
      %v4393 = vmul.f32 %v4240, %v4357
      %v4394 = vmul.f32 %v4244, %v4357
      %v4395 = vmul.f32 %v4248, %v4357
      %v4396 = vmul.f32 %v4252, %v4357
      %v4397 = vmul.f32 %v4256, %v4357
      %v4398 = vmul.f32 %v4260, %v4357
      %v4399 = vmul.f32 %v4264, %v4357
      %v4400 = vmul.f32 %v4268, %v4357
      %v4401 = vmul.f32 %v4272, %v4357
      %v4402 = vmul.f32 %v4276, %v4357
      %v4403 = vmul.f32 %v4280, %v4357
      %v4404 = vmul.f32 %v4284, %v4357
      %v4405 = vmul.f32 %v4288, %v4357
      %v4406 = vmul.f32 %v4292, %v4357
      %v4407 = vmul.f32 %v4296, %v4357
      %v4408 = vmul.f32 %v4300, %v4357
      %v4409 = vmul.f32 %v4304, %v4357
      %v4410 = vmul.f32 %v4308, %v4357
      %v4411 = vmul.f32 %v4312, %v4357
      %v4412 = vmul.f32 %v4316, %v4357
      %v4413 = vmul.f32 %v4320, %v4357
      %v4414 = vmul.f32 %v4324, %v4357
      %v4415 = vmul.f32 %v4328, %v4357
      %v4416 = vmul.f32 %v4332, %v4357
      %v4417 = vmul.f32 %v4336, %v4357
      %v4418 = vmul.f32 %v4340, %v4357
      %v4419 = vmul.f32 %v4344, %v4357
      %v4420 = vmul.f32 %v4348, %v4357
      %v4421 = vmul.f32 %v4352, %v4357
      %v4422 = vadd.f32 %v4034, %v4358
      %v4423 = vadd.f32 %v4035, %v4359
      %v4424 = vadd.f32 %v4036, %v4360
      %v4425 = vadd.f32 %v4037, %v4361
      %v4426 = vadd.f32 %v4038, %v4362
      %v4427 = vadd.f32 %v4039, %v4363
      %v4428 = vadd.f32 %v4040, %v4364
      %v4429 = vadd.f32 %v4041, %v4365
      %v4430 = vadd.f32 %v4042, %v4366
      %v4431 = vadd.f32 %v4043, %v4367
      %v4432 = vadd.f32 %v4044, %v4368
      %v4433 = vadd.f32 %v4045, %v4369
      %v4434 = vadd.f32 %v4046, %v4370
      %v4435 = vadd.f32 %v4047, %v4371
      %v4436 = vadd.f32 %v4048, %v4372
      %v4437 = vadd.f32 %v4049, %v4373
      %v4438 = vadd.f32 %v4050, %v4374
      %v4439 = vadd.f32 %v4051, %v4375
      %v4440 = vadd.f32 %v4052, %v4376
      %v4441 = vadd.f32 %v4053, %v4377
      %v4442 = vadd.f32 %v4054, %v4378
      %v4443 = vadd.f32 %v4055, %v4379
      %v4444 = vadd.f32 %v4056, %v4380
      %v4445 = vadd.f32 %v4057, %v4381
      %v4446 = vadd.f32 %v4058, %v4382
      %v4447 = vadd.f32 %v4059, %v4383
      %v4448 = vadd.f32 %v4060, %v4384
      %v4449 = vadd.f32 %v4061, %v4385
      %v4450 = vadd.f32 %v4062, %v4386
      %v4451 = vadd.f32 %v4063, %v4387
      %v4452 = vadd.f32 %v4064, %v4388
      %v4453 = vadd.f32 %v4065, %v4389
      %v4454 = vadd.f32 %v4066, %v4390
      %v4455 = vadd.f32 %v4067, %v4391
      %v4456 = vadd.f32 %v4068, %v4392
      %v4457 = vadd.f32 %v4069, %v4393
      %v4458 = vadd.f32 %v4070, %v4394
      %v4459 = vadd.f32 %v4071, %v4395
      %v4460 = vadd.f32 %v4072, %v4396
      %v4461 = vadd.f32 %v4073, %v4397
      %v4462 = vadd.f32 %v4074, %v4398
      %v4463 = vadd.f32 %v4075, %v4399
      %v4464 = vadd.f32 %v4076, %v4400
      %v4465 = vadd.f32 %v4077, %v4401
      %v4466 = vadd.f32 %v4078, %v4402
      %v4467 = vadd.f32 %v4079, %v4403
      %v4468 = vadd.f32 %v4080, %v4404
      %v4469 = vadd.f32 %v4081, %v4405
      %v4470 = vadd.f32 %v4082, %v4406
      %v4471 = vadd.f32 %v4083, %v4407
      %v4472 = vadd.f32 %v4084, %v4408
      %v4473 = vadd.f32 %v4085, %v4409
      %v4474 = vadd.f32 %v4086, %v4410
      %v4475 = vadd.f32 %v4087, %v4411
      %v4476 = vadd.f32 %v4088, %v4412
      %v4477 = vadd.f32 %v4089, %v4413
      %v4478 = vadd.f32 %v4090, %v4414
      %v4479 = vadd.f32 %v4091, %v4415
      %v4480 = vadd.f32 %v4092, %v4416
      %v4481 = vadd.f32 %v4093, %v4417
      %v4482 = vadd.f32 %v4094, %v4418
      %v4483 = vadd.f32 %v4095, %v4419
      %v4484 = vadd.f32 %v4096, %v4420
      %v4485 = vadd.f32 %v4097, %v4421
      %v4486 = vlaneseq
      %v4487 = vshrl.u32 %v4486, 7
      %v4488 = vsub.s32 4, %v4487
      %v4489 = vrot.slane %v431, %v4488
      %v4490 = vadd.f32 %v4422, %v4489
      %v4491 = vadd.f32 %v4423, %v4489
      %v4492 = vadd.f32 %v4424, %v4489
      %v4493 = vadd.f32 %v4425, %v4489
      %v4494 = vadd.f32 %v4426, %v4489
      %v4495 = vadd.f32 %v4427, %v4489
      %v4496 = vadd.f32 %v4428, %v4489
      %v4497 = vadd.f32 %v4429, %v4489
      %v4498 = vadd.f32 %v4430, %v4489
      %v4499 = vadd.f32 %v4431, %v4489
      %v4500 = vadd.f32 %v4432, %v4489
      %v4501 = vadd.f32 %v4433, %v4489
      %v4502 = vadd.f32 %v4434, %v4489
      %v4503 = vadd.f32 %v4435, %v4489
      %v4504 = vadd.f32 %v4436, %v4489
      %v4505 = vadd.f32 %v4437, %v4489
      %v4506 = vadd.f32 %v4438, %v4489
      %v4507 = vadd.f32 %v4439, %v4489
      %v4508 = vadd.f32 %v4440, %v4489
      %v4509 = vadd.f32 %v4441, %v4489
      %v4510 = vadd.f32 %v4442, %v4489
      %v4511 = vadd.f32 %v4443, %v4489
      %v4512 = vadd.f32 %v4444, %v4489
      %v4513 = vadd.f32 %v4445, %v4489
      %v4514 = vadd.f32 %v4446, %v4489
      %v4515 = vadd.f32 %v4447, %v4489
      %v4516 = vadd.f32 %v4448, %v4489
      %v4517 = vadd.f32 %v4449, %v4489
      %v4518 = vadd.f32 %v4450, %v4489
      %v4519 = vadd.f32 %v4451, %v4489
      %v4520 = vadd.f32 %v4452, %v4489
      %v4521 = vadd.f32 %v4453, %v4489
      %v4522 = vadd.f32 %v4454, %v4489
      %v4523 = vadd.f32 %v4455, %v4489
      %v4524 = vadd.f32 %v4456, %v4489
      %v4525 = vadd.f32 %v4457, %v4489
      %v4526 = vadd.f32 %v4458, %v4489
      %v4527 = vadd.f32 %v4459, %v4489
      %v4528 = vadd.f32 %v4460, %v4489
      %v4529 = vadd.f32 %v4461, %v4489
      %v4530 = vadd.f32 %v4462, %v4489
      %v4531 = vadd.f32 %v4463, %v4489
      %v4532 = vadd.f32 %v4464, %v4489
      %v4533 = vadd.f32 %v4465, %v4489
      %v4534 = vadd.f32 %v4466, %v4489
      %v4535 = vadd.f32 %v4467, %v4489
      %v4536 = vadd.f32 %v4468, %v4489
      %v4537 = vadd.f32 %v4469, %v4489
      %v4538 = vadd.f32 %v4470, %v4489
      %v4539 = vadd.f32 %v4471, %v4489
      %v4540 = vadd.f32 %v4472, %v4489
      %v4541 = vadd.f32 %v4473, %v4489
      %v4542 = vadd.f32 %v4474, %v4489
      %v4543 = vadd.f32 %v4475, %v4489
      %v4544 = vadd.f32 %v4476, %v4489
      %v4545 = vadd.f32 %v4477, %v4489
      %v4546 = vadd.f32 %v4478, %v4489
      %v4547 = vadd.f32 %v4479, %v4489
      %v4548 = vadd.f32 %v4480, %v4489
      %v4549 = vadd.f32 %v4481, %v4489
      %v4550 = vadd.f32 %v4482, %v4489
      %v4551 = vadd.f32 %v4483, %v4489
      %v4552 = vadd.f32 %v4484, %v4489
      %v4553 = vadd.f32 %v4485, %v4489
      %v4554 = vmax.f32 %v4490, 0.0
      %v4555 = vmax.f32 %v4491, 0.0
      %v4556 = vmax.f32 %v4492, 0.0
      %v4557 = vmax.f32 %v4493, 0.0
      %v4558 = vmax.f32 %v4494, 0.0
      %v4559 = vmax.f32 %v4495, 0.0
      %v4560 = vmax.f32 %v4496, 0.0
      %v4561 = vmax.f32 %v4497, 0.0
      %v4562 = vmax.f32 %v4498, 0.0
      %v4563 = vmax.f32 %v4499, 0.0
      %v4564 = vmax.f32 %v4500, 0.0
      %v4565 = vmax.f32 %v4501, 0.0
      %v4566 = vmax.f32 %v4502, 0.0
      %v4567 = vmax.f32 %v4503, 0.0
      %v4568 = vmax.f32 %v4504, 0.0
      %v4569 = vmax.f32 %v4505, 0.0
      %v4570 = vmax.f32 %v4506, 0.0
      %v4571 = vmax.f32 %v4507, 0.0
      %v4572 = vmax.f32 %v4508, 0.0
      %v4573 = vmax.f32 %v4509, 0.0
      %v4574 = vmax.f32 %v4510, 0.0
      %v4575 = vmax.f32 %v4511, 0.0
      %v4576 = vmax.f32 %v4512, 0.0
      %v4577 = vmax.f32 %v4513, 0.0
      %v4578 = vmax.f32 %v4514, 0.0
      %v4579 = vmax.f32 %v4515, 0.0
      %v4580 = vmax.f32 %v4516, 0.0
      %v4581 = vmax.f32 %v4517, 0.0
      %v4582 = vmax.f32 %v4518, 0.0
      %v4583 = vmax.f32 %v4519, 0.0
      %v4584 = vmax.f32 %v4520, 0.0
      %v4585 = vmax.f32 %v4521, 0.0
      %v4586 = vmax.f32 %v4522, 0.0
      %v4587 = vmax.f32 %v4523, 0.0
      %v4588 = vmax.f32 %v4524, 0.0
      %v4589 = vmax.f32 %v4525, 0.0
      %v4590 = vmax.f32 %v4526, 0.0
      %v4591 = vmax.f32 %v4527, 0.0
      %v4592 = vmax.f32 %v4528, 0.0
      %v4593 = vmax.f32 %v4529, 0.0
      %v4594 = vmax.f32 %v4530, 0.0
      %v4595 = vmax.f32 %v4531, 0.0
      %v4596 = vmax.f32 %v4532, 0.0
      %v4597 = vmax.f32 %v4533, 0.0
      %v4598 = vmax.f32 %v4534, 0.0
      %v4599 = vmax.f32 %v4535, 0.0
      %v4600 = vmax.f32 %v4536, 0.0
      %v4601 = vmax.f32 %v4537, 0.0
      %v4602 = vmax.f32 %v4538, 0.0
      %v4603 = vmax.f32 %v4539, 0.0
      %v4604 = vmax.f32 %v4540, 0.0
      %v4605 = vmax.f32 %v4541, 0.0
      %v4606 = vmax.f32 %v4542, 0.0
      %v4607 = vmax.f32 %v4543, 0.0
      %v4608 = vmax.f32 %v4544, 0.0
      %v4609 = vmax.f32 %v4545, 0.0
      %v4610 = vmax.f32 %v4546, 0.0
      %v4611 = vmax.f32 %v4547, 0.0
      %v4612 = vmax.f32 %v4548, 0.0
      %v4613 = vmax.f32 %v4549, 0.0
      %v4614 = vmax.f32 %v4550, 0.0
      %v4615 = vmax.f32 %v4551, 0.0
      %v4616 = vmax.f32 %v4552, 0.0
      %v4617 = vmax.f32 %v4553, 0.0
      %v4618 = vpack.c.bf16 %v4555, %v4554
      %v4619 = vpack.c.bf16 %v4557, %v4556
      %v4620 = vpack.c.bf16 %v4559, %v4558
      %v4621 = vpack.c.bf16 %v4561, %v4560
      %v4622 = vpack.c.bf16 %v4563, %v4562
      %v4623 = vpack.c.bf16 %v4565, %v4564
      %v4624 = vpack.c.bf16 %v4567, %v4566
      %v4625 = vpack.c.bf16 %v4569, %v4568
      %v4626 = vpack.c.bf16 %v4571, %v4570
      %v4627 = vpack.c.bf16 %v4573, %v4572
      %v4628 = vpack.c.bf16 %v4575, %v4574
      %v4629 = vpack.c.bf16 %v4577, %v4576
      %v4630 = vpack.c.bf16 %v4579, %v4578
      %v4631 = vpack.c.bf16 %v4581, %v4580
      %v4632 = vpack.c.bf16 %v4583, %v4582
      %v4633 = vpack.c.bf16 %v4585, %v4584
      %v4634 = vpack.c.bf16 %v4587, %v4586
      %v4635 = vpack.c.bf16 %v4589, %v4588
      %v4636 = vpack.c.bf16 %v4591, %v4590
      %v4637 = vpack.c.bf16 %v4593, %v4592
      %v4638 = vpack.c.bf16 %v4595, %v4594
      %v4639 = vpack.c.bf16 %v4597, %v4596
      %v4640 = vpack.c.bf16 %v4599, %v4598
      %v4641 = vpack.c.bf16 %v4601, %v4600
      %v4642 = vpack.c.bf16 %v4603, %v4602
      %v4643 = vpack.c.bf16 %v4605, %v4604
      %v4644 = vpack.c.bf16 %v4607, %v4606
      %v4645 = vpack.c.bf16 %v4609, %v4608
      %v4646 = vpack.c.bf16 %v4611, %v4610
      %v4647 = vpack.c.bf16 %v4613, %v4612
      %v4648 = vpack.c.bf16 %v4615, %v4614
      %v4649 = vpack.c.bf16 %v4617, %v4616
      %v4650 = vld [vmem:[%s7] sm:$0xf]
      %v4651 = vld [vmem:[%s7 + $0x4] sm:$0xf]
      %v4652 = vld [vmem:[%s7 + $0x8] sm:$0xf]
      %v4653 = vld [vmem:[%s7 + $0xc] sm:$0xf]
      %v4654 = vld [vmem:[%s7 + $0x10] sm:$0xf]
      %v4655 = vld [vmem:[%s7 + $0x14] sm:$0xf]
      %v4656 = vld [vmem:[%s7 + $0x18] sm:$0xf]
      %v4657 = vld [vmem:[%s7 + $0x1c] sm:$0xf]
      %v4658 = vld [vmem:[%s7 + $0x20] sm:$0xf]
      %v4659 = vld [vmem:[%s7 + $0x24] sm:$0xf]
      %v4660 = vld [vmem:[%s7 + $0x28] sm:$0xf]
      %v4661 = vld [vmem:[%s7 + $0x2c] sm:$0xf]
      %v4662 = vld [vmem:[%s7 + $0x30] sm:$0xf]
      %v4663 = vld [vmem:[%s7 + $0x34] sm:$0xf]
      %v4664 = vld [vmem:[%s7 + $0x38] sm:$0xf]
      %v4665 = vld [vmem:[%s7 + $0x3c] sm:$0xf]
      %v4666 = vlaneseq
      %v4667 = vshrl.u32 %v4666, 7
      %v4668 = vsub.s32 5, %v4667
      %v4669 = vrot.slane %v431, %v4668
      %v4686 = vunpack.c.l.b16 %v4650
      %v4687 = vunpack.c.l.b16 %v4651
      %v4688 = vunpack.c.l.b16 %v4652
      %v4689 = vunpack.c.l.b16 %v4653
      %v4690 = vunpack.c.l.b16 %v4654
      %v4691 = vunpack.c.l.b16 %v4655
      %v4692 = vunpack.c.l.b16 %v4656
      %v4693 = vunpack.c.l.b16 %v4657
      %v4694 = vunpack.c.l.b16 %v4658
      %v4695 = vunpack.c.l.b16 %v4659
      %v4696 = vunpack.c.l.b16 %v4660
      %v4697 = vunpack.c.l.b16 %v4661
      %v4698 = vunpack.c.l.b16 %v4662
      %v4699 = vunpack.c.l.b16 %v4663
      %v4700 = vunpack.c.l.b16 %v4664
      %v4701 = vunpack.c.l.b16 %v4665
      %v4702 = vpack.c.b16 %v4687, %v4686
      %v4703 = vpack.c.b16 %v4689, %v4688
      %v4704 = vpack.c.b16 %v4691, %v4690
      %v4705 = vpack.c.b16 %v4693, %v4692
      %v4706 = vpack.c.b16 %v4695, %v4694
      %v4707 = vpack.c.b16 %v4697, %v4696
      %v4708 = vpack.c.b16 %v4699, %v4698
      %v4709 = vpack.c.b16 %v4701, %v4700
      %4718 = vmatprep.subr.bf16.mxu0 0
      %4719 = vmatpush1.bf16.msra.mxu0 %v4702
      %4720 = vmatprep.subr.bf16.mxu0 0
      %4721 = vmatpush1.bf16.msra.mxu0 %v4703
      %4722 = vmatprep.subr.bf16.mxu0 0
      %4723 = vmatpush1.bf16.msra.mxu0 %v4704
      %4724 = vmatprep.subr.bf16.mxu0 0
      %4725 = vmatpush1.bf16.msra.mxu0 %v4705
      %4726 = vmatprep.subr.bf16.mxu0 0
      %4727 = vmatpush1.bf16.msra.mxu0 %v4706
      %4728 = vmatprep.subr.bf16.mxu0 0
      %4729 = vmatpush1.bf16.msra.mxu0 %v4707
      %4730 = vmatprep.subr.bf16.mxu0 0
      %4731 = vmatpush1.bf16.msra.mxu0 %v4708
      %4732 = vmatprep.subr.bf16.mxu0 0
      %4733 = vmatpush1.bf16.msra.mxu0 %v4709
      %4734 = vmatprep.subr.bf16.mxu0 0
      %4735 = vmatpush1.bf16.msra.mxu0 0
      %4736 = vmatprep.subr.bf16.mxu0 0
      %4737 = vmatpush1.bf16.msra.mxu0 0
      %4738 = vmatprep.subr.bf16.mxu0 0
      %4739 = vmatpush1.bf16.msra.mxu0 0
      %4740 = vmatprep.subr.bf16.mxu0 0
      %4741 = vmatpush1.bf16.msra.mxu0 0
      %4742 = vmatprep.subr.bf16.mxu0 0
      %4743 = vmatpush1.bf16.msra.mxu0 0
      %4744 = vmatprep.subr.bf16.mxu0 0
      %4745 = vmatpush1.bf16.msra.mxu0 0
      %4746 = vmatprep.subr.bf16.mxu0 0
      %4747 = vmatpush1.bf16.msra.mxu0 0
      %4748 = vmatprep.subr.bf16.mxu0 0
      %4749 = vmatpush1.bf16.msra.mxu0 0
      %4750 = vmatprep.mubr.bf16.mxu0 0
      %4751 = vmatmul.mubr.bf16.gmra.mrb[0].mxu0 %v4618
      %v4752 = vpop.f32.mrb[0].mxu0
      %v4753 = vadd.f32 %v4669, %v4752
      %v4754 = vpop.f32.mrb[0].mxu0
      %v4755 = vpop.f32.mrb[0].mxu0
      %v4756 = vadd.f32 %v4669, %v4755
      %v4757 = vpop.f32.mrb[0].mxu0
      %4758 = vmatprep.mubr.bf16.mxu0 0
      %4759 = vmatmul.mubr.bf16.gmra.mrb[0].mxu0 %v4619
      %v4760 = vpop.f32.mrb[0].mxu0
      %v4761 = vadd.f32 %v4669, %v4760
      %v4762 = vpop.f32.mrb[0].mxu0
      %v4763 = vpop.f32.mrb[0].mxu0
      %v4764 = vadd.f32 %v4669, %v4763
      %v4765 = vpop.f32.mrb[0].mxu0
      %4766 = vmatprep.mubr.bf16.mxu0 0
      %4767 = vmatmul.mubr.bf16.gmra.mrb[0].mxu0 %v4620
      %v4768 = vpop.f32.mrb[0].mxu0
      %v4769 = vadd.f32 %v4669, %v4768
      %v4770 = vpop.f32.mrb[0].mxu0
      %v4771 = vpop.f32.mrb[0].mxu0
      %v4772 = vadd.f32 %v4669, %v4771
      %v4773 = vpop.f32.mrb[0].mxu0
      %4774 = vmatprep.mubr.bf16.mxu0 0
      %4775 = vmatmul.mubr.bf16.gmra.mrb[0].mxu0 %v4621
      %v4776 = vpop.f32.mrb[0].mxu0
      %v4777 = vadd.f32 %v4669, %v4776
      %v4778 = vpop.f32.mrb[0].mxu0
      %v4779 = vpop.f32.mrb[0].mxu0
      %v4780 = vadd.f32 %v4669, %v4779
      %v4781 = vpop.f32.mrb[0].mxu0
      %4782 = vmatprep.mubr.bf16.mxu0 0
      %4783 = vmatmul.mubr.bf16.gmra.mrb[0].mxu0 %v4622
      %v4784 = vpop.f32.mrb[0].mxu0
      %v4785 = vadd.f32 %v4669, %v4784
      %v4786 = vpop.f32.mrb[0].mxu0
      %v4787 = vpop.f32.mrb[0].mxu0
      %v4788 = vadd.f32 %v4669, %v4787
      %v4789 = vpop.f32.mrb[0].mxu0
      %4790 = vmatprep.mubr.bf16.mxu0 0
      %4791 = vmatmul.mubr.bf16.gmra.mrb[0].mxu0 %v4623
      %v4792 = vpop.f32.mrb[0].mxu0
      %v4793 = vadd.f32 %v4669, %v4792
      %v4794 = vpop.f32.mrb[0].mxu0
      %v4795 = vpop.f32.mrb[0].mxu0
      %v4796 = vadd.f32 %v4669, %v4795
      %v4797 = vpop.f32.mrb[0].mxu0
      %4798 = vmatprep.mubr.bf16.mxu0 0
      %4799 = vmatmul.mubr.bf16.gmra.mrb[0].mxu0 %v4624
      %v4800 = vpop.f32.mrb[0].mxu0
      %v4801 = vadd.f32 %v4669, %v4800
      %v4802 = vpop.f32.mrb[0].mxu0
      %v4803 = vpop.f32.mrb[0].mxu0
      %v4804 = vadd.f32 %v4669, %v4803
      %v4805 = vpop.f32.mrb[0].mxu0
      %4806 = vmatprep.mubr.bf16.mxu0 0
      %4807 = vmatmul.mubr.bf16.gmra.mrb[0].mxu0 %v4625
      %v4808 = vpop.f32.mrb[0].mxu0
      %v4809 = vadd.f32 %v4669, %v4808
      %v4810 = vpop.f32.mrb[0].mxu0
      %v4811 = vpop.f32.mrb[0].mxu0
      %v4812 = vadd.f32 %v4669, %v4811
      %v4813 = vpop.f32.mrb[0].mxu0
      %4814 = vmatprep.mubr.bf16.mxu0 0
      %4815 = vmatmul.mubr.bf16.gmra.mrb[0].mxu0 %v4626
      %v4816 = vpop.f32.mrb[0].mxu0
      %v4817 = vadd.f32 %v4669, %v4816
      %v4818 = vpop.f32.mrb[0].mxu0
      %v4819 = vpop.f32.mrb[0].mxu0
      %v4820 = vadd.f32 %v4669, %v4819
      %v4821 = vpop.f32.mrb[0].mxu0
      %4822 = vmatprep.mubr.bf16.mxu0 0
      %4823 = vmatmul.mubr.bf16.gmra.mrb[0].mxu0 %v4627
      %v4824 = vpop.f32.mrb[0].mxu0
      %v4825 = vadd.f32 %v4669, %v4824
      %v4826 = vpop.f32.mrb[0].mxu0
      %v4827 = vpop.f32.mrb[0].mxu0
      %v4828 = vadd.f32 %v4669, %v4827
      %v4829 = vpop.f32.mrb[0].mxu0
      %4830 = vmatprep.mubr.bf16.mxu0 0
      %4831 = vmatmul.mubr.bf16.gmra.mrb[0].mxu0 %v4628
      %v4832 = vpop.f32.mrb[0].mxu0
      %v4833 = vadd.f32 %v4669, %v4832
      %v4834 = vpop.f32.mrb[0].mxu0
      %v4835 = vpop.f32.mrb[0].mxu0
      %v4836 = vadd.f32 %v4669, %v4835
      %v4837 = vpop.f32.mrb[0].mxu0
      %4838 = vmatprep.mubr.bf16.mxu0 0
      %4839 = vmatmul.mubr.bf16.gmra.mrb[0].mxu0 %v4629
      %v4840 = vpop.f32.mrb[0].mxu0
      %v4841 = vadd.f32 %v4669, %v4840
      %v4842 = vpop.f32.mrb[0].mxu0
      %v4843 = vpop.f32.mrb[0].mxu0
      %v4844 = vadd.f32 %v4669, %v4843
      %v4845 = vpop.f32.mrb[0].mxu0
      %4846 = vmatprep.mubr.bf16.mxu0 0
      %4847 = vmatmul.mubr.bf16.gmra.mrb[0].mxu0 %v4630
      %v4848 = vpop.f32.mrb[0].mxu0
      %v4849 = vadd.f32 %v4669, %v4848
      %v4850 = vpop.f32.mrb[0].mxu0
      %v4851 = vpop.f32.mrb[0].mxu0
      %v4852 = vadd.f32 %v4669, %v4851
      %v4853 = vpop.f32.mrb[0].mxu0
      %4854 = vmatprep.mubr.bf16.mxu0 0
      %4855 = vmatmul.mubr.bf16.gmra.mrb[0].mxu0 %v4631
      %v4856 = vpop.f32.mrb[0].mxu0
      %v4857 = vadd.f32 %v4669, %v4856
      %v4858 = vpop.f32.mrb[0].mxu0
      %v4859 = vpop.f32.mrb[0].mxu0
      %v4860 = vadd.f32 %v4669, %v4859
      %v4861 = vpop.f32.mrb[0].mxu0
      %4862 = vmatprep.mubr.bf16.mxu0 0
      %4863 = vmatmul.mubr.bf16.gmra.mrb[0].mxu0 %v4632
      %v4864 = vpop.f32.mrb[0].mxu0
      %v4865 = vadd.f32 %v4669, %v4864
      %v4866 = vpop.f32.mrb[0].mxu0
      %v4867 = vpop.f32.mrb[0].mxu0
      %v4868 = vadd.f32 %v4669, %v4867
      %v4869 = vpop.f32.mrb[0].mxu0
      %4870 = vmatprep.mubr.bf16.mxu0 0
      %4871 = vmatmul.mubr.bf16.gmra.mrb[0].mxu0 %v4633
      %v4872 = vpop.f32.mrb[0].mxu0
      %v4873 = vadd.f32 %v4669, %v4872
      %v4874 = vpop.f32.mrb[0].mxu0
      %v4875 = vpop.f32.mrb[0].mxu0
      %v4876 = vadd.f32 %v4669, %v4875
      %v4877 = vpop.f32.mrb[0].mxu0
      %4878 = vmatprep.mubr.bf16.mxu0 0
      %4879 = vmatmul.mubr.bf16.gmra.mrb[0].mxu0 %v4634
      %v4880 = vpop.f32.mrb[0].mxu0
      %v4881 = vadd.f32 %v4669, %v4880
      %v4882 = vpop.f32.mrb[0].mxu0
      %v4883 = vpop.f32.mrb[0].mxu0
      %v4884 = vadd.f32 %v4669, %v4883
      %v4885 = vpop.f32.mrb[0].mxu0
      %4886 = vmatprep.mubr.bf16.mxu0 0
      %4887 = vmatmul.mubr.bf16.gmra.mrb[0].mxu0 %v4635
      %v4888 = vpop.f32.mrb[0].mxu0
      %v4889 = vadd.f32 %v4669, %v4888
      %v4890 = vpop.f32.mrb[0].mxu0
      %v4891 = vpop.f32.mrb[0].mxu0
      %v4892 = vadd.f32 %v4669, %v4891
      %v4893 = vpop.f32.mrb[0].mxu0
      %4894 = vmatprep.mubr.bf16.mxu0 0
      %4895 = vmatmul.mubr.bf16.gmra.mrb[0].mxu0 %v4636
      %v4896 = vpop.f32.mrb[0].mxu0
      %v4897 = vadd.f32 %v4669, %v4896
      %v4898 = vpop.f32.mrb[0].mxu0
      %v4899 = vpop.f32.mrb[0].mxu0
      %v4900 = vadd.f32 %v4669, %v4899
      %v4901 = vpop.f32.mrb[0].mxu0
      %4902 = vmatprep.mubr.bf16.mxu0 0
      %4903 = vmatmul.mubr.bf16.gmra.mrb[0].mxu0 %v4637
      %v4904 = vpop.f32.mrb[0].mxu0
      %v4905 = vadd.f32 %v4669, %v4904
      %v4906 = vpop.f32.mrb[0].mxu0
      %v4907 = vpop.f32.mrb[0].mxu0
      %v4908 = vadd.f32 %v4669, %v4907
      %v4909 = vpop.f32.mrb[0].mxu0
      %4910 = vmatprep.mubr.bf16.mxu0 0
      %4911 = vmatmul.mubr.bf16.gmra.mrb[0].mxu0 %v4638
      %v4912 = vpop.f32.mrb[0].mxu0
      %v4913 = vadd.f32 %v4669, %v4912
      %v4914 = vpop.f32.mrb[0].mxu0
      %v4915 = vpop.f32.mrb[0].mxu0
      %v4916 = vadd.f32 %v4669, %v4915
      %v4917 = vpop.f32.mrb[0].mxu0
      %4918 = vmatprep.mubr.bf16.mxu0 0
      %4919 = vmatmul.mubr.bf16.gmra.mrb[0].mxu0 %v4639
      %v4920 = vpop.f32.mrb[0].mxu0
      %v4921 = vadd.f32 %v4669, %v4920
      %v4922 = vpop.f32.mrb[0].mxu0
      %v4923 = vpop.f32.mrb[0].mxu0
      %v4924 = vadd.f32 %v4669, %v4923
      %v4925 = vpop.f32.mrb[0].mxu0
      %4926 = vmatprep.mubr.bf16.mxu0 0
      %4927 = vmatmul.mubr.bf16.gmra.mrb[0].mxu0 %v4640
      %v4928 = vpop.f32.mrb[0].mxu0
      %v4929 = vadd.f32 %v4669, %v4928
      %v4930 = vpop.f32.mrb[0].mxu0
      %v4931 = vpop.f32.mrb[0].mxu0
      %v4932 = vadd.f32 %v4669, %v4931
      %v4933 = vpop.f32.mrb[0].mxu0
      %4934 = vmatprep.mubr.bf16.mxu0 0
      %4935 = vmatmul.mubr.bf16.gmra.mrb[0].mxu0 %v4641
      %v4936 = vpop.f32.mrb[0].mxu0
      %v4937 = vadd.f32 %v4669, %v4936
      %v4938 = vpop.f32.mrb[0].mxu0
      %v4939 = vpop.f32.mrb[0].mxu0
      %v4940 = vadd.f32 %v4669, %v4939
      %v4941 = vpop.f32.mrb[0].mxu0
      %4942 = vmatprep.mubr.bf16.mxu0 0
      %4943 = vmatmul.mubr.bf16.gmra.mrb[0].mxu0 %v4642
      %v4944 = vpop.f32.mrb[0].mxu0
      %v4945 = vadd.f32 %v4669, %v4944
      %v4946 = vpop.f32.mrb[0].mxu0
      %v4947 = vpop.f32.mrb[0].mxu0
      %v4948 = vadd.f32 %v4669, %v4947
      %v4949 = vpop.f32.mrb[0].mxu0
      %4950 = vmatprep.mubr.bf16.mxu0 0
      %4951 = vmatmul.mubr.bf16.gmra.mrb[0].mxu0 %v4643
      %v4952 = vpop.f32.mrb[0].mxu0
      %v4953 = vadd.f32 %v4669, %v4952
      %v4954 = vpop.f32.mrb[0].mxu0
      %v4955 = vpop.f32.mrb[0].mxu0
      %v4956 = vadd.f32 %v4669, %v4955
      %v4957 = vpop.f32.mrb[0].mxu0
      %4958 = vmatprep.mubr.bf16.mxu0 0
      %4959 = vmatmul.mubr.bf16.gmra.mrb[0].mxu0 %v4644
      %v4960 = vpop.f32.mrb[0].mxu0
      %v4961 = vadd.f32 %v4669, %v4960
      %v4962 = vpop.f32.mrb[0].mxu0
      %v4963 = vpop.f32.mrb[0].mxu0
      %v4964 = vadd.f32 %v4669, %v4963
      %v4965 = vpop.f32.mrb[0].mxu0
      %4966 = vmatprep.mubr.bf16.mxu0 0
      %4967 = vmatmul.mubr.bf16.gmra.mrb[0].mxu0 %v4645
      %v4968 = vpop.f32.mrb[0].mxu0
      %v4969 = vadd.f32 %v4669, %v4968
      %v4970 = vpop.f32.mrb[0].mxu0
      %v4971 = vpop.f32.mrb[0].mxu0
      %v4972 = vadd.f32 %v4669, %v4971
      %v4973 = vpop.f32.mrb[0].mxu0
      %4974 = vmatprep.mubr.bf16.mxu0 0
      %4975 = vmatmul.mubr.bf16.gmra.mrb[0].mxu0 %v4646
      %v4976 = vpop.f32.mrb[0].mxu0
      %v4977 = vadd.f32 %v4669, %v4976
      %v4978 = vpop.f32.mrb[0].mxu0
      %v4979 = vpop.f32.mrb[0].mxu0
      %v4980 = vadd.f32 %v4669, %v4979
      %v4981 = vpop.f32.mrb[0].mxu0
      %4982 = vmatprep.mubr.bf16.mxu0 0
      %4983 = vmatmul.mubr.bf16.gmra.mrb[0].mxu0 %v4647
      %v4984 = vpop.f32.mrb[0].mxu0
      %v4985 = vadd.f32 %v4669, %v4984
      %v4986 = vpop.f32.mrb[0].mxu0
      %v4987 = vpop.f32.mrb[0].mxu0
      %v4988 = vadd.f32 %v4669, %v4987
      %v4989 = vpop.f32.mrb[0].mxu0
      %4990 = vmatprep.mubr.bf16.mxu0 0
      %4991 = vmatmul.mubr.bf16.gmra.mrb[0].mxu0 %v4648
      %v4992 = vpop.f32.mrb[0].mxu0
      %v4993 = vadd.f32 %v4669, %v4992
      %v4994 = vpop.f32.mrb[0].mxu0
      %v4995 = vpop.f32.mrb[0].mxu0
      %v4996 = vadd.f32 %v4669, %v4995
      %v4997 = vpop.f32.mrb[0].mxu0
      %4998 = vmatprep.mubr.bf16.mxu0 0
      %4999 = vmatmul.mubr.bf16.gmra.mrb[0].mxu0 %v4649
      %v5000 = vpop.f32.mrb[0].mxu0
      %v5001 = vadd.f32 %v4669, %v5000
      %v5002 = vpop.f32.mrb[0].mxu0
      %v5003 = vpop.f32.mrb[0].mxu0
      %v5004 = vadd.f32 %v4669, %v5003
      %v5005 = vpop.f32.mrb[0].mxu0
      %5006 = vdwg.mxu0
      %v5007 = vmax.f32 %v4753, 0.0
      %v5008 = vmax.f32 %v4756, 0.0
      %v5009 = vmax.f32 %v4761, 0.0
      %v5010 = vmax.f32 %v4764, 0.0
      %v5011 = vmax.f32 %v4769, 0.0
      %v5012 = vmax.f32 %v4772, 0.0
      %v5013 = vmax.f32 %v4777, 0.0
      %v5014 = vmax.f32 %v4780, 0.0
      %v5015 = vmax.f32 %v4785, 0.0
      %v5016 = vmax.f32 %v4788, 0.0
      %v5017 = vmax.f32 %v4793, 0.0
      %v5018 = vmax.f32 %v4796, 0.0
      %v5019 = vmax.f32 %v4801, 0.0
      %v5020 = vmax.f32 %v4804, 0.0
      %v5021 = vmax.f32 %v4809, 0.0
      %v5022 = vmax.f32 %v4812, 0.0
      %v5023 = vmax.f32 %v4817, 0.0
      %v5024 = vmax.f32 %v4820, 0.0
      %v5025 = vmax.f32 %v4825, 0.0
      %v5026 = vmax.f32 %v4828, 0.0
      %v5027 = vmax.f32 %v4833, 0.0
      %v5028 = vmax.f32 %v4836, 0.0
      %v5029 = vmax.f32 %v4841, 0.0
      %v5030 = vmax.f32 %v4844, 0.0
      %v5031 = vmax.f32 %v4849, 0.0
      %v5032 = vmax.f32 %v4852, 0.0
      %v5033 = vmax.f32 %v4857, 0.0
      %v5034 = vmax.f32 %v4860, 0.0
      %v5035 = vmax.f32 %v4865, 0.0
      %v5036 = vmax.f32 %v4868, 0.0
      %v5037 = vmax.f32 %v4873, 0.0
      %v5038 = vmax.f32 %v4876, 0.0
      %v5039 = vmax.f32 %v4881, 0.0
      %v5040 = vmax.f32 %v4884, 0.0
      %v5041 = vmax.f32 %v4889, 0.0
      %v5042 = vmax.f32 %v4892, 0.0
      %v5043 = vmax.f32 %v4897, 0.0
      %v5044 = vmax.f32 %v4900, 0.0
      %v5045 = vmax.f32 %v4905, 0.0
      %v5046 = vmax.f32 %v4908, 0.0
      %v5047 = vmax.f32 %v4913, 0.0
      %v5048 = vmax.f32 %v4916, 0.0
      %v5049 = vmax.f32 %v4921, 0.0
      %v5050 = vmax.f32 %v4924, 0.0
      %v5051 = vmax.f32 %v4929, 0.0
      %v5052 = vmax.f32 %v4932, 0.0
      %v5053 = vmax.f32 %v4937, 0.0
      %v5054 = vmax.f32 %v4940, 0.0
      %v5055 = vmax.f32 %v4945, 0.0
      %v5056 = vmax.f32 %v4948, 0.0
      %v5057 = vmax.f32 %v4953, 0.0
      %v5058 = vmax.f32 %v4956, 0.0
      %v5059 = vmax.f32 %v4961, 0.0
      %v5060 = vmax.f32 %v4964, 0.0
      %v5061 = vmax.f32 %v4969, 0.0
      %v5062 = vmax.f32 %v4972, 0.0
      %v5063 = vmax.f32 %v4977, 0.0
      %v5064 = vmax.f32 %v4980, 0.0
      %v5065 = vmax.f32 %v4985, 0.0
      %v5066 = vmax.f32 %v4988, 0.0
      %v5067 = vmax.f32 %v4993, 0.0
      %v5068 = vmax.f32 %v4996, 0.0
      %v5069 = vmax.f32 %v5001, 0.0
      %v5070 = vmax.f32 %v5004, 0.0
      %v5071 = vpack.c.bf16 %v5008, %v5007
      %v5072 = vpack.c.bf16 %v5010, %v5009
      %v5073 = vpack.c.bf16 %v5012, %v5011
      %v5074 = vpack.c.bf16 %v5014, %v5013
      %v5075 = vpack.c.bf16 %v5016, %v5015
      %v5076 = vpack.c.bf16 %v5018, %v5017
      %v5077 = vpack.c.bf16 %v5020, %v5019
      %v5078 = vpack.c.bf16 %v5022, %v5021
      %v5079 = vpack.c.bf16 %v5024, %v5023
      %v5080 = vpack.c.bf16 %v5026, %v5025
      %v5081 = vpack.c.bf16 %v5028, %v5027
      %v5082 = vpack.c.bf16 %v5030, %v5029
      %v5083 = vpack.c.bf16 %v5032, %v5031
      %v5084 = vpack.c.bf16 %v5034, %v5033
      %v5085 = vpack.c.bf16 %v5036, %v5035
      %v5086 = vpack.c.bf16 %v5038, %v5037
      %v5087 = vpack.c.bf16 %v5040, %v5039
      %v5088 = vpack.c.bf16 %v5042, %v5041
      %v5089 = vpack.c.bf16 %v5044, %v5043
      %v5090 = vpack.c.bf16 %v5046, %v5045
      %v5091 = vpack.c.bf16 %v5048, %v5047
      %v5092 = vpack.c.bf16 %v5050, %v5049
      %v5093 = vpack.c.bf16 %v5052, %v5051
      %v5094 = vpack.c.bf16 %v5054, %v5053
      %v5095 = vpack.c.bf16 %v5056, %v5055
      %v5096 = vpack.c.bf16 %v5058, %v5057
      %v5097 = vpack.c.bf16 %v5060, %v5059
      %v5098 = vpack.c.bf16 %v5062, %v5061
      %v5099 = vpack.c.bf16 %v5064, %v5063
      %v5100 = vpack.c.bf16 %v5066, %v5065
      %v5101 = vpack.c.bf16 %v5068, %v5067
      %v5102 = vpack.c.bf16 %v5070, %v5069
      %v5103 = vld [vmem:[%s8] sm:$0xf]
      %v5104 = vld [vmem:[%s8 + $0x4] sm:$0xf]
      %v5105 = vld [vmem:[%s8 + $0x8] sm:$0xf]
      %v5106 = vld [vmem:[%s8 + $0xc] sm:$0xf]
      %v5107 = vld [vmem:[%s8 + $0x10] sm:$0xf]
      %v5108 = vld [vmem:[%s8 + $0x14] sm:$0xf]
      %v5109 = vld [vmem:[%s8 + $0x18] sm:$0xf]
      %v5110 = vld [vmem:[%s8 + $0x1c] sm:$0xf]
      %v5111 = vld [vmem:[%s8 + $0x20] sm:$0xf]
      %v5112 = vld [vmem:[%s8 + $0x24] sm:$0xf]
      %v5113 = vld [vmem:[%s8 + $0x28] sm:$0xf]
      %v5114 = vld [vmem:[%s8 + $0x2c] sm:$0xf]
      %v5115 = vld [vmem:[%s8 + $0x30] sm:$0xf]
      %v5116 = vld [vmem:[%s8 + $0x34] sm:$0xf]
      %v5117 = vld [vmem:[%s8 + $0x38] sm:$0xf]
      %v5118 = vld [vmem:[%s8 + $0x3c] sm:$0xf]
      %v5119 = vlaneseq
      %v5120 = vshrl.u32 %v5119, 7
      %v5121 = vsub.s32 6, %v5120
      %v5122 = vrot.slane %v431, %v5121
      %v5139 = vunpack.c.l.b16 %v5103
      %v5140 = vunpack.c.l.b16 %v5104
      %v5141 = vunpack.c.l.b16 %v5105
      %v5142 = vunpack.c.l.b16 %v5106
      %v5143 = vunpack.c.l.b16 %v5107
      %v5144 = vunpack.c.l.b16 %v5108
      %v5145 = vunpack.c.l.b16 %v5109
      %v5146 = vunpack.c.l.b16 %v5110
      %v5147 = vunpack.c.l.b16 %v5111
      %v5148 = vunpack.c.l.b16 %v5112
      %v5149 = vunpack.c.l.b16 %v5113
      %v5150 = vunpack.c.l.b16 %v5114
      %v5151 = vunpack.c.l.b16 %v5115
      %v5152 = vunpack.c.l.b16 %v5116
      %v5153 = vunpack.c.l.b16 %v5117
      %v5154 = vunpack.c.l.b16 %v5118
      %v5155 = vpack.c.b16 %v5140, %v5139
      %v5156 = vpack.c.b16 %v5142, %v5141
      %v5157 = vpack.c.b16 %v5144, %v5143
      %v5158 = vpack.c.b16 %v5146, %v5145
      %v5159 = vpack.c.b16 %v5148, %v5147
      %v5160 = vpack.c.b16 %v5150, %v5149
      %v5161 = vpack.c.b16 %v5152, %v5151
      %v5162 = vpack.c.b16 %v5154, %v5153
      %5171 = vmatprep.subr.bf16.mxu0 0
      %5172 = vmatpush1.bf16.msra.mxu0 %v5155
      %5173 = vmatprep.subr.bf16.mxu0 0
      %5174 = vmatpush1.bf16.msra.mxu0 %v5156
      %5175 = vmatprep.subr.bf16.mxu0 0
      %5176 = vmatpush1.bf16.msra.mxu0 %v5157
      %5177 = vmatprep.subr.bf16.mxu0 0
      %5178 = vmatpush1.bf16.msra.mxu0 %v5158
      %5179 = vmatprep.subr.bf16.mxu0 0
      %5180 = vmatpush1.bf16.msra.mxu0 %v5159
      %5181 = vmatprep.subr.bf16.mxu0 0
      %5182 = vmatpush1.bf16.msra.mxu0 %v5160
      %5183 = vmatprep.subr.bf16.mxu0 0
      %5184 = vmatpush1.bf16.msra.mxu0 %v5161
      %5185 = vmatprep.subr.bf16.mxu0 0
      %5186 = vmatpush1.bf16.msra.mxu0 %v5162
      %5187 = vmatprep.subr.bf16.mxu0 0
      %5188 = vmatpush1.bf16.msra.mxu0 0
      %5189 = vmatprep.subr.bf16.mxu0 0
      %5190 = vmatpush1.bf16.msra.mxu0 0
      %5191 = vmatprep.subr.bf16.mxu0 0
      %5192 = vmatpush1.bf16.msra.mxu0 0
      %5193 = vmatprep.subr.bf16.mxu0 0
      %5194 = vmatpush1.bf16.msra.mxu0 0
      %5195 = vmatprep.subr.bf16.mxu0 0
      %5196 = vmatpush1.bf16.msra.mxu0 0
      %5197 = vmatprep.subr.bf16.mxu0 0
      %5198 = vmatpush1.bf16.msra.mxu0 0
      %5199 = vmatprep.subr.bf16.mxu0 0
      %5200 = vmatpush1.bf16.msra.mxu0 0
      %5201 = vmatprep.subr.bf16.mxu0 0
      %5202 = vmatpush1.bf16.msra.mxu0 0
      %5203 = vmatprep.mubr.bf16.mxu0 0
      %5204 = vmatmul.mubr.bf16.gmra.mrb[0].mxu0 %v5071
      %v5205 = vpop.f32.mrb[0].mxu0
      %v5206 = vadd.f32 %v5122, %v5205
      %v5207 = vpop.f32.mrb[0].mxu0
      %v5208 = vpop.f32.mrb[0].mxu0
      %v5209 = vadd.f32 %v5122, %v5208
      %v5210 = vpop.f32.mrb[0].mxu0
      %5211 = vmatprep.mubr.bf16.mxu0 0
      %5212 = vmatmul.mubr.bf16.gmra.mrb[0].mxu0 %v5072
      %v5213 = vpop.f32.mrb[0].mxu0
      %v5214 = vadd.f32 %v5122, %v5213
      %v5215 = vpop.f32.mrb[0].mxu0
      %v5216 = vpop.f32.mrb[0].mxu0
      %v5217 = vadd.f32 %v5122, %v5216
      %v5218 = vpop.f32.mrb[0].mxu0
      %5219 = vmatprep.mubr.bf16.mxu0 0
      %5220 = vmatmul.mubr.bf16.gmra.mrb[0].mxu0 %v5073
      %v5221 = vpop.f32.mrb[0].mxu0
      %v5222 = vadd.f32 %v5122, %v5221
      %v5223 = vpop.f32.mrb[0].mxu0
      %v5224 = vpop.f32.mrb[0].mxu0
      %v5225 = vadd.f32 %v5122, %v5224
      %v5226 = vpop.f32.mrb[0].mxu0
      %5227 = vmatprep.mubr.bf16.mxu0 0
      %5228 = vmatmul.mubr.bf16.gmra.mrb[0].mxu0 %v5074
      %v5229 = vpop.f32.mrb[0].mxu0
      %v5230 = vadd.f32 %v5122, %v5229
      %v5231 = vpop.f32.mrb[0].mxu0
      %v5232 = vpop.f32.mrb[0].mxu0
      %v5233 = vadd.f32 %v5122, %v5232
      %v5234 = vpop.f32.mrb[0].mxu0
      %5235 = vmatprep.mubr.bf16.mxu0 0
      %5236 = vmatmul.mubr.bf16.gmra.mrb[0].mxu0 %v5075
      %v5237 = vpop.f32.mrb[0].mxu0
      %v5238 = vadd.f32 %v5122, %v5237
      %v5239 = vpop.f32.mrb[0].mxu0
      %v5240 = vpop.f32.mrb[0].mxu0
      %v5241 = vadd.f32 %v5122, %v5240
      %v5242 = vpop.f32.mrb[0].mxu0
      %5243 = vmatprep.mubr.bf16.mxu0 0
      %5244 = vmatmul.mubr.bf16.gmra.mrb[0].mxu0 %v5076
      %v5245 = vpop.f32.mrb[0].mxu0
      %v5246 = vadd.f32 %v5122, %v5245
      %v5247 = vpop.f32.mrb[0].mxu0
      %v5248 = vpop.f32.mrb[0].mxu0
      %v5249 = vadd.f32 %v5122, %v5248
      %v5250 = vpop.f32.mrb[0].mxu0
      %5251 = vmatprep.mubr.bf16.mxu0 0
      %5252 = vmatmul.mubr.bf16.gmra.mrb[0].mxu0 %v5077
      %v5253 = vpop.f32.mrb[0].mxu0
      %v5254 = vadd.f32 %v5122, %v5253
      %v5255 = vpop.f32.mrb[0].mxu0
      %v5256 = vpop.f32.mrb[0].mxu0
      %v5257 = vadd.f32 %v5122, %v5256
      %v5258 = vpop.f32.mrb[0].mxu0
      %5259 = vmatprep.mubr.bf16.mxu0 0
      %5260 = vmatmul.mubr.bf16.gmra.mrb[0].mxu0 %v5078
      %v5261 = vpop.f32.mrb[0].mxu0
      %v5262 = vadd.f32 %v5122, %v5261
      %v5263 = vpop.f32.mrb[0].mxu0
      %v5264 = vpop.f32.mrb[0].mxu0
      %v5265 = vadd.f32 %v5122, %v5264
      %v5266 = vpop.f32.mrb[0].mxu0
      %5267 = vmatprep.mubr.bf16.mxu0 0
      %5268 = vmatmul.mubr.bf16.gmra.mrb[0].mxu0 %v5079
      %v5269 = vpop.f32.mrb[0].mxu0
      %v5270 = vadd.f32 %v5122, %v5269
      %v5271 = vpop.f32.mrb[0].mxu0
      %v5272 = vpop.f32.mrb[0].mxu0
      %v5273 = vadd.f32 %v5122, %v5272
      %v5274 = vpop.f32.mrb[0].mxu0
      %5275 = vmatprep.mubr.bf16.mxu0 0
      %5276 = vmatmul.mubr.bf16.gmra.mrb[0].mxu0 %v5080
      %v5277 = vpop.f32.mrb[0].mxu0
      %v5278 = vadd.f32 %v5122, %v5277
      %v5279 = vpop.f32.mrb[0].mxu0
      %v5280 = vpop.f32.mrb[0].mxu0
      %v5281 = vadd.f32 %v5122, %v5280
      %v5282 = vpop.f32.mrb[0].mxu0
      %5283 = vmatprep.mubr.bf16.mxu0 0
      %5284 = vmatmul.mubr.bf16.gmra.mrb[0].mxu0 %v5081
      %v5285 = vpop.f32.mrb[0].mxu0
      %v5286 = vadd.f32 %v5122, %v5285
      %v5287 = vpop.f32.mrb[0].mxu0
      %v5288 = vpop.f32.mrb[0].mxu0
      %v5289 = vadd.f32 %v5122, %v5288
      %v5290 = vpop.f32.mrb[0].mxu0
      %5291 = vmatprep.mubr.bf16.mxu0 0
      %5292 = vmatmul.mubr.bf16.gmra.mrb[0].mxu0 %v5082
      %v5293 = vpop.f32.mrb[0].mxu0
      %v5294 = vadd.f32 %v5122, %v5293
      %v5295 = vpop.f32.mrb[0].mxu0
      %v5296 = vpop.f32.mrb[0].mxu0
      %v5297 = vadd.f32 %v5122, %v5296
      %v5298 = vpop.f32.mrb[0].mxu0
      %5299 = vmatprep.mubr.bf16.mxu0 0
      %5300 = vmatmul.mubr.bf16.gmra.mrb[0].mxu0 %v5083
      %v5301 = vpop.f32.mrb[0].mxu0
      %v5302 = vadd.f32 %v5122, %v5301
      %v5303 = vpop.f32.mrb[0].mxu0
      %v5304 = vpop.f32.mrb[0].mxu0
      %v5305 = vadd.f32 %v5122, %v5304
      %v5306 = vpop.f32.mrb[0].mxu0
      %5307 = vmatprep.mubr.bf16.mxu0 0
      %5308 = vmatmul.mubr.bf16.gmra.mrb[0].mxu0 %v5084
      %v5309 = vpop.f32.mrb[0].mxu0
      %v5310 = vadd.f32 %v5122, %v5309
      %v5311 = vpop.f32.mrb[0].mxu0
      %v5312 = vpop.f32.mrb[0].mxu0
      %v5313 = vadd.f32 %v5122, %v5312
      %v5314 = vpop.f32.mrb[0].mxu0
      %5315 = vmatprep.mubr.bf16.mxu0 0
      %5316 = vmatmul.mubr.bf16.gmra.mrb[0].mxu0 %v5085
      %v5317 = vpop.f32.mrb[0].mxu0
      %v5318 = vadd.f32 %v5122, %v5317
      %v5319 = vpop.f32.mrb[0].mxu0
      %v5320 = vpop.f32.mrb[0].mxu0
      %v5321 = vadd.f32 %v5122, %v5320
      %v5322 = vpop.f32.mrb[0].mxu0
      %5323 = vmatprep.mubr.bf16.mxu0 0
      %5324 = vmatmul.mubr.bf16.gmra.mrb[0].mxu0 %v5086
      %v5325 = vpop.f32.mrb[0].mxu0
      %v5326 = vadd.f32 %v5122, %v5325
      %v5327 = vpop.f32.mrb[0].mxu0
      %v5328 = vpop.f32.mrb[0].mxu0
      %v5329 = vadd.f32 %v5122, %v5328
      %v5330 = vpop.f32.mrb[0].mxu0
      %5331 = vmatprep.mubr.bf16.mxu0 0
      %5332 = vmatmul.mubr.bf16.gmra.mrb[0].mxu0 %v5087
      %v5333 = vpop.f32.mrb[0].mxu0
      %v5334 = vadd.f32 %v5122, %v5333
      %v5335 = vpop.f32.mrb[0].mxu0
      %v5336 = vpop.f32.mrb[0].mxu0
      %v5337 = vadd.f32 %v5122, %v5336
      %v5338 = vpop.f32.mrb[0].mxu0
      %5339 = vmatprep.mubr.bf16.mxu0 0
      %5340 = vmatmul.mubr.bf16.gmra.mrb[0].mxu0 %v5088
      %v5341 = vpop.f32.mrb[0].mxu0
      %v5342 = vadd.f32 %v5122, %v5341
      %v5343 = vpop.f32.mrb[0].mxu0
      %v5344 = vpop.f32.mrb[0].mxu0
      %v5345 = vadd.f32 %v5122, %v5344
      %v5346 = vpop.f32.mrb[0].mxu0
      %5347 = vmatprep.mubr.bf16.mxu0 0
      %5348 = vmatmul.mubr.bf16.gmra.mrb[0].mxu0 %v5089
      %v5349 = vpop.f32.mrb[0].mxu0
      %v5350 = vadd.f32 %v5122, %v5349
      %v5351 = vpop.f32.mrb[0].mxu0
      %v5352 = vpop.f32.mrb[0].mxu0
      %v5353 = vadd.f32 %v5122, %v5352
      %v5354 = vpop.f32.mrb[0].mxu0
      %5355 = vmatprep.mubr.bf16.mxu0 0
      %5356 = vmatmul.mubr.bf16.gmra.mrb[0].mxu0 %v5090
      %v5357 = vpop.f32.mrb[0].mxu0
      %v5358 = vadd.f32 %v5122, %v5357
      %v5359 = vpop.f32.mrb[0].mxu0
      %v5360 = vpop.f32.mrb[0].mxu0
      %v5361 = vadd.f32 %v5122, %v5360
      %v5362 = vpop.f32.mrb[0].mxu0
      %5363 = vmatprep.mubr.bf16.mxu0 0
      %5364 = vmatmul.mubr.bf16.gmra.mrb[0].mxu0 %v5091
      %v5365 = vpop.f32.mrb[0].mxu0
      %v5366 = vadd.f32 %v5122, %v5365
      %v5367 = vpop.f32.mrb[0].mxu0
      %v5368 = vpop.f32.mrb[0].mxu0
      %v5369 = vadd.f32 %v5122, %v5368
      %v5370 = vpop.f32.mrb[0].mxu0
      %5371 = vmatprep.mubr.bf16.mxu0 0
      %5372 = vmatmul.mubr.bf16.gmra.mrb[0].mxu0 %v5092
      %v5373 = vpop.f32.mrb[0].mxu0
      %v5374 = vadd.f32 %v5122, %v5373
      %v5375 = vpop.f32.mrb[0].mxu0
      %v5376 = vpop.f32.mrb[0].mxu0
      %v5377 = vadd.f32 %v5122, %v5376
      %v5378 = vpop.f32.mrb[0].mxu0
      %5379 = vmatprep.mubr.bf16.mxu0 0
      %5380 = vmatmul.mubr.bf16.gmra.mrb[0].mxu0 %v5093
      %v5381 = vpop.f32.mrb[0].mxu0
      %v5382 = vadd.f32 %v5122, %v5381
      %v5383 = vpop.f32.mrb[0].mxu0
      %v5384 = vpop.f32.mrb[0].mxu0
      %v5385 = vadd.f32 %v5122, %v5384
      %v5386 = vpop.f32.mrb[0].mxu0
      %5387 = vmatprep.mubr.bf16.mxu0 0
      %5388 = vmatmul.mubr.bf16.gmra.mrb[0].mxu0 %v5094
      %v5389 = vpop.f32.mrb[0].mxu0
      %v5390 = vadd.f32 %v5122, %v5389
      %v5391 = vpop.f32.mrb[0].mxu0
      %v5392 = vpop.f32.mrb[0].mxu0
      %v5393 = vadd.f32 %v5122, %v5392
      %v5394 = vpop.f32.mrb[0].mxu0
      %5395 = vmatprep.mubr.bf16.mxu0 0
      %5396 = vmatmul.mubr.bf16.gmra.mrb[0].mxu0 %v5095
      %v5397 = vpop.f32.mrb[0].mxu0
      %v5398 = vadd.f32 %v5122, %v5397
      %v5399 = vpop.f32.mrb[0].mxu0
      %v5400 = vpop.f32.mrb[0].mxu0
      %v5401 = vadd.f32 %v5122, %v5400
      %v5402 = vpop.f32.mrb[0].mxu0
      %5403 = vmatprep.mubr.bf16.mxu0 0
      %5404 = vmatmul.mubr.bf16.gmra.mrb[0].mxu0 %v5096
      %v5405 = vpop.f32.mrb[0].mxu0
      %v5406 = vadd.f32 %v5122, %v5405
      %v5407 = vpop.f32.mrb[0].mxu0
      %v5408 = vpop.f32.mrb[0].mxu0
      %v5409 = vadd.f32 %v5122, %v5408
      %v5410 = vpop.f32.mrb[0].mxu0
      %5411 = vmatprep.mubr.bf16.mxu0 0
      %5412 = vmatmul.mubr.bf16.gmra.mrb[0].mxu0 %v5097
      %v5413 = vpop.f32.mrb[0].mxu0
      %v5414 = vadd.f32 %v5122, %v5413
      %v5415 = vpop.f32.mrb[0].mxu0
      %v5416 = vpop.f32.mrb[0].mxu0
      %v5417 = vadd.f32 %v5122, %v5416
      %v5418 = vpop.f32.mrb[0].mxu0
      %5419 = vmatprep.mubr.bf16.mxu0 0
      %5420 = vmatmul.mubr.bf16.gmra.mrb[0].mxu0 %v5098
      %v5421 = vpop.f32.mrb[0].mxu0
      %v5422 = vadd.f32 %v5122, %v5421
      %v5423 = vpop.f32.mrb[0].mxu0
      %v5424 = vpop.f32.mrb[0].mxu0
      %v5425 = vadd.f32 %v5122, %v5424
      %v5426 = vpop.f32.mrb[0].mxu0
      %5427 = vmatprep.mubr.bf16.mxu0 0
      %5428 = vmatmul.mubr.bf16.gmra.mrb[0].mxu0 %v5099
      %v5429 = vpop.f32.mrb[0].mxu0
      %v5430 = vadd.f32 %v5122, %v5429
      %v5431 = vpop.f32.mrb[0].mxu0
      %v5432 = vpop.f32.mrb[0].mxu0
      %v5433 = vadd.f32 %v5122, %v5432
      %v5434 = vpop.f32.mrb[0].mxu0
      %5435 = vmatprep.mubr.bf16.mxu0 0
      %5436 = vmatmul.mubr.bf16.gmra.mrb[0].mxu0 %v5100
      %v5437 = vpop.f32.mrb[0].mxu0
      %v5438 = vadd.f32 %v5122, %v5437
      %v5439 = vpop.f32.mrb[0].mxu0
      %v5440 = vpop.f32.mrb[0].mxu0
      %v5441 = vadd.f32 %v5122, %v5440
      %v5442 = vpop.f32.mrb[0].mxu0
      %5443 = vmatprep.mubr.bf16.mxu0 0
      %5444 = vmatmul.mubr.bf16.gmra.mrb[0].mxu0 %v5101
      %v5445 = vpop.f32.mrb[0].mxu0
      %v5446 = vadd.f32 %v5122, %v5445
      %v5447 = vpop.f32.mrb[0].mxu0
      %v5448 = vpop.f32.mrb[0].mxu0
      %v5449 = vadd.f32 %v5122, %v5448
      %v5450 = vpop.f32.mrb[0].mxu0
      %5451 = vmatprep.mubr.bf16.mxu0 0
      %5452 = vmatmul.mubr.bf16.gmra.mrb[0].mxu0 %v5102
      %v5453 = vpop.f32.mrb[0].mxu0
      %v5454 = vadd.f32 %v5122, %v5453
      %v5455 = vpop.f32.mrb[0].mxu0
      %v5456 = vpop.f32.mrb[0].mxu0
      %v5457 = vadd.f32 %v5122, %v5456
      %v5458 = vpop.f32.mrb[0].mxu0
      %5459 = vdwg.mxu0
      %vm5460 = vcmask 23552
      %5461 = vst.msk [vmem:[%s364] sm:$0xff] %vm5460, %v5206
      %5462 = vst.msk [vmem:[%s364 + $0x8] sm:$0xff] %vm5460, %v5209
      %5463 = vst.msk [vmem:[%s364 + $0x10] sm:$0xff] %vm5460, %v5214
      %5464 = vst.msk [vmem:[%s364 + $0x18] sm:$0xff] %vm5460, %v5217
      %5465 = vst.msk [vmem:[%s364 + $0x20] sm:$0xff] %vm5460, %v5222
      %5466 = vst.msk [vmem:[%s364 + $0x28] sm:$0xff] %vm5460, %v5225
      %5467 = vst.msk [vmem:[%s364 + $0x30] sm:$0xff] %vm5460, %v5230
      %5468 = vst.msk [vmem:[%s364 + $0x38] sm:$0xff] %vm5460, %v5233
      %5469 = vst.msk [vmem:[%s364 + $0x40] sm:$0xff] %vm5460, %v5238
      %5470 = vst.msk [vmem:[%s364 + $0x48] sm:$0xff] %vm5460, %v5241
      %5471 = vst.msk [vmem:[%s364 + $0x50] sm:$0xff] %vm5460, %v5246
      %5472 = vst.msk [vmem:[%s364 + $0x58] sm:$0xff] %vm5460, %v5249
      %5473 = vst.msk [vmem:[%s364 + $0x60] sm:$0xff] %vm5460, %v5254
      %5474 = vst.msk [vmem:[%s364 + $0x68] sm:$0xff] %vm5460, %v5257
      %5475 = vst.msk [vmem:[%s364 + $0x70] sm:$0xff] %vm5460, %v5262
      %5476 = vst.msk [vmem:[%s364 + $0x78] sm:$0xff] %vm5460, %v5265
      %5477 = vst.msk [vmem:[%s364 + $0x80] sm:$0xff] %vm5460, %v5270
      %5478 = vst.msk [vmem:[%s364 + $0x88] sm:$0xff] %vm5460, %v5273
      %5479 = vst.msk [vmem:[%s364 + $0x90] sm:$0xff] %vm5460, %v5278
      %5480 = vst.msk [vmem:[%s364 + $0x98] sm:$0xff] %vm5460, %v5281
      %5481 = vst.msk [vmem:[%s364 + $0xa0] sm:$0xff] %vm5460, %v5286
      %5482 = vst.msk [vmem:[%s364 + $0xa8] sm:$0xff] %vm5460, %v5289
      %5483 = vst.msk [vmem:[%s364 + $0xb0] sm:$0xff] %vm5460, %v5294
      %5484 = vst.msk [vmem:[%s364 + $0xb8] sm:$0xff] %vm5460, %v5297
      %5485 = vst.msk [vmem:[%s364 + $0xc0] sm:$0xff] %vm5460, %v5302
      %5486 = vst.msk [vmem:[%s364 + $0xc8] sm:$0xff] %vm5460, %v5305
      %5487 = vst.msk [vmem:[%s364 + $0xd0] sm:$0xff] %vm5460, %v5310
      %5488 = vst.msk [vmem:[%s364 + $0xd8] sm:$0xff] %vm5460, %v5313
      %5489 = vst.msk [vmem:[%s364 + $0xe0] sm:$0xff] %vm5460, %v5318
      %5490 = vst.msk [vmem:[%s364 + $0xe8] sm:$0xff] %vm5460, %v5321
      %5491 = vst.msk [vmem:[%s364 + $0xf0] sm:$0xff] %vm5460, %v5326
      %5492 = vst.msk [vmem:[%s364 + $0xf8] sm:$0xff] %vm5460, %v5329
      %5493 = vst.msk [vmem:[%s364 + $0x100] sm:$0xff] %vm5460, %v5334
      %5494 = vst.msk [vmem:[%s364 + $0x108] sm:$0xff] %vm5460, %v5337
      %5495 = vst.msk [vmem:[%s364 + $0x110] sm:$0xff] %vm5460, %v5342
      %5496 = vst.msk [vmem:[%s364 + $0x118] sm:$0xff] %vm5460, %v5345
      %5497 = vst.msk [vmem:[%s364 + $0x120] sm:$0xff] %vm5460, %v5350
      %5498 = vst.msk [vmem:[%s364 + $0x128] sm:$0xff] %vm5460, %v5353
      %5499 = vst.msk [vmem:[%s364 + $0x130] sm:$0xff] %vm5460, %v5358
      %5500 = vst.msk [vmem:[%s364 + $0x138] sm:$0xff] %vm5460, %v5361
      %5501 = vst.msk [vmem:[%s364 + $0x140] sm:$0xff] %vm5460, %v5366
      %5502 = vst.msk [vmem:[%s364 + $0x148] sm:$0xff] %vm5460, %v5369
      %5503 = vst.msk [vmem:[%s364 + $0x150] sm:$0xff] %vm5460, %v5374
      %5504 = vst.msk [vmem:[%s364 + $0x158] sm:$0xff] %vm5460, %v5377
      %5505 = vst.msk [vmem:[%s364 + $0x160] sm:$0xff] %vm5460, %v5382
      %5506 = vst.msk [vmem:[%s364 + $0x168] sm:$0xff] %vm5460, %v5385
      %5507 = vst.msk [vmem:[%s364 + $0x170] sm:$0xff] %vm5460, %v5390
      %5508 = vst.msk [vmem:[%s364 + $0x178] sm:$0xff] %vm5460, %v5393
      %5509 = vst.msk [vmem:[%s364 + $0x180] sm:$0xff] %vm5460, %v5398
      %5510 = vst.msk [vmem:[%s364 + $0x188] sm:$0xff] %vm5460, %v5401
      %5511 = vst.msk [vmem:[%s364 + $0x190] sm:$0xff] %vm5460, %v5406
      %5512 = vst.msk [vmem:[%s364 + $0x198] sm:$0xff] %vm5460, %v5409
      %5513 = vst.msk [vmem:[%s364 + $0x1a0] sm:$0xff] %vm5460, %v5414
      %5514 = vst.msk [vmem:[%s364 + $0x1a8] sm:$0xff] %vm5460, %v5417
      %5515 = vst.msk [vmem:[%s364 + $0x1b0] sm:$0xff] %vm5460, %v5422
      %5516 = vst.msk [vmem:[%s364 + $0x1b8] sm:$0xff] %vm5460, %v5425
      %5517 = vst.msk [vmem:[%s364 + $0x1c0] sm:$0xff] %vm5460, %v5430
      %5518 = vst.msk [vmem:[%s364 + $0x1c8] sm:$0xff] %vm5460, %v5433
      %5519 = vst.msk [vmem:[%s364 + $0x1d0] sm:$0xff] %vm5460, %v5438
      %5520 = vst.msk [vmem:[%s364 + $0x1d8] sm:$0xff] %vm5460, %v5441
      %5521 = vst.msk [vmem:[%s364 + $0x1e0] sm:$0xff] %vm5460, %v5446
      %5522 = vst.msk [vmem:[%s364 + $0x1e8] sm:$0xff] %vm5460, %v5449
      %5523 = vst.msk [vmem:[%s364 + $0x1f0] sm:$0xff] %vm5460, %v5454
      %5524 = vst.msk [vmem:[%s364 + $0x1f8] sm:$0xff] %vm5460, %v5457
      %s5525 = smul.u32 64, %s21
      %p5526 = scmp.lt.s32.totalorder %s5525, 127
      %s5527 = scalar_select %p5526, %s5525, 127
      %s5528 = smul.addr %s5527, 8
      %s5529 = scalar_lea.vmem %s10, %s5528
      // Predicated region
      $region61: #{nonrigid_motion_mlp.1} parent=59 // pred_check
        %p5530 = pneg %p254
      $region62: #{nonrigid_motion_mlp.1} parent=59 // pred_check_branch
        %5532 = sbr.rel (%p5530) target = $region64
      $region63: #{nonrigid_motion_mlp.1} parent=59 // pred_region
        %s5533 = smul.u32 64, %s21
      $region64: #{nonrigid_motion_mlp.1} parent=59 // pred_fallthru
        _
    $region60: #{nonrigid_motion_mlp.1} parent=5 // pred_fallthru
      _
    %p5534 = scmp.le.s32.totalorder 2, %s16
    // Predicated region
    $region65: #{nonrigid_motion_mlp.1} parent=5 // pred_check
      %p5535 = pneg %p5534
    $region66: #{nonrigid_motion_mlp.1} parent=5 // pred_check_branch
      %5537 = sbr.rel (%p5535) target = $region68
    $region67: #{nonrigid_motion_mlp.1} parent=5 // pred_region
      %s5538 = ssub.s32 %s16, 2
      // Predicated region
      $region69: #{nonrigid_motion_mlp.1} parent=67 // pred_check
        %p5539 = pneg %p260
      $region70: #{nonrigid_motion_mlp.1} parent=67 // pred_check_branch
        %5541 = sbr.rel (%p5539) target = $region72
      $region71: #{nonrigid_motion_mlp.1} parent=67 // pred_region
        %s5542 = smul.u32 64, %s22
        %p5543 = scmp.lt.s32.totalorder %s5542, 127
        %s5544 = scalar_select %p5543, %s5542, 127
        %s5545 = smul.addr %s5544, 8
        %s5546 = scalar_lea.vmem %s10, %s5545
      $region72: #{nonrigid_motion_mlp.1} parent=67 // pred_fallthru
        _
    $region68: #{nonrigid_motion_mlp.1} parent=5 // pred_fallthru
      _
  $region6: #{nonrigid_motion_mlp.1} parent=0 // loop_footer
    %s20 = sadd.s32 1, %s16
  $region7: #{nonrigid_motion_mlp.1} parent=0 // loop_footer_branch
    %15 = sbr.rel target = $region3
  $region8: #{nonrigid_motion_mlp.1} parent=0 // loop_exit
    _

</llo_original>
